<compile_context>
chip_gen: v6e
topology: v6e:2x2x1
jax: 0.10.0
libtpu: 0.0.40
codegen_flags: <defaults>
</compile_context>

<pallas_src>
import functools
import math
import numpy as np
import jax
import jax.numpy as jnp
from jax.experimental import pallas as pl
from jax.experimental.pallas import tpu as pltpu

INV_SQRT2 = 0.7071067811865476
C1 = 24   # conv1 output channels (fixed by the module)
C2 = 12   # conv2 output channels (fixed by the module)


# ---------------------------------------------------------------------------
# in-kernel helpers (trace-time Python, basic Mosaic-lowerable jnp only)
# ---------------------------------------------------------------------------
def _shift_rows(y, off):
    """z[r] = y[(r + off) % n] along the flat-spatial (sublane) axis.

    Wrap-around (roll) semantics: every wrapped row is either zeroed by the
    host-built conv tap-validity masks or lands on an odd (h, w) position that
    the 2x2 pool subsample discards, so no zero-pad buffers are needed."""
    n = y.shape[0]
    off = off % n
    if off == 0:
        return y
    return jnp.concatenate([y[off:, :], y[:off, :]], axis=0)


def _conv3x3_im2col(y, maskbig, w_ref, b_ref, W):
    """3x3 / stride-1 / pad-1 conv on batch-stacked flat-spatial maps (rows, Cin).

    im2col in bf16: the 9 shifted tap copies are lane-concatenated, zeroed with a
    host-precomputed bf16 (rows, 9*Cin) validity mask (covers zero padding AND
    image boundaries in the stacked layout) and contracted in one bf16 MXU
    matmul with f32 accumulation."""
    yb = y.astype(jnp.bfloat16)
    taps = [_shift_rows(yb, (ky - 1) * W + (kx - 1))
            for ky in range(3) for kx in range(3)]
    col = jnp.concatenate(taps, axis=1) * maskbig               # (rows, 9*Cin) bf16
    return jnp.dot(col, w_ref[...], preferred_element_type=jnp.float32) + b_ref[...]


def _pool2x2_max(y, W):
    """Pairwise maxima of a 2x2 / stride-2 max pool (subsampling done by caller)."""
    m = jnp.maximum(y, _shift_rows(y, 1))      # max along w
    return jnp.maximum(m, _shift_rows(m, W))   # max along h


# ---------------------------------------------------------------------------
# Pallas kernel: TB batch elements per grid step
# ---------------------------------------------------------------------------
def tensor_fusion_kernel(x1_ref, v23_ref,
                         mask1_ref, w1_ref, b1_ref, sel1_ref,
                         mask2_ref, w2_ref, b2_ref,
                         poolsel2_ref, rsum2_ref, wc_ref, bc_ref,
                         o_ref, *, TB, d1, d2):
    H, W = d1, d2
    HW = H * W
    H2, W2 = H // 2, W // 2
    HW2 = H2 * W2
    L2 = (H2 // 2) * (W2 // 2)
    d0 = x1_ref.shape[1]

    # --- block[b*HW + h*W + w, c] = x1[b,c] * x2[b,h] * x3[b,w] --------------
    # v23 = x2 (x) x3 precomputed by XLA in the wrapper; x1 replicated over the
    # HW rows with a sublane broadcast (no gather matmuls, no O(TB^2) constants).
    x1rep = jnp.broadcast_to(x1_ref[...][:, None, :],
                             (TB, HW, d0)).reshape(TB * HW, d0)
    block = v23_ref[...] * x1rep                                     # (R1, d0) f32

    # --- conv1 (one bf16 K=9*d0 MXU matmul) + 2x2 max pool --------------------
    f1 = _conv3x3_im2col(block, mask1_ref[...], w1_ref, b1_ref, W)   # (R1, 24) f32
    m1 = _pool2x2_max(f1.astype(jnp.bfloat16), W)                    # (R1, 24) bf16

    # --- pool-1 subsample: one batched bf16 one-hot contraction ---------------
    m1r = m1.reshape(TB, HW, C1)
    sel1b = jnp.broadcast_to(sel1_ref[...], (TB, HW2, HW))
    p1 = jnp.einsum('bqh,bhc->bqc', sel1b, m1r,
                    preferred_element_type=jnp.float32).reshape(TB * HW2, C1)

    # --- conv2 (one bf16 K=9*24 MXU matmul) + 2x2 max pool --------------------
    f2 = _conv3x3_im2col(p1, mask2_ref[...], w2_ref, b2_ref, W2)     # (R2, 12) f32
    m2 = _pool2x2_max(f2.astype(jnp.bfloat16), W2)                   # (R2, 12) bf16

    # --- pool-2 subsample + NCHW flatten + classifier + GELU (loop-free) ------
    # p2flat[b, q*12+c] = m2[b*HW2 + src(q), c]: lane-tile m2 L2 times, zero with
    # a constant bf16 subsample mask, reduce rows per image with a bf16 one-hot
    # matmul, then a single (TB, L2*12) @ (L2*12, out) bf16 classifier matmul.
    e = jnp.concatenate([m2] * L2, axis=1)                           # (R2, L2*12) bf16
    p2flat = jnp.dot(rsum2_ref[...], e * poolsel2_ref[...],
                     preferred_element_type=jnp.float32)             # (TB, L2*12)
    logits = jnp.dot(p2flat.astype(jnp.bfloat16), wc_ref[...],
                     preferred_element_type=jnp.float32) + bc_ref[...]
    gelu = 0.5 * logits * (1.0 + jax.lax.erf(logits * INV_SQRT2))
    o_ref[...] = gelu.astype(o_ref.dtype)


# ---------------------------------------------------------------------------
# host-side constant construction (numpy, trace-time only)
# ---------------------------------------------------------------------------
def _im2col_mask(rows, Hn, Wn, cin):
    rl = np.arange(rows)
    rloc = rl % (Hn * Wn)
    hh, ww = rloc // Wn, rloc % Wn
    m = np.zeros((rows, 9 * cin), np.float32)
    for ky in range(3):
        for kx in range(3):
            t = ky * 3 + kx
            dy, dx = ky - 1, kx - 1
            ok = ((hh + dy >= 0) & (hh + dy < Hn) &
                  (ww + dx >= 0) & (ww + dx < Wn)).astype(np.float32)
            m[:, t * cin:(t + 1) * cin] = ok[:, None]
    return m


def _build_constants(TB, d0, d1, d2, out_features,
                     conv1_w, conv1_b, conv2_w, conv2_b, fc_w, fc_b):
    H, W = d1, d2
    HW = H * W
    H2, W2 = H // 2, W // 2
    HW2 = H2 * W2
    H4, W4 = H2 // 2, W2 // 2
    L2 = H4 * W4
    R1, R2 = TB * HW, TB * HW2

    # conv tap-validity masks (zero padding + image boundaries + roll wrap),
    # im2col-expanded; exact 0/1 values -> bf16 is lossless.
    mask1 = _im2col_mask(R1, H, W, d0)
    mask2 = _im2col_mask(R2, H2, W2, C1)

    # pool-1 per-image subsample one-hot: (HW2, HW)
    q1 = np.arange(HW2)
    sel1 = np.zeros((HW2, HW), np.float32)
    sel1[q1, 2 * (q1 // W2) * W + 2 * (q1 % W2)] = 1.0

    # pool-2 subsample + NCHW-order flatten mask: (R2, L2*C2) and per-image row-sum
    q2 = np.arange(L2)
    src2 = 2 * (q2 // W4) * W2 + 2 * (q2 % W4)
    rho = np.arange(R2)
    poolsel2 = np.zeros((R2, L2 * C2), np.float32)
    for q in range(L2):
        poolsel2[rho % HW2 == src2[q], q * C2:(q + 1) * C2] = 1.0
    rsum2 = np.zeros((TB, R2), np.float32)
    rsum2[rho // HW2, rho] = 1.0

    # weights: conv -> im2col (9*Cin, Cout); fc -> NCHW-flatten order (L2*C2, out)
    w1 = np.transpose(np.asarray(conv1_w), (2, 3, 1, 0)).reshape(9 * d0, C1)
    w2 = np.transpose(np.asarray(conv2_w), (2, 3, 1, 0)).reshape(9 * C1, C2)
    b1 = np.asarray(conv1_b).reshape(1, C1)
    b2 = np.asarray(conv2_b).reshape(1, C2)
    wc = np.transpose(np.asarray(fc_w).reshape(out_features, C2, L2),
                      (2, 1, 0)).reshape(L2 * C2, out_features)
    bc = np.asarray(fc_b).reshape(1, out_features)

    f32 = lambda a: jnp.asarray(a, jnp.float32)
    bf16 = lambda a: jnp.asarray(a, jnp.bfloat16)
    return (bf16(mask1), bf16(w1), f32(b1), bf16(sel1),
            bf16(mask2), bf16(w2), f32(b2),
            bf16(poolsel2), bf16(rsum2), bf16(wc), f32(bc))


# ---------------------------------------------------------------------------
# wrapper
# ---------------------------------------------------------------------------
def tensor_fusion_forward(x1, x2, x3, params, batch_tile=32):
    """x1:(B,d0), x2:(B,d1), x3:(B,d2) float32; params in PyTorch layouts."""
    conv1_w, conv1_b, conv2_w, conv2_b, fc_w, fc_b = params
    B, d0 = x1.shape
    d1, d2 = x2.shape[1], x3.shape[1]
    assert d1 % 4 == 0 and d2 % 4 == 0, "spatial dims must be divisible by 4 (two 2x2 pools)"
    out_features = fc_w.shape[0]
    HW = d1 * d2

    # --- batch-tile selection (VMEM-capped; constants/slabs are O(TB)) --------
    per_img = (HW * 9 * d0 * 2                 # conv1 tap mask (bf16)
               + (HW // 4) * 9 * C1 * 2        # conv2 tap mask (bf16)
               + (HW // 4) * (HW // 16) * C2 * 2   # pool-2/flatten mask (bf16)
               + HW * 9 * d0 * 2               # conv1 im2col slab (bf16)
               + HW * d0 * 4                   # block slab (f32)
               + HW * C1 * 4)                  # conv1 feature map (f32)
    tb_cap = max(1, (12 * 1024 * 1024) // per_img)
    TB = max(1, min(batch_tile, B, tb_cap))
    # v7x megacore: a single-step grid on a large batch leaves one TensorCore
    # idle; split into >=2 steps (keep TB a multiple of 8 for aligned blocks).
    if TB >= B >= 16:
        TB = min(TB, max(8, ((-(-B // 2)) + 7) // 8 * 8))

    Bp = -(-B // TB) * TB
    if Bp != B:
        pad = Bp - B
        x1 = jnp.concatenate([x1, jnp.zeros((pad, d0), x1.dtype)], axis=0)
        x2 = jnp.concatenate([x2, jnp.zeros((pad, d1), x2.dtype)], axis=0)
        x3 = jnp.concatenate([x3, jnp.zeros((pad, d2), x3.dtype)], axis=0)

    # x2 (x) x3 outer product precomputed by XLA (perf review item 1): ~HW floats
    # per image, removes the O(TB^2) one-hot gather constants and two N=1 f32
    # MXU matmuls from the kernel.
    v23 = (x2[:, :, None] * x3[:, None, :]).reshape(Bp * HW, 1).astype(jnp.float32)

    consts = _build_constants(TB, d0, d1, d2, out_features,
                              conv1_w, conv1_b, conv2_w, conv2_b, fc_w, fc_b)

    data_specs = [pl.BlockSpec((TB, d0), lambda g: (g, 0)),
                  pl.BlockSpec((TB * HW, 1), lambda g: (g, 0))]
    # Constant operands: constant index_map -> fetched once and VMEM-resident.
    const_specs = [pl.BlockSpec(c.shape, lambda g: (0, 0)) for c in consts]

    # Only raise the scoped-VMEM limit when the estimated footprint needs it
    # (keeps small configs on every chip's default, incl. v5e's 16 MiB).
    const_bytes = sum(int(c.size) * c.dtype.itemsize for c in consts)
    vmem_est = 2 * const_bytes + per_img * TB
    cp_kwargs = dict(dimension_semantics=("parallel",))
    if vmem_est > 10 * 1024 * 1024:
        cp_kwargs["vmem_limit_bytes"] = int(min(max(vmem_est * 3 // 2,
                                                    16 * 1024 * 1024),
                                                56 * 1024 * 1024))

    kern = functools.partial(tensor_fusion_kernel, TB=TB, d1=d1, d2=d2)
    out = pl.pallas_call(
        kern,
        out_shape=jax.ShapeDtypeStruct((Bp, out_features), jnp.float32),
        grid=(Bp // TB,),
        in_specs=data_specs + const_specs,
        out_specs=pl.BlockSpec((TB, out_features), lambda g: (g, 0)),
        compiler_params=pltpu.CompilerParams(**cp_kwargs),
    )(x1, v23, *consts)
    return out[:B]


# ---------------------------------------------------------------------------
# plain-JAX reference (PyTorch semantics) for verification
# ---------------------------------------------------------------------------
def reference(x1, x2, x3, conv1_w, conv1_b, conv2_w, conv2_b, fc_w, fc_b):
    block = jnp.einsum('bi,bj,bk->bijk', x1, x2, x3)                 # NCHW
    dn = ('NCHW', 'OIHW', 'NCHW')
    hp = jax.lax.Precision.HIGHEST
    y = jax.lax.conv_general_dilated(block, conv1_w, (1, 1), [(1, 1), (1, 1)],
                                     dimension_numbers=dn, precision=hp)
    y = y + conv1_b[None, :, None, None]
    y = jax.lax.reduce_window(y, -jnp.inf, jax.lax.max, (1, 1, 2, 2), (1, 1, 2, 2), 'VALID')
    y = jax.lax.conv_general_dilated(y, conv2_w, (1, 1), [(1, 1), (1, 1)],
                                     dimension_numbers=dn, precision=hp)
    y = y + conv2_b[None, :, None, None]
    y = jax.lax.reduce_window(y, -jnp.inf, jax.lax.max, (1, 1, 2, 2), (1, 1, 2, 2), 'VALID')
    y = y.reshape(y.shape[0], -1)
    z = jnp.dot(y, fc_w.T, precision=hp) + fc_b
    return 0.5 * z * (1.0 + jax.lax.erf(z * INV_SQRT2))


if __name__ == "__main__":
    # small shapes consistent with the module: represent_dim=[d0, d1, d2], apply_cnn=True
    B = 2
    represent_dim = [16, 16, 16]
    d0, d1, d2 = represent_dim
    out_features = 48
    H4, W4 = d1 // 4, d2 // 4
    in_features = H4 * W4 * 12
    assert in_features == math.prod([i // 4 for i in represent_dim[1:]]) * 12

    key = jax.random.PRNGKey(0)
    ks = jax.random.split(key, 16)
    x1 = jax.random.normal(ks[0], (B, d0), jnp.float32)
    x2 = jax.random.normal(ks[1], (B, d1), jnp.float32)
    x3 = jax.random.normal(ks[2], (B, d2), jnp.float32)

    # deterministic synthetic parameters (PyTorch layouts)
    conv1_w = jax.random.normal(ks[3], (24, d0, 3, 3), jnp.float32) * 0.05
    conv1_b = jax.random.normal(ks[4], (24,), jnp.float32) * 0.05
    conv2_w = jax.random.normal(ks[5], (12, 24, 3, 3), jnp.float32) * 0.05
    conv2_b = jax.random.normal(ks[6], (12,), jnp.float32) * 0.05
    fc_w = jax.random.normal(ks[7], (out_features, in_features), jnp.float32) * 0.05
    fc_b = jax.random.normal(ks[8], (out_features,), jnp.float32) * 0.05

    params = (conv1_w, conv1_b, conv2_w, conv2_b, fc_w, fc_b)
    out = jax.block_until_ready(tensor_fusion_forward(x1, x2, x3, params))

    ref = jax.block_until_ready(
        reference(x1, x2, x3, conv1_w, conv1_b, conv2_w, conv2_b, fc_w, fc_b))

    # tolerance accounts for bf16 MXU operands (f32 accumulation) in the conv /
    # selection / classifier matmuls.
    np.testing.assert_allclose(np.asarray(out), np.asarray(ref), rtol=3e-2, atol=3e-2)
    print("KERNEL_OK")
</pallas_src>

<mosaic_0001>
module attributes {stable_mosaic.version = 11 : i64} {
  func.func @tensor_fusion_kernel(%arg0: i32, %arg1: memref<2x16xf32, #tpu.memory_space<vmem>>, %arg2: memref<512x1xf32, #tpu.memory_space<vmem>>, %arg3: memref<512x144xbf16, #tpu.memory_space<vmem>>, %arg4: memref<144x24xbf16, #tpu.memory_space<vmem>>, %arg5: memref<1x24xf32, #tpu.memory_space<vmem>>, %arg6: memref<64x256xbf16, #tpu.memory_space<vmem>>, %arg7: memref<128x216xbf16, #tpu.memory_space<vmem>>, %arg8: memref<216x12xbf16, #tpu.memory_space<vmem>>, %arg9: memref<1x12xf32, #tpu.memory_space<vmem>>, %arg10: memref<128x192xbf16, #tpu.memory_space<vmem>>, %arg11: memref<2x128xbf16, #tpu.memory_space<vmem>>, %arg12: memref<192x48xbf16, #tpu.memory_space<vmem>>, %arg13: memref<1x48xf32, #tpu.memory_space<vmem>>, %arg14: memref<2x48xf32, #tpu.memory_space<vmem>>) attributes {dimension_semantics = [#tpu.dimension_semantics<parallel>], iteration_bounds = array<i64: 1>, scalar_prefetch = 0 : i64, scratch_operands = 0 : i64, tpu.core_type = #tpu.core_type<tc>, window_params = [{transform_indices = @transform_0, window_bounds = array<i64: 2, 16>}, {transform_indices = @transform_1, window_bounds = array<i64: 512, 1>}, {pipeline_mode = #tpu.pipeline_mode<synchronous>, transform_indices = @transform_2, window_bounds = array<i64: 512, 144>}, {pipeline_mode = #tpu.pipeline_mode<synchronous>, transform_indices = @transform_3, window_bounds = array<i64: 144, 24>}, {pipeline_mode = #tpu.pipeline_mode<synchronous>, transform_indices = @transform_4, window_bounds = array<i64: 1, 24>}, {pipeline_mode = #tpu.pipeline_mode<synchronous>, transform_indices = @transform_5, window_bounds = array<i64: 64, 256>}, {pipeline_mode = #tpu.pipeline_mode<synchronous>, transform_indices = @transform_6, window_bounds = array<i64: 128, 216>}, {pipeline_mode = #tpu.pipeline_mode<synchronous>, transform_indices = @transform_7, window_bounds = array<i64: 216, 12>}, {pipeline_mode = #tpu.pipeline_mode<synchronous>, transform_indices = @transform_8, window_bounds = array<i64: 1, 12>}, {pipeline_mode = #tpu.pipeline_mode<synchronous>, transform_indices = @transform_9, window_bounds = array<i64: 128, 192>}, {pipeline_mode = #tpu.pipeline_mode<synchronous>, transform_indices = @transform_10, window_bounds = array<i64: 2, 128>}, {pipeline_mode = #tpu.pipeline_mode<synchronous>, transform_indices = @transform_11, window_bounds = array<i64: 192, 48>}, {pipeline_mode = #tpu.pipeline_mode<synchronous>, transform_indices = @transform_12, window_bounds = array<i64: 1, 48>}, {transform_indices = @transform_13, window_bounds = array<i64: 2, 48>}]} {
    %c0 = arith.constant 0 : index
    %c0_0 = arith.constant 0 : index
    %0 = vector.load %arg1[%c0, %c0_0] : memref<2x16xf32, #tpu.memory_space<vmem>>, vector<2x16xf32>
    %1 = vector.shape_cast %0 : vector<2x16xf32> to vector<2x1x16xf32>
    %2 = vector.shape_cast %1 : vector<2x1x16xf32> to vector<2x1x16xf32>
    %3 = vector.broadcast %2 : vector<2x1x16xf32> to vector<2x256x16xf32>
    %4 = vector.shape_cast %3 : vector<2x256x16xf32> to vector<512x16xf32>
    %c0_1 = arith.constant 0 : index
    %c0_2 = arith.constant 0 : index
    %5 = vector.load %arg2[%c0_1, %c0_2] : memref<512x1xf32, #tpu.memory_space<vmem>>, vector<512x1xf32>
    %6 = vector.broadcast %5 : vector<512x1xf32> to vector<512x16xf32>
    %7 = arith.mulf %6, %4 : vector<512x16xf32>
    %c0_3 = arith.constant 0 : index
    %c0_4 = arith.constant 0 : index
    %8 = vector.load %arg3[%c0_3, %c0_4] : memref<512x144xbf16, #tpu.memory_space<vmem>>, vector<512x144xbf16>
    %9 = arith.truncf %7 : vector<512x16xf32> to vector<512x16xbf16>
    %10 = vector.extract_strided_slice %9 {offsets = [495, 0], sizes = [17, 16], strides = [1, 1]} : vector<512x16xbf16> to vector<17x16xbf16>
    %11 = vector.extract_strided_slice %9 {offsets = [0, 0], sizes = [495, 16], strides = [1, 1]} : vector<512x16xbf16> to vector<495x16xbf16>
    %12 = tpu.concatenate %10, %11 in 0 : vector<17x16xbf16>, vector<495x16xbf16> -> vector<512x16xbf16>
    %13 = vector.extract_strided_slice %9 {offsets = [496, 0], sizes = [16, 16], strides = [1, 1]} : vector<512x16xbf16> to vector<16x16xbf16>
    %14 = vector.extract_strided_slice %9 {offsets = [0, 0], sizes = [496, 16], strides = [1, 1]} : vector<512x16xbf16> to vector<496x16xbf16>
    %15 = tpu.concatenate %13, %14 in 0 : vector<16x16xbf16>, vector<496x16xbf16> -> vector<512x16xbf16>
    %16 = vector.extract_strided_slice %9 {offsets = [497, 0], sizes = [15, 16], strides = [1, 1]} : vector<512x16xbf16> to vector<15x16xbf16>
    %17 = vector.extract_strided_slice %9 {offsets = [0, 0], sizes = [497, 16], strides = [1, 1]} : vector<512x16xbf16> to vector<497x16xbf16>
    %18 = tpu.concatenate %16, %17 in 0 : vector<15x16xbf16>, vector<497x16xbf16> -> vector<512x16xbf16>
    %19 = vector.extract_strided_slice %9 {offsets = [511, 0], sizes = [1, 16], strides = [1, 1]} : vector<512x16xbf16> to vector<1x16xbf16>
    %20 = vector.extract_strided_slice %9 {offsets = [0, 0], sizes = [511, 16], strides = [1, 1]} : vector<512x16xbf16> to vector<511x16xbf16>
    %21 = tpu.concatenate %19, %20 in 0 : vector<1x16xbf16>, vector<511x16xbf16> -> vector<512x16xbf16>
    %22 = vector.extract_strided_slice %9 {offsets = [1, 0], sizes = [511, 16], strides = [1, 1]} : vector<512x16xbf16> to vector<511x16xbf16>
    %23 = vector.extract_strided_slice %9 {offsets = [0, 0], sizes = [1, 16], strides = [1, 1]} : vector<512x16xbf16> to vector<1x16xbf16>
    %24 = tpu.concatenate %22, %23 in 0 : vector<511x16xbf16>, vector<1x16xbf16> -> vector<512x16xbf16>
    %25 = vector.extract_strided_slice %9 {offsets = [15, 0], sizes = [497, 16], strides = [1, 1]} : vector<512x16xbf16> to vector<497x16xbf16>
    %26 = vector.extract_strided_slice %9 {offsets = [0, 0], sizes = [15, 16], strides = [1, 1]} : vector<512x16xbf16> to vector<15x16xbf16>
    %27 = tpu.concatenate %25, %26 in 0 : vector<497x16xbf16>, vector<15x16xbf16> -> vector<512x16xbf16>
    %28 = vector.extract_strided_slice %9 {offsets = [16, 0], sizes = [496, 16], strides = [1, 1]} : vector<512x16xbf16> to vector<496x16xbf16>
    %29 = vector.extract_strided_slice %9 {offsets = [0, 0], sizes = [16, 16], strides = [1, 1]} : vector<512x16xbf16> to vector<16x16xbf16>
    %30 = tpu.concatenate %28, %29 in 0 : vector<496x16xbf16>, vector<16x16xbf16> -> vector<512x16xbf16>
    %31 = vector.extract_strided_slice %9 {offsets = [17, 0], sizes = [495, 16], strides = [1, 1]} : vector<512x16xbf16> to vector<495x16xbf16>
    %32 = vector.extract_strided_slice %9 {offsets = [0, 0], sizes = [17, 16], strides = [1, 1]} : vector<512x16xbf16> to vector<17x16xbf16>
    %33 = tpu.concatenate %31, %32 in 0 : vector<495x16xbf16>, vector<17x16xbf16> -> vector<512x16xbf16>
    %34 = tpu.concatenate %12, %15, %18, %21, %9, %24, %27, %30, %33 in 1 : vector<512x16xbf16>, vector<512x16xbf16>, vector<512x16xbf16>, vector<512x16xbf16>, vector<512x16xbf16>, vector<512x16xbf16>, vector<512x16xbf16>, vector<512x16xbf16>, vector<512x16xbf16> -> vector<512x144xbf16>
    %35 = arith.mulf %34, %8 : vector<512x144xbf16>
    %c0_5 = arith.constant 0 : index
    %c0_6 = arith.constant 0 : index
    %36 = vector.load %arg4[%c0_5, %c0_6] : memref<144x24xbf16, #tpu.memory_space<vmem>>, vector<144x24xbf16>
    %cst = arith.constant dense<0.000000e+00> : vector<512x24xf32>
    %37 = tpu.matmul %35, %36, %cst {dimension_numbers = #tpu.dot_dimension_numbers<[1], [0], [0], [1], [0, 0, 1, 1], [], []>} : vector<512x144xbf16>, vector<144x24xbf16>, vector<512x24xf32> -> vector<512x24xf32>
    %c0_7 = arith.constant 0 : index
    %c0_8 = arith.constant 0 : index
    %38 = vector.load %arg5[%c0_7, %c0_8] : memref<1x24xf32, #tpu.memory_space<vmem>>, vector<1x24xf32>
    %39 = vector.broadcast %38 : vector<1x24xf32> to vector<512x24xf32>
    %40 = arith.addf %37, %39 : vector<512x24xf32>
    %41 = arith.truncf %40 : vector<512x24xf32> to vector<512x24xbf16>
    %42 = vector.extract_strided_slice %41 {offsets = [1, 0], sizes = [511, 24], strides = [1, 1]} : vector<512x24xbf16> to vector<511x24xbf16>
    %43 = vector.extract_strided_slice %41 {offsets = [0, 0], sizes = [1, 24], strides = [1, 1]} : vector<512x24xbf16> to vector<1x24xbf16>
    %44 = tpu.concatenate %42, %43 in 0 : vector<511x24xbf16>, vector<1x24xbf16> -> vector<512x24xbf16>
    %45 = arith.maximumf %41, %44 : vector<512x24xbf16>
    %46 = vector.extract_strided_slice %45 {offsets = [16, 0], sizes = [496, 24], strides = [1, 1]} : vector<512x24xbf16> to vector<496x24xbf16>
    %47 = vector.extract_strided_slice %45 {offsets = [0, 0], sizes = [16, 24], strides = [1, 1]} : vector<512x24xbf16> to vector<16x24xbf16>
    %48 = tpu.concatenate %46, %47 in 0 : vector<496x24xbf16>, vector<16x24xbf16> -> vector<512x24xbf16>
    %49 = arith.maximumf %45, %48 : vector<512x24xbf16>
    %50 = vector.shape_cast %49 : vector<512x24xbf16> to vector<2x256x24xbf16>
    %c0_9 = arith.constant 0 : index
    %c0_10 = arith.constant 0 : index
    %51 = vector.load %arg6[%c0_9, %c0_10] : memref<64x256xbf16, #tpu.memory_space<vmem>>, vector<64x256xbf16>
    %52 = vector.shape_cast %51 : vector<64x256xbf16> to vector<1x64x256xbf16>
    %53 = vector.broadcast %52 : vector<1x64x256xbf16> to vector<2x64x256xbf16>
    "tpu.trace_start"() <{level = 10 : i32, message = "bqh,bhc->bqc"}> : () -> ()
    %cst_11 = arith.constant dense<0.000000e+00> : vector<2x64x24xf32>
    %54 = tpu.matmul %53, %50, %cst_11 {dimension_numbers = #tpu.dot_dimension_numbers<[2], [1], [1], [2], [0, 0, 0, 1, 1, 2], [0], [0]>} : vector<2x64x256xbf16>, vector<2x256x24xbf16>, vector<2x64x24xf32> -> vector<2x64x24xf32>
    "tpu.trace_stop"() : () -> ()
    %55 = vector.shape_cast %54 : vector<2x64x24xf32> to vector<128x24xf32>
    %c0_12 = arith.constant 0 : index
    %c0_13 = arith.constant 0 : index
    %56 = vector.load %arg7[%c0_12, %c0_13] : memref<128x216xbf16, #tpu.memory_space<vmem>>, vector<128x216xbf16>
    %57 = arith.truncf %55 : vector<128x24xf32> to vector<128x24xbf16>
    %58 = vector.extract_strided_slice %57 {offsets = [119, 0], sizes = [9, 24], strides = [1, 1]} : vector<128x24xbf16> to vector<9x24xbf16>
    %59 = vector.extract_strided_slice %57 {offsets = [0, 0], sizes = [119, 24], strides = [1, 1]} : vector<128x24xbf16> to vector<119x24xbf16>
    %60 = tpu.concatenate %58, %59 in 0 : vector<9x24xbf16>, vector<119x24xbf16> -> vector<128x24xbf16>
    %61 = vector.extract_strided_slice %57 {offsets = [120, 0], sizes = [8, 24], strides = [1, 1]} : vector<128x24xbf16> to vector<8x24xbf16>
    %62 = vector.extract_strided_slice %57 {offsets = [0, 0], sizes = [120, 24], strides = [1, 1]} : vector<128x24xbf16> to vector<120x24xbf16>
    %63 = tpu.concatenate %61, %62 in 0 : vector<8x24xbf16>, vector<120x24xbf16> -> vector<128x24xbf16>
    %64 = vector.extract_strided_slice %57 {offsets = [121, 0], sizes = [7, 24], strides = [1, 1]} : vector<128x24xbf16> to vector<7x24xbf16>
    %65 = vector.extract_strided_slice %57 {offsets = [0, 0], sizes = [121, 24], strides = [1, 1]} : vector<128x24xbf16> to vector<121x24xbf16>
    %66 = tpu.concatenate %64, %65 in 0 : vector<7x24xbf16>, vector<121x24xbf16> -> vector<128x24xbf16>
    %67 = vector.extract_strided_slice %57 {offsets = [127, 0], sizes = [1, 24], strides = [1, 1]} : vector<128x24xbf16> to vector<1x24xbf16>
    %68 = vector.extract_strided_slice %57 {offsets = [0, 0], sizes = [127, 24], strides = [1, 1]} : vector<128x24xbf16> to vector<127x24xbf16>
    %69 = tpu.concatenate %67, %68 in 0 : vector<1x24xbf16>, vector<127x24xbf16> -> vector<128x24xbf16>
    %70 = vector.extract_strided_slice %57 {offsets = [1, 0], sizes = [127, 24], strides = [1, 1]} : vector<128x24xbf16> to vector<127x24xbf16>
    %71 = vector.extract_strided_slice %57 {offsets = [0, 0], sizes = [1, 24], strides = [1, 1]} : vector<128x24xbf16> to vector<1x24xbf16>
    %72 = tpu.concatenate %70, %71 in 0 : vector<127x24xbf16>, vector<1x24xbf16> -> vector<128x24xbf16>
    %73 = vector.extract_strided_slice %57 {offsets = [7, 0], sizes = [121, 24], strides = [1, 1]} : vector<128x24xbf16> to vector<121x24xbf16>
    %74 = vector.extract_strided_slice %57 {offsets = [0, 0], sizes = [7, 24], strides = [1, 1]} : vector<128x24xbf16> to vector<7x24xbf16>
    %75 = tpu.concatenate %73, %74 in 0 : vector<121x24xbf16>, vector<7x24xbf16> -> vector<128x24xbf16>
    %76 = vector.extract_strided_slice %57 {offsets = [8, 0], sizes = [120, 24], strides = [1, 1]} : vector<128x24xbf16> to vector<120x24xbf16>
    %77 = vector.extract_strided_slice %57 {offsets = [0, 0], sizes = [8, 24], strides = [1, 1]} : vector<128x24xbf16> to vector<8x24xbf16>
    %78 = tpu.concatenate %76, %77 in 0 : vector<120x24xbf16>, vector<8x24xbf16> -> vector<128x24xbf16>
    %79 = vector.extract_strided_slice %57 {offsets = [9, 0], sizes = [119, 24], strides = [1, 1]} : vector<128x24xbf16> to vector<119x24xbf16>
    %80 = vector.extract_strided_slice %57 {offsets = [0, 0], sizes = [9, 24], strides = [1, 1]} : vector<128x24xbf16> to vector<9x24xbf16>
    %81 = tpu.concatenate %79, %80 in 0 : vector<119x24xbf16>, vector<9x24xbf16> -> vector<128x24xbf16>
    %82 = tpu.concatenate %60, %63, %66, %69, %57, %72, %75, %78, %81 in 1 : vector<128x24xbf16>, vector<128x24xbf16>, vector<128x24xbf16>, vector<128x24xbf16>, vector<128x24xbf16>, vector<128x24xbf16>, vector<128x24xbf16>, vector<128x24xbf16>, vector<128x24xbf16> -> vector<128x216xbf16>
    %83 = arith.mulf %82, %56 : vector<128x216xbf16>
    %c0_14 = arith.constant 0 : index
    %c0_15 = arith.constant 0 : index
    %84 = vector.load %arg8[%c0_14, %c0_15] : memref<216x12xbf16, #tpu.memory_space<vmem>>, vector<216x12xbf16>
    %cst_16 = arith.constant dense<0.000000e+00> : vector<128x12xf32>
    %85 = tpu.matmul %83, %84, %cst_16 {dimension_numbers = #tpu.dot_dimension_numbers<[1], [0], [0], [1], [0, 0, 1, 1], [], []>} : vector<128x216xbf16>, vector<216x12xbf16>, vector<128x12xf32> -> vector<128x12xf32>
    %c0_17 = arith.constant 0 : index
    %c0_18 = arith.constant 0 : index
    %86 = vector.load %arg9[%c0_17, %c0_18] : memref<1x12xf32, #tpu.memory_space<vmem>>, vector<1x12xf32>
    %87 = vector.broadcast %86 : vector<1x12xf32> to vector<128x12xf32>
    %88 = arith.addf %85, %87 : vector<128x12xf32>
    %89 = arith.truncf %88 : vector<128x12xf32> to vector<128x12xbf16>
    %90 = vector.extract_strided_slice %89 {offsets = [1, 0], sizes = [127, 12], strides = [1, 1]} : vector<128x12xbf16> to vector<127x12xbf16>
    %91 = vector.extract_strided_slice %89 {offsets = [0, 0], sizes = [1, 12], strides = [1, 1]} : vector<128x12xbf16> to vector<1x12xbf16>
    %92 = tpu.concatenate %90, %91 in 0 : vector<127x12xbf16>, vector<1x12xbf16> -> vector<128x12xbf16>
    %93 = arith.maximumf %89, %92 : vector<128x12xbf16>
    %94 = vector.extract_strided_slice %93 {offsets = [8, 0], sizes = [120, 12], strides = [1, 1]} : vector<128x12xbf16> to vector<120x12xbf16>
    %95 = vector.extract_strided_slice %93 {offsets = [0, 0], sizes = [8, 12], strides = [1, 1]} : vector<128x12xbf16> to vector<8x12xbf16>
    %96 = tpu.concatenate %94, %95 in 0 : vector<120x12xbf16>, vector<8x12xbf16> -> vector<128x12xbf16>
    %97 = arith.maximumf %93, %96 : vector<128x12xbf16>
    %98 = tpu.concatenate %97, %97, %97, %97, %97, %97, %97, %97, %97, %97, %97, %97, %97, %97, %97, %97 in 1 : vector<128x12xbf16>, vector<128x12xbf16>, vector<128x12xbf16>, vector<128x12xbf16>, vector<128x12xbf16>, vector<128x12xbf16>, vector<128x12xbf16>, vector<128x12xbf16>, vector<128x12xbf16>, vector<128x12xbf16>, vector<128x12xbf16>, vector<128x12xbf16>, vector<128x12xbf16>, vector<128x12xbf16>, vector<128x12xbf16>, vector<128x12xbf16> -> vector<128x192xbf16>
    %c0_19 = arith.constant 0 : index
    %c0_20 = arith.constant 0 : index
    %99 = vector.load %arg11[%c0_19, %c0_20] : memref<2x128xbf16, #tpu.memory_space<vmem>>, vector<2x128xbf16>
    %c0_21 = arith.constant 0 : index
    %c0_22 = arith.constant 0 : index
    %100 = vector.load %arg10[%c0_21, %c0_22] : memref<128x192xbf16, #tpu.memory_space<vmem>>, vector<128x192xbf16>
    %101 = arith.mulf %98, %100 : vector<128x192xbf16>
    %cst_23 = arith.constant dense<0.000000e+00> : vector<2x192xf32>
    %102 = tpu.matmul %99, %101, %cst_23 {dimension_numbers = #tpu.dot_dimension_numbers<[1], [0], [0], [1], [0, 0, 1, 1], [], []>} : vector<2x128xbf16>, vector<128x192xbf16>, vector<2x192xf32> -> vector<2x192xf32>
    %103 = arith.truncf %102 : vector<2x192xf32> to vector<2x192xbf16>
    %c0_24 = arith.constant 0 : index
    %c0_25 = arith.constant 0 : index
    %104 = vector.load %arg12[%c0_24, %c0_25] : memref<192x48xbf16, #tpu.memory_space<vmem>>, vector<192x48xbf16>
    %cst_26 = arith.constant dense<0.000000e+00> : vector<2x48xf32>
    %105 = tpu.matmul %103, %104, %cst_26 {dimension_numbers = #tpu.dot_dimension_numbers<[1], [0], [0], [1], [0, 0, 1, 1], [], []>} : vector<2x192xbf16>, vector<192x48xbf16>, vector<2x48xf32> -> vector<2x48xf32>
    %c0_27 = arith.constant 0 : index
    %c0_28 = arith.constant 0 : index
    %106 = vector.load %arg13[%c0_27, %c0_28] : memref<1x48xf32, #tpu.memory_space<vmem>>, vector<1x48xf32>
    %107 = vector.broadcast %106 : vector<1x48xf32> to vector<2x48xf32>
    %108 = arith.addf %105, %107 : vector<2x48xf32>
    %cst_29 = arith.constant 5.000000e-01 : f32
    %109 = vector.broadcast %cst_29 : f32 to vector<2x48xf32>
    %110 = arith.mulf %109, %108 : vector<2x48xf32>
    %cst_30 = arith.constant 0.707106769 : f32
    %111 = vector.broadcast %cst_30 : f32 to vector<2x48xf32>
    %112 = arith.mulf %108, %111 : vector<2x48xf32>
    %113 = math.erf %112 : vector<2x48xf32>
    %cst_31 = arith.constant 1.000000e+00 : f32
    %114 = vector.broadcast %cst_31 : f32 to vector<2x48xf32>
    %115 = arith.addf %114, %113 : vector<2x48xf32>
    %116 = arith.mulf %110, %115 : vector<2x48xf32>
    %c0_32 = arith.constant 0 : index
    %c0_33 = arith.constant 0 : index
    %117 = vector.load %arg14[%c0_32, %c0_33] : memref<2x48xf32, #tpu.memory_space<vmem>>, vector<2x48xf32>
    tpu.vector_store %arg14[%c0_32, %c0_33], %116 {strides = array<i32>} : memref<2x48xf32, #tpu.memory_space<vmem>>, vector<2x48xf32>,
    return
  }
  func.func @transform_0(%arg0: i32) -> (i32, i32) {
    %c0_i32 = arith.constant 0 : i32
    %c0_i32_0 = arith.constant 0 : i32
    return %arg0, %c0_i32 : i32, i32
  }
  func.func @transform_1(%arg0: i32) -> (i32, i32) {
    %c0_i32 = arith.constant 0 : i32
    %c0_i32_0 = arith.constant 0 : i32
    return %arg0, %c0_i32 : i32, i32
  }
  func.func @transform_2(%arg0: i32) -> (i32, i32) {
    %c0_i32 = arith.constant 0 : i32
    %c0_i32_0 = arith.constant 0 : i32
    %c0_i32_1 = arith.constant 0 : i32
    return %c0_i32, %c0_i32_0 : i32, i32
  }
  func.func @transform_3(%arg0: i32) -> (i32, i32) {
    %c0_i32 = arith.constant 0 : i32
    %c0_i32_0 = arith.constant 0 : i32
    %c0_i32_1 = arith.constant 0 : i32
    return %c0_i32, %c0_i32_0 : i32, i32
  }
  func.func @transform_4(%arg0: i32) -> (i32, i32) {
    %c0_i32 = arith.constant 0 : i32
    %c0_i32_0 = arith.constant 0 : i32
    %c0_i32_1 = arith.constant 0 : i32
    return %c0_i32, %c0_i32_0 : i32, i32
  }
  func.func @transform_5(%arg0: i32) -> (i32, i32) {
    %c0_i32 = arith.constant 0 : i32
    %c0_i32_0 = arith.constant 0 : i32
    %c0_i32_1 = arith.constant 0 : i32
    return %c0_i32, %c0_i32_0 : i32, i32
  }
  func.func @transform_6(%arg0: i32) -> (i32, i32) {
    %c0_i32 = arith.constant 0 : i32
    %c0_i32_0 = arith.constant 0 : i32
    %c0_i32_1 = arith.constant 0 : i32
    return %c0_i32, %c0_i32_0 : i32, i32
  }
  func.func @transform_7(%arg0: i32) -> (i32, i32) {
    %c0_i32 = arith.constant 0 : i32
    %c0_i32_0 = arith.constant 0 : i32
    %c0_i32_1 = arith.constant 0 : i32
    return %c0_i32, %c0_i32_0 : i32, i32
  }
  func.func @transform_8(%arg0: i32) -> (i32, i32) {
    %c0_i32 = arith.constant 0 : i32
    %c0_i32_0 = arith.constant 0 : i32
    %c0_i32_1 = arith.constant 0 : i32
    return %c0_i32, %c0_i32_0 : i32, i32
  }
  func.func @transform_9(%arg0: i32) -> (i32, i32) {
    %c0_i32 = arith.constant 0 : i32
    %c0_i32_0 = arith.constant 0 : i32
    %c0_i32_1 = arith.constant 0 : i32
    return %c0_i32, %c0_i32_0 : i32, i32
  }
  func.func @transform_10(%arg0: i32) -> (i32, i32) {
    %c0_i32 = arith.constant 0 : i32
    %c0_i32_0 = arith.constant 0 : i32
    %c0_i32_1 = arith.constant 0 : i32
    return %c0_i32, %c0_i32_0 : i32, i32
  }
  func.func @transform_11(%arg0: i32) -> (i32, i32) {
    %c0_i32 = arith.constant 0 : i32
    %c0_i32_0 = arith.constant 0 : i32
    %c0_i32_1 = arith.constant 0 : i32
    return %c0_i32, %c0_i32_0 : i32, i32
  }
  func.func @transform_12(%arg0: i32) -> (i32, i32) {
    %c0_i32 = arith.constant 0 : i32
    %c0_i32_0 = arith.constant 0 : i32
    %c0_i32_1 = arith.constant 0 : i32
    return %c0_i32, %c0_i32_0 : i32, i32
  }
  func.func @transform_13(%arg0: i32) -> (i32, i32) {
    %c0_i32 = arith.constant 0 : i32
    %c0_i32_0 = arith.constant 0 : i32
    return %arg0, %c0_i32 : i32, i32
  }
}

</mosaic_0001>

<llo_original>
// kernel: tpu_custom_call.1
$region0: #{tpu_custom_call.1}
  #allocation0 [shape = 'u32[]', space=smem, size = 0x4, offset = 0x4, fixed_abs, tag = 'smem constant byte address 0x4 - core index']
  #allocation1 [shape = 'u32[144,128]{1,0:T(1,128)}', space=vmem, size = 0x12000, scoped, tag = 'internal scratch']
  %s0 = inlined_call_operand.vmem [shape: f32[2,16], index: 0, kind: input, shape index: {}]
  %s1 = inlined_call_operand.vmem [shape: f32[512,1], index: 1, kind: input, shape index: {}]
  %s2 = inlined_call_operand.vmem [shape: bf16[512,144], index: 2, kind: input, shape index: {}]
  %s3 = inlined_call_operand.vmem [shape: bf16[144,24], index: 3, kind: input, shape index: {}]
  %s4 = inlined_call_operand.vmem [shape: f32[1,24], index: 4, kind: input, shape index: {}]
  %s5 = inlined_call_operand.vmem [shape: bf16[64,256], index: 5, kind: input, shape index: {}]
  %s6 = inlined_call_operand.vmem [shape: bf16[128,216], index: 6, kind: input, shape index: {}]
  %s7 = inlined_call_operand.vmem [shape: bf16[216,12], index: 7, kind: input, shape index: {}]
  %s8 = inlined_call_operand.vmem [shape: f32[1,12], index: 8, kind: input, shape index: {}]
  %s9 = inlined_call_operand.vmem [shape: bf16[128,192], index: 9, kind: input, shape index: {}]
  %s10 = inlined_call_operand.vmem [shape: bf16[2,128], index: 10, kind: input, shape index: {}]
  %s11 = inlined_call_operand.vmem [shape: bf16[192,48], index: 11, kind: input, shape index: {}]
  %s12 = inlined_call_operand.vmem [shape: f32[1,48], index: 12, kind: input, shape index: {}]
  %s13 = inlined_call_operand.hbm [shape: f32[2,48], index: 13, kind: output, shape index: {}]
  %s14 = sld [smem:[#allocation0]]
  $region62: #{tpu_custom_call.1} parent=0
    _
  %s16 = ssub.s32 1, %s14
  %s17 = scalar_select 0, %s16, %s14
  $region1: #{tpu_custom_call.1} parent=0
    #allocation2 [shape = 'u8[1024]{0}', space=vmem, size = 0x400, scoped, tag = 'output window, operand 0, single buffered']
    #allocation3 [shape = 's32[1]{0}', space=sflag, size = 0x4, scoped, tag = 'scoped memory for tpu_custom_call.1']
    %18 = vsyncpa [#allocation3], 0
    // Predicated region
    $region2: #{tpu_custom_call.1} parent=1 // pred_check
      _
    $region3: #{tpu_custom_call.1} parent=1 // pred_check_branch
      %20 = sbr.rel (0) target = $region5
    $region4: #{tpu_custom_call.1} parent=1 // pred_region
      _
    $region5: #{tpu_custom_call.1} parent=1 // pred_fallthru
      _
    // Predicated region
    $region6: #{tpu_custom_call.1} parent=1 // pred_check
      _
    $region7: #{tpu_custom_call.1} parent=1 // pred_check_branch
      %22 = sbr.rel (0) target = $region9
    $region8: #{tpu_custom_call.1} parent=1 // pred_region
      _
    $region9: #{tpu_custom_call.1} parent=1 // pred_fallthru
      _
    // Predicated region
    $region10: #{tpu_custom_call.1} parent=1 // pred_check
      _
    $region11: #{tpu_custom_call.1} parent=1 // pred_check_branch
      %24 = sbr.rel (0) target = $region13
    $region12: #{tpu_custom_call.1} parent=1 // pred_region
      _
    $region13: #{tpu_custom_call.1} parent=1 // pred_fallthru
      _
    // Predicated region
    $region14: #{tpu_custom_call.1} parent=1 // pred_check
      _
    $region15: #{tpu_custom_call.1} parent=1 // pred_check_branch
      %26 = sbr.rel (0) target = $region17
    $region16: #{tpu_custom_call.1} parent=1 // pred_region
      _
    $region17: #{tpu_custom_call.1} parent=1 // pred_fallthru
      _
    // Predicated region
    $region18: #{tpu_custom_call.1} parent=1 // pred_check
      _
    $region19: #{tpu_custom_call.1} parent=1 // pred_check_branch
      %28 = sbr.rel (0) target = $region21
    $region20: #{tpu_custom_call.1} parent=1 // pred_region
      _
    $region21: #{tpu_custom_call.1} parent=1 // pred_fallthru
      _
    // Predicated region
    $region22: #{tpu_custom_call.1} parent=1 // pred_check
      _
    $region23: #{tpu_custom_call.1} parent=1 // pred_check_branch
      %30 = sbr.rel (0) target = $region25
    $region24: #{tpu_custom_call.1} parent=1 // pred_region
      _
    $region25: #{tpu_custom_call.1} parent=1 // pred_fallthru
      _
    // Predicated region
    $region26: #{tpu_custom_call.1} parent=1 // pred_check
      _
    $region27: #{tpu_custom_call.1} parent=1 // pred_check_branch
      %32 = sbr.rel (0) target = $region29
    $region28: #{tpu_custom_call.1} parent=1 // pred_region
      _
    $region29: #{tpu_custom_call.1} parent=1 // pred_fallthru
      _
    // Predicated region
    $region30: #{tpu_custom_call.1} parent=1 // pred_check
      _
    $region31: #{tpu_custom_call.1} parent=1 // pred_check_branch
      %34 = sbr.rel (0) target = $region33
    $region32: #{tpu_custom_call.1} parent=1 // pred_region
      _
    $region33: #{tpu_custom_call.1} parent=1 // pred_fallthru
      _
    // Predicated region
    $region34: #{tpu_custom_call.1} parent=1 // pred_check
      _
    $region35: #{tpu_custom_call.1} parent=1 // pred_check_branch
      %36 = sbr.rel (0) target = $region37
    $region36: #{tpu_custom_call.1} parent=1 // pred_region
      _
    $region37: #{tpu_custom_call.1} parent=1 // pred_fallthru
      _
    // Predicated region
    $region38: #{tpu_custom_call.1} parent=1 // pred_check
      _
    $region39: #{tpu_custom_call.1} parent=1 // pred_check_branch
      %38 = sbr.rel (0) target = $region41
    $region40: #{tpu_custom_call.1} parent=1 // pred_region
      _
    $region41: #{tpu_custom_call.1} parent=1 // pred_fallthru
      _
    // Predicated region
    $region42: #{tpu_custom_call.1} parent=1 // pred_check
      _
    $region43: #{tpu_custom_call.1} parent=1 // pred_check_branch
      %40 = sbr.rel (0) target = $region45
    $region44: #{tpu_custom_call.1} parent=1 // pred_region
      _
    $region45: #{tpu_custom_call.1} parent=1 // pred_fallthru
      _
    // Predicated region
    $region46: #{tpu_custom_call.1} parent=1 // pred_check
      _
    $region47: #{tpu_custom_call.1} parent=1 // pred_check_branch
      %42 = sbr.rel (0) target = $region49
    $region48: #{tpu_custom_call.1} parent=1 // pred_region
      _
    $region49: #{tpu_custom_call.1} parent=1 // pred_fallthru
      _
    // Predicated region
    $region50: #{tpu_custom_call.1} parent=1 // pred_check
      _
    $region51: #{tpu_custom_call.1} parent=1 // pred_check_branch
      %44 = sbr.rel (0) target = $region53
    $region52: #{tpu_custom_call.1} parent=1 // pred_region
      _
    $region53: #{tpu_custom_call.1} parent=1 // pred_fallthru
      _
    %v46 = vld [vmem:[%s0] sm:$0x3]
    %v49 = vunpack.c.l.s4 1966171168
    %v50 = vunpack.c.0.s8 %v49
    %v51 = vlaneseq
    %v52 = vshrl.u32 %v51, 7
    %v53 = vsub.s32 %v50, %v52
    %v54 = vrot.slane %v46, %v53
    %v55 = vcombine.high %v54, %v54
    %v57 = vunpack.c.l.s4 1966171168
    %v58 = vunpack.c.0.s8 %v57
    %v59 = vlaneseq
    %v60 = vshrl.u32 %v59, 7
    %v61 = vsub.s32 %v58, %v60
    %v62 = vrot.slane %v54, %v61
    %v64 = vunpack.c.l.s4 1966171168
    %v65 = vunpack.c.0.s8 %v64
    %v66 = vlaneseq
    %v67 = vshrl.u32 %v66, 7
    %v68 = vsub.s32 %v65, %v67
    %v69 = vrot.slane %v55, %v68
    %v70 = vlaneseq
    %v71 = vshrl.u32 %v70, 7
    %v72 = vsub.s32 0, %v71
    %v73 = vrot.slane %v62, %v72
    %v74 = vlaneseq
    %v75 = vshrl.u32 %v74, 7
    %v76 = vsub.s32 0, %v75
    %v77 = vrot.slane %v69, %v76
    %v80 = vld [vmem:[%s1] sm:$0xff]
    %v81 = vld [vmem:[%s1 + $0x8] sm:$0xff]
    %v82 = vld [vmem:[%s1 + $0x10] sm:$0xff]
    %v83 = vld [vmem:[%s1 + $0x18] sm:$0xff]
    %v84 = vld [vmem:[%s1 + $0x20] sm:$0xff]
    %v85 = vld [vmem:[%s1 + $0x28] sm:$0xff]
    %v86 = vld [vmem:[%s1 + $0x30] sm:$0xff]
    %v87 = vld [vmem:[%s1 + $0x38] sm:$0xff]
    %v88 = vld [vmem:[%s1 + $0x40] sm:$0xff]
    %v89 = vld [vmem:[%s1 + $0x48] sm:$0xff]
    %v90 = vld [vmem:[%s1 + $0x50] sm:$0xff]
    %v91 = vld [vmem:[%s1 + $0x58] sm:$0xff]
    %v92 = vld [vmem:[%s1 + $0x60] sm:$0xff]
    %v93 = vld [vmem:[%s1 + $0x68] sm:$0xff]
    %v94 = vld [vmem:[%s1 + $0x70] sm:$0xff]
    %v95 = vld [vmem:[%s1 + $0x78] sm:$0xff]
    %v96 = vld [vmem:[%s1 + $0x80] sm:$0xff]
    %v97 = vld [vmem:[%s1 + $0x88] sm:$0xff]
    %v98 = vld [vmem:[%s1 + $0x90] sm:$0xff]
    %v99 = vld [vmem:[%s1 + $0x98] sm:$0xff]
    %v100 = vld [vmem:[%s1 + $0xa0] sm:$0xff]
    %v101 = vld [vmem:[%s1 + $0xa8] sm:$0xff]
    %v102 = vld [vmem:[%s1 + $0xb0] sm:$0xff]
    %v103 = vld [vmem:[%s1 + $0xb8] sm:$0xff]
    %v104 = vld [vmem:[%s1 + $0xc0] sm:$0xff]
    %v105 = vld [vmem:[%s1 + $0xc8] sm:$0xff]
    %v106 = vld [vmem:[%s1 + $0xd0] sm:$0xff]
    %v107 = vld [vmem:[%s1 + $0xd8] sm:$0xff]
    %v108 = vld [vmem:[%s1 + $0xe0] sm:$0xff]
    %v109 = vld [vmem:[%s1 + $0xe8] sm:$0xff]
    %v110 = vld [vmem:[%s1 + $0xf0] sm:$0xff]
    %v111 = vld [vmem:[%s1 + $0xf8] sm:$0xff]
    %v112 = vld [vmem:[%s1 + $0x100] sm:$0xff]
    %v113 = vld [vmem:[%s1 + $0x108] sm:$0xff]
    %v114 = vld [vmem:[%s1 + $0x110] sm:$0xff]
    %v115 = vld [vmem:[%s1 + $0x118] sm:$0xff]
    %v116 = vld [vmem:[%s1 + $0x120] sm:$0xff]
    %v117 = vld [vmem:[%s1 + $0x128] sm:$0xff]
    %v118 = vld [vmem:[%s1 + $0x130] sm:$0xff]
    %v119 = vld [vmem:[%s1 + $0x138] sm:$0xff]
    %v120 = vld [vmem:[%s1 + $0x140] sm:$0xff]
    %v121 = vld [vmem:[%s1 + $0x148] sm:$0xff]
    %v122 = vld [vmem:[%s1 + $0x150] sm:$0xff]
    %v123 = vld [vmem:[%s1 + $0x158] sm:$0xff]
    %v124 = vld [vmem:[%s1 + $0x160] sm:$0xff]
    %v125 = vld [vmem:[%s1 + $0x168] sm:$0xff]
    %v126 = vld [vmem:[%s1 + $0x170] sm:$0xff]
    %v127 = vld [vmem:[%s1 + $0x178] sm:$0xff]
    %v128 = vld [vmem:[%s1 + $0x180] sm:$0xff]
    %v129 = vld [vmem:[%s1 + $0x188] sm:$0xff]
    %v130 = vld [vmem:[%s1 + $0x190] sm:$0xff]
    %v131 = vld [vmem:[%s1 + $0x198] sm:$0xff]
    %v132 = vld [vmem:[%s1 + $0x1a0] sm:$0xff]
    %v133 = vld [vmem:[%s1 + $0x1a8] sm:$0xff]
    %v134 = vld [vmem:[%s1 + $0x1b0] sm:$0xff]
    %v135 = vld [vmem:[%s1 + $0x1b8] sm:$0xff]
    %v136 = vld [vmem:[%s1 + $0x1c0] sm:$0xff]
    %v137 = vld [vmem:[%s1 + $0x1c8] sm:$0xff]
    %v138 = vld [vmem:[%s1 + $0x1d0] sm:$0xff]
    %v139 = vld [vmem:[%s1 + $0x1d8] sm:$0xff]
    %v140 = vld [vmem:[%s1 + $0x1e0] sm:$0xff]
    %v141 = vld [vmem:[%s1 + $0x1e8] sm:$0xff]
    %v142 = vld [vmem:[%s1 + $0x1f0] sm:$0xff]
    %v143 = vld [vmem:[%s1 + $0x1f8] sm:$0xff]
    %145 = vset.pattern.permute.xlu0 0
    %146 = vperm.xlu0 %145, %v80
    %v147 = vpop.permute.xlu0 %146
    %150 = vset.pattern.permute.xlu0 0
    %151 = vperm.xlu0 %150, %v81
    %v152 = vpop.permute.xlu0 %151
    %155 = vset.pattern.permute.xlu0 0
    %156 = vperm.xlu0 %155, %v82
    %v157 = vpop.permute.xlu0 %156
    %160 = vset.pattern.permute.xlu0 0
    %161 = vperm.xlu0 %160, %v83
    %v162 = vpop.permute.xlu0 %161
    %165 = vset.pattern.permute.xlu0 0
    %166 = vperm.xlu0 %165, %v84
    %v167 = vpop.permute.xlu0 %166
    %170 = vset.pattern.permute.xlu0 0
    %171 = vperm.xlu0 %170, %v85
    %v172 = vpop.permute.xlu0 %171
    %175 = vset.pattern.permute.xlu0 0
    %176 = vperm.xlu0 %175, %v86
    %v177 = vpop.permute.xlu0 %176
    %180 = vset.pattern.permute.xlu0 0
    %181 = vperm.xlu0 %180, %v87
    %v182 = vpop.permute.xlu0 %181
    %185 = vset.pattern.permute.xlu0 0
    %186 = vperm.xlu0 %185, %v88
    %v187 = vpop.permute.xlu0 %186
    %190 = vset.pattern.permute.xlu0 0
    %191 = vperm.xlu0 %190, %v89
    %v192 = vpop.permute.xlu0 %191
    %195 = vset.pattern.permute.xlu0 0
    %196 = vperm.xlu0 %195, %v90
    %v197 = vpop.permute.xlu0 %196
    %200 = vset.pattern.permute.xlu0 0
    %201 = vperm.xlu0 %200, %v91
    %v202 = vpop.permute.xlu0 %201
    %205 = vset.pattern.permute.xlu0 0
    %206 = vperm.xlu0 %205, %v92
    %v207 = vpop.permute.xlu0 %206
    %210 = vset.pattern.permute.xlu0 0
    %211 = vperm.xlu0 %210, %v93
    %v212 = vpop.permute.xlu0 %211
    %215 = vset.pattern.permute.xlu0 0
    %216 = vperm.xlu0 %215, %v94
    %v217 = vpop.permute.xlu0 %216
    %220 = vset.pattern.permute.xlu0 0
    %221 = vperm.xlu0 %220, %v95
    %v222 = vpop.permute.xlu0 %221
    %225 = vset.pattern.permute.xlu0 0
    %226 = vperm.xlu0 %225, %v96
    %v227 = vpop.permute.xlu0 %226
    %230 = vset.pattern.permute.xlu0 0
    %231 = vperm.xlu0 %230, %v97
    %v232 = vpop.permute.xlu0 %231
    %235 = vset.pattern.permute.xlu0 0
    %236 = vperm.xlu0 %235, %v98
    %v237 = vpop.permute.xlu0 %236
    %240 = vset.pattern.permute.xlu0 0
    %241 = vperm.xlu0 %240, %v99
    %v242 = vpop.permute.xlu0 %241
    %245 = vset.pattern.permute.xlu0 0
    %246 = vperm.xlu0 %245, %v100
    %v247 = vpop.permute.xlu0 %246
    %250 = vset.pattern.permute.xlu0 0
    %251 = vperm.xlu0 %250, %v101
    %v252 = vpop.permute.xlu0 %251
    %255 = vset.pattern.permute.xlu0 0
    %256 = vperm.xlu0 %255, %v102
    %v257 = vpop.permute.xlu0 %256
    %260 = vset.pattern.permute.xlu0 0
    %261 = vperm.xlu0 %260, %v103
    %v262 = vpop.permute.xlu0 %261
    %265 = vset.pattern.permute.xlu0 0
    %266 = vperm.xlu0 %265, %v104
    %v267 = vpop.permute.xlu0 %266
    %270 = vset.pattern.permute.xlu0 0
    %271 = vperm.xlu0 %270, %v105
    %v272 = vpop.permute.xlu0 %271
    %275 = vset.pattern.permute.xlu0 0
    %276 = vperm.xlu0 %275, %v106
    %v277 = vpop.permute.xlu0 %276
    %280 = vset.pattern.permute.xlu0 0
    %281 = vperm.xlu0 %280, %v107
    %v282 = vpop.permute.xlu0 %281
    %285 = vset.pattern.permute.xlu0 0
    %286 = vperm.xlu0 %285, %v108
    %v287 = vpop.permute.xlu0 %286
    %290 = vset.pattern.permute.xlu0 0
    %291 = vperm.xlu0 %290, %v109
    %v292 = vpop.permute.xlu0 %291
    %295 = vset.pattern.permute.xlu0 0
    %296 = vperm.xlu0 %295, %v110
    %v297 = vpop.permute.xlu0 %296
    %300 = vset.pattern.permute.xlu0 0
    %301 = vperm.xlu0 %300, %v111
    %v302 = vpop.permute.xlu0 %301
    %305 = vset.pattern.permute.xlu0 0
    %306 = vperm.xlu0 %305, %v112
    %v307 = vpop.permute.xlu0 %306
    %310 = vset.pattern.permute.xlu0 0
    %311 = vperm.xlu0 %310, %v113
    %v312 = vpop.permute.xlu0 %311
    %315 = vset.pattern.permute.xlu0 0
    %316 = vperm.xlu0 %315, %v114
    %v317 = vpop.permute.xlu0 %316
    %320 = vset.pattern.permute.xlu0 0
    %321 = vperm.xlu0 %320, %v115
    %v322 = vpop.permute.xlu0 %321
    %325 = vset.pattern.permute.xlu0 0
    %326 = vperm.xlu0 %325, %v116
    %v327 = vpop.permute.xlu0 %326
    %330 = vset.pattern.permute.xlu0 0
    %331 = vperm.xlu0 %330, %v117
    %v332 = vpop.permute.xlu0 %331
    %335 = vset.pattern.permute.xlu0 0
    %336 = vperm.xlu0 %335, %v118
    %v337 = vpop.permute.xlu0 %336
    %340 = vset.pattern.permute.xlu0 0
    %341 = vperm.xlu0 %340, %v119
    %v342 = vpop.permute.xlu0 %341
    %345 = vset.pattern.permute.xlu0 0
    %346 = vperm.xlu0 %345, %v120
    %v347 = vpop.permute.xlu0 %346
    %350 = vset.pattern.permute.xlu0 0
    %351 = vperm.xlu0 %350, %v121
    %v352 = vpop.permute.xlu0 %351
    %355 = vset.pattern.permute.xlu0 0
    %356 = vperm.xlu0 %355, %v122
    %v357 = vpop.permute.xlu0 %356
    %360 = vset.pattern.permute.xlu0 0
    %361 = vperm.xlu0 %360, %v123
    %v362 = vpop.permute.xlu0 %361
    %365 = vset.pattern.permute.xlu0 0
    %366 = vperm.xlu0 %365, %v124
    %v367 = vpop.permute.xlu0 %366
    %370 = vset.pattern.permute.xlu0 0
    %371 = vperm.xlu0 %370, %v125
    %v372 = vpop.permute.xlu0 %371
    %375 = vset.pattern.permute.xlu0 0
    %376 = vperm.xlu0 %375, %v126
    %v377 = vpop.permute.xlu0 %376
    %380 = vset.pattern.permute.xlu0 0
    %381 = vperm.xlu0 %380, %v127
    %v382 = vpop.permute.xlu0 %381
    %385 = vset.pattern.permute.xlu0 0
    %386 = vperm.xlu0 %385, %v128
    %v387 = vpop.permute.xlu0 %386
    %390 = vset.pattern.permute.xlu0 0
    %391 = vperm.xlu0 %390, %v129
    %v392 = vpop.permute.xlu0 %391
    %395 = vset.pattern.permute.xlu0 0
    %396 = vperm.xlu0 %395, %v130
    %v397 = vpop.permute.xlu0 %396
    %400 = vset.pattern.permute.xlu0 0
    %401 = vperm.xlu0 %400, %v131
    %v402 = vpop.permute.xlu0 %401
    %405 = vset.pattern.permute.xlu0 0
    %406 = vperm.xlu0 %405, %v132
    %v407 = vpop.permute.xlu0 %406
    %410 = vset.pattern.permute.xlu0 0
    %411 = vperm.xlu0 %410, %v133
    %v412 = vpop.permute.xlu0 %411
    %415 = vset.pattern.permute.xlu0 0
    %416 = vperm.xlu0 %415, %v134
    %v417 = vpop.permute.xlu0 %416
    %420 = vset.pattern.permute.xlu0 0
    %421 = vperm.xlu0 %420, %v135
    %v422 = vpop.permute.xlu0 %421
    %425 = vset.pattern.permute.xlu0 0
    %426 = vperm.xlu0 %425, %v136
    %v427 = vpop.permute.xlu0 %426
    %430 = vset.pattern.permute.xlu0 0
    %431 = vperm.xlu0 %430, %v137
    %v432 = vpop.permute.xlu0 %431
    %435 = vset.pattern.permute.xlu0 0
    %436 = vperm.xlu0 %435, %v138
    %v437 = vpop.permute.xlu0 %436
    %440 = vset.pattern.permute.xlu0 0
    %441 = vperm.xlu0 %440, %v139
    %v442 = vpop.permute.xlu0 %441
    %445 = vset.pattern.permute.xlu0 0
    %446 = vperm.xlu0 %445, %v140
    %v447 = vpop.permute.xlu0 %446
    %450 = vset.pattern.permute.xlu0 0
    %451 = vperm.xlu0 %450, %v141
    %v452 = vpop.permute.xlu0 %451
    %455 = vset.pattern.permute.xlu0 0
    %456 = vperm.xlu0 %455, %v142
    %v457 = vpop.permute.xlu0 %456
    %460 = vset.pattern.permute.xlu0 0
    %461 = vperm.xlu0 %460, %v143
    %v462 = vpop.permute.xlu0 %461
    %v464 = vmul.f32 %v147, %v73
    %v465 = vmul.f32 %v152, %v73
    %v466 = vmul.f32 %v157, %v73
    %v467 = vmul.f32 %v162, %v73
    %v468 = vmul.f32 %v167, %v73
    %v469 = vmul.f32 %v172, %v73
    %v470 = vmul.f32 %v177, %v73
    %v471 = vmul.f32 %v182, %v73
    %v472 = vmul.f32 %v187, %v73
    %v473 = vmul.f32 %v192, %v73
    %v474 = vmul.f32 %v197, %v73
    %v475 = vmul.f32 %v202, %v73
    %v476 = vmul.f32 %v207, %v73
    %v477 = vmul.f32 %v212, %v73
    %v478 = vmul.f32 %v217, %v73
    %v479 = vmul.f32 %v222, %v73
    %v480 = vmul.f32 %v227, %v73
    %v481 = vmul.f32 %v232, %v73
    %v482 = vmul.f32 %v237, %v73
    %v483 = vmul.f32 %v242, %v73
    %v484 = vmul.f32 %v247, %v73
    %v485 = vmul.f32 %v252, %v73
    %v486 = vmul.f32 %v257, %v73
    %v487 = vmul.f32 %v262, %v73
    %v488 = vmul.f32 %v267, %v73
    %v489 = vmul.f32 %v272, %v73
    %v490 = vmul.f32 %v277, %v73
    %v491 = vmul.f32 %v282, %v73
    %v492 = vmul.f32 %v287, %v73
    %v493 = vmul.f32 %v292, %v73
    %v494 = vmul.f32 %v297, %v73
    %v495 = vmul.f32 %v302, %v73
    %v496 = vmul.f32 %v307, %v77
    %v497 = vmul.f32 %v312, %v77
    %v498 = vmul.f32 %v317, %v77
    %v499 = vmul.f32 %v322, %v77
    %v500 = vmul.f32 %v327, %v77
    %v501 = vmul.f32 %v332, %v77
    %v502 = vmul.f32 %v337, %v77
    %v503 = vmul.f32 %v342, %v77
    %v504 = vmul.f32 %v347, %v77
    %v505 = vmul.f32 %v352, %v77
    %v506 = vmul.f32 %v357, %v77
    %v507 = vmul.f32 %v362, %v77
    %v508 = vmul.f32 %v367, %v77
    %v509 = vmul.f32 %v372, %v77
    %v510 = vmul.f32 %v377, %v77
    %v511 = vmul.f32 %v382, %v77
    %v512 = vmul.f32 %v387, %v77
    %v513 = vmul.f32 %v392, %v77
    %v514 = vmul.f32 %v397, %v77
    %v515 = vmul.f32 %v402, %v77
    %v516 = vmul.f32 %v407, %v77
    %v517 = vmul.f32 %v412, %v77
    %v518 = vmul.f32 %v417, %v77
    %v519 = vmul.f32 %v422, %v77
    %v520 = vmul.f32 %v427, %v77
    %v521 = vmul.f32 %v432, %v77
    %v522 = vmul.f32 %v437, %v77
    %v523 = vmul.f32 %v442, %v77
    %v524 = vmul.f32 %v447, %v77
    %v525 = vmul.f32 %v452, %v77
    %v526 = vmul.f32 %v457, %v77
    %v527 = vmul.f32 %v462, %v77
    %v528 = vld [vmem:[%s2] sm:$0xff]
    %v529 = vld [vmem:[%s2 + $0x8] sm:$0xff]
    %v530 = vld [vmem:[%s2 + $0x10] sm:$0xff]
    %v531 = vld [vmem:[%s2 + $0x18] sm:$0xff]
    %v532 = vld [vmem:[%s2 + $0x20] sm:$0xff]
    %v533 = vld [vmem:[%s2 + $0x28] sm:$0xff]
    %v534 = vld [vmem:[%s2 + $0x30] sm:$0xff]
    %v535 = vld [vmem:[%s2 + $0x38] sm:$0xff]
    %v536 = vld [vmem:[%s2 + $0x40] sm:$0xff]
    %v537 = vld [vmem:[%s2 + $0x48] sm:$0xff]
    %v538 = vld [vmem:[%s2 + $0x50] sm:$0xff]
    %v539 = vld [vmem:[%s2 + $0x58] sm:$0xff]
    %v540 = vld [vmem:[%s2 + $0x60] sm:$0xff]
    %v541 = vld [vmem:[%s2 + $0x68] sm:$0xff]
    %v542 = vld [vmem:[%s2 + $0x70] sm:$0xff]
    %v543 = vld [vmem:[%s2 + $0x78] sm:$0xff]
    %v544 = vld [vmem:[%s2 + $0x80] sm:$0xff]
    %v545 = vld [vmem:[%s2 + $0x88] sm:$0xff]
    %v546 = vld [vmem:[%s2 + $0x90] sm:$0xff]
    %v547 = vld [vmem:[%s2 + $0x98] sm:$0xff]
    %v548 = vld [vmem:[%s2 + $0xa0] sm:$0xff]
    %v549 = vld [vmem:[%s2 + $0xa8] sm:$0xff]
    %v550 = vld [vmem:[%s2 + $0xb0] sm:$0xff]
    %v551 = vld [vmem:[%s2 + $0xb8] sm:$0xff]
    %v552 = vld [vmem:[%s2 + $0xc0] sm:$0xff]
    %v553 = vld [vmem:[%s2 + $0xc8] sm:$0xff]
    %v554 = vld [vmem:[%s2 + $0xd0] sm:$0xff]
    %v555 = vld [vmem:[%s2 + $0xd8] sm:$0xff]
    %v556 = vld [vmem:[%s2 + $0xe0] sm:$0xff]
    %v557 = vld [vmem:[%s2 + $0xe8] sm:$0xff]
    %v558 = vld [vmem:[%s2 + $0xf0] sm:$0xff]
    %v559 = vld [vmem:[%s2 + $0xf8] sm:$0xff]
    %v560 = vld [vmem:[%s2 + $0x100] sm:$0xff]
    %v561 = vld [vmem:[%s2 + $0x108] sm:$0xff]
    %v562 = vld [vmem:[%s2 + $0x110] sm:$0xff]
    %v563 = vld [vmem:[%s2 + $0x118] sm:$0xff]
    %v564 = vld [vmem:[%s2 + $0x120] sm:$0xff]
    %v565 = vld [vmem:[%s2 + $0x128] sm:$0xff]
    %v566 = vld [vmem:[%s2 + $0x130] sm:$0xff]
    %v567 = vld [vmem:[%s2 + $0x138] sm:$0xff]
    %v568 = vld [vmem:[%s2 + $0x140] sm:$0xff]
    %v569 = vld [vmem:[%s2 + $0x148] sm:$0xff]
    %v570 = vld [vmem:[%s2 + $0x150] sm:$0xff]
    %v571 = vld [vmem:[%s2 + $0x158] sm:$0xff]
    %v572 = vld [vmem:[%s2 + $0x160] sm:$0xff]
    %v573 = vld [vmem:[%s2 + $0x168] sm:$0xff]
    %v574 = vld [vmem:[%s2 + $0x170] sm:$0xff]
    %v575 = vld [vmem:[%s2 + $0x178] sm:$0xff]
    %v576 = vld [vmem:[%s2 + $0x180] sm:$0xff]
    %v577 = vld [vmem:[%s2 + $0x188] sm:$0xff]
    %v578 = vld [vmem:[%s2 + $0x190] sm:$0xff]
    %v579 = vld [vmem:[%s2 + $0x198] sm:$0xff]
    %v580 = vld [vmem:[%s2 + $0x1a0] sm:$0xff]
    %v581 = vld [vmem:[%s2 + $0x1a8] sm:$0xff]
    %v582 = vld [vmem:[%s2 + $0x1b0] sm:$0xff]
    %v583 = vld [vmem:[%s2 + $0x1b8] sm:$0xff]
    %v584 = vld [vmem:[%s2 + $0x1c0] sm:$0xff]
    %v585 = vld [vmem:[%s2 + $0x1c8] sm:$0xff]
    %v586 = vld [vmem:[%s2 + $0x1d0] sm:$0xff]
    %v587 = vld [vmem:[%s2 + $0x1d8] sm:$0xff]
    %v588 = vld [vmem:[%s2 + $0x1e0] sm:$0xff]
    %v589 = vld [vmem:[%s2 + $0x1e8] sm:$0xff]
    %v590 = vld [vmem:[%s2 + $0x1f0] sm:$0xff]
    %v591 = vld [vmem:[%s2 + $0x1f8] sm:$0xff]
    %v592 = vpack.c.bf16 %v465, %v464
    %v593 = vpack.c.bf16 %v467, %v466
    %v594 = vpack.c.bf16 %v469, %v468
    %v595 = vpack.c.bf16 %v471, %v470
    %v596 = vpack.c.bf16 %v473, %v472
    %v597 = vpack.c.bf16 %v475, %v474
    %v598 = vpack.c.bf16 %v477, %v476
    %v599 = vpack.c.bf16 %v479, %v478
    %v600 = vpack.c.bf16 %v481, %v480
    %v601 = vpack.c.bf16 %v483, %v482
    %v602 = vpack.c.bf16 %v485, %v484
    %v603 = vpack.c.bf16 %v487, %v486
    %v604 = vpack.c.bf16 %v489, %v488
    %v605 = vpack.c.bf16 %v491, %v490
    %v606 = vpack.c.bf16 %v493, %v492
    %v607 = vpack.c.bf16 %v495, %v494
    %v608 = vpack.c.bf16 %v497, %v496
    %v609 = vpack.c.bf16 %v499, %v498
    %v610 = vpack.c.bf16 %v501, %v500
    %v611 = vpack.c.bf16 %v503, %v502
    %v612 = vpack.c.bf16 %v505, %v504
    %v613 = vpack.c.bf16 %v507, %v506
    %v614 = vpack.c.bf16 %v509, %v508
    %v615 = vpack.c.bf16 %v511, %v510
    %v616 = vpack.c.bf16 %v513, %v512
    %v617 = vpack.c.bf16 %v515, %v514
    %v618 = vpack.c.bf16 %v517, %v516
    %v619 = vpack.c.bf16 %v519, %v518
    %v620 = vpack.c.bf16 %v521, %v520
    %v621 = vpack.c.bf16 %v523, %v522
    %v622 = vpack.c.bf16 %v525, %v524
    %v623 = vpack.c.bf16 %v527, %v526
    %vm624 = vsmask.f32 256
    %v626 = vshrl.u32 %v622, 16
    %v628 = vrot.slane %v626, 7
    %v630 = vshrl.u32 %v623, 16
    %v632 = vrot.slane %v630, 7
    %v633 = vshll.u32 %v623, 16
    %v635 = vor.u32 %v632, %v633
    %v636 = vsel %vm624, %v628, %v635
    %v639 = vshrl.u32 %v592, 16
    %v641 = vrot.slane %v639, 7
    %v642 = vshll.u32 %v592, 16
    %v644 = vor.u32 %v641, %v642
    %v646 = vshrl.u32 %v593, 16
    %v648 = vrot.slane %v646, 7
    %v649 = vshll.u32 %v593, 16
    %v651 = vor.u32 %v648, %v649
    %v652 = vsel %vm624, %v641, %v651
    %v654 = vshrl.u32 %v594, 16
    %v656 = vrot.slane %v654, 7
    %v657 = vshll.u32 %v594, 16
    %v659 = vor.u32 %v656, %v657
    %v660 = vsel %vm624, %v648, %v659
    %v662 = vshrl.u32 %v595, 16
    %v664 = vrot.slane %v662, 7
    %v665 = vshll.u32 %v595, 16
    %v667 = vor.u32 %v664, %v665
    %v668 = vsel %vm624, %v656, %v667
    %v670 = vshrl.u32 %v596, 16
    %v672 = vrot.slane %v670, 7
    %v673 = vshll.u32 %v596, 16
    %v675 = vor.u32 %v672, %v673
    %v676 = vsel %vm624, %v664, %v675
    %v678 = vshrl.u32 %v597, 16
    %v680 = vrot.slane %v678, 7
    %v681 = vshll.u32 %v597, 16
    %v683 = vor.u32 %v680, %v681
    %v684 = vsel %vm624, %v672, %v683
    %v686 = vshrl.u32 %v598, 16
    %v688 = vrot.slane %v686, 7
    %v689 = vshll.u32 %v598, 16
    %v691 = vor.u32 %v688, %v689
    %v692 = vsel %vm624, %v680, %v691
    %v694 = vshrl.u32 %v599, 16
    %v696 = vrot.slane %v694, 7
    %v697 = vshll.u32 %v599, 16
    %v699 = vor.u32 %v696, %v697
    %v700 = vsel %vm624, %v688, %v699
    %v702 = vshrl.u32 %v600, 16
    %v704 = vrot.slane %v702, 7
    %v705 = vshll.u32 %v600, 16
    %v707 = vor.u32 %v704, %v705
    %v708 = vsel %vm624, %v696, %v707
    %v710 = vshrl.u32 %v601, 16
    %v712 = vrot.slane %v710, 7
    %v713 = vshll.u32 %v601, 16
    %v715 = vor.u32 %v712, %v713
    %v716 = vsel %vm624, %v704, %v715
    %v718 = vshrl.u32 %v602, 16
    %v720 = vrot.slane %v718, 7
    %v721 = vshll.u32 %v602, 16
    %v723 = vor.u32 %v720, %v721
    %v724 = vsel %vm624, %v712, %v723
    %v726 = vshrl.u32 %v603, 16
    %v728 = vrot.slane %v726, 7
    %v729 = vshll.u32 %v603, 16
    %v731 = vor.u32 %v728, %v729
    %v732 = vsel %vm624, %v720, %v731
    %v734 = vshrl.u32 %v604, 16
    %v736 = vrot.slane %v734, 7
    %v737 = vshll.u32 %v604, 16
    %v739 = vor.u32 %v736, %v737
    %v740 = vsel %vm624, %v728, %v739
    %v742 = vshrl.u32 %v605, 16
    %v744 = vrot.slane %v742, 7
    %v745 = vshll.u32 %v605, 16
    %v747 = vor.u32 %v744, %v745
    %v748 = vsel %vm624, %v736, %v747
    %v750 = vshrl.u32 %v606, 16
    %v752 = vrot.slane %v750, 7
    %v753 = vshll.u32 %v606, 16
    %v755 = vor.u32 %v752, %v753
    %v756 = vsel %vm624, %v744, %v755
    %v758 = vshrl.u32 %v607, 16
    %v760 = vrot.slane %v758, 7
    %v761 = vshll.u32 %v607, 16
    %v763 = vor.u32 %v760, %v761
    %v764 = vsel %vm624, %v752, %v763
    %v766 = vshrl.u32 %v608, 16
    %v768 = vrot.slane %v766, 7
    %v769 = vshll.u32 %v608, 16
    %v771 = vor.u32 %v768, %v769
    %v772 = vsel %vm624, %v760, %v771
    %v774 = vshrl.u32 %v609, 16
    %v776 = vrot.slane %v774, 7
    %v777 = vshll.u32 %v609, 16
    %v779 = vor.u32 %v776, %v777
    %v780 = vsel %vm624, %v768, %v779
    %v782 = vshrl.u32 %v610, 16
    %v784 = vrot.slane %v782, 7
    %v785 = vshll.u32 %v610, 16
    %v787 = vor.u32 %v784, %v785
    %v788 = vsel %vm624, %v776, %v787
    %v790 = vshrl.u32 %v611, 16
    %v792 = vrot.slane %v790, 7
    %v793 = vshll.u32 %v611, 16
    %v795 = vor.u32 %v792, %v793
    %v796 = vsel %vm624, %v784, %v795
    %v798 = vshrl.u32 %v612, 16
    %v800 = vrot.slane %v798, 7
    %v801 = vshll.u32 %v612, 16
    %v803 = vor.u32 %v800, %v801
    %v804 = vsel %vm624, %v792, %v803
    %v806 = vshrl.u32 %v613, 16
    %v808 = vrot.slane %v806, 7
    %v809 = vshll.u32 %v613, 16
    %v811 = vor.u32 %v808, %v809
    %v812 = vsel %vm624, %v800, %v811
    %v814 = vshrl.u32 %v614, 16
    %v816 = vrot.slane %v814, 7
    %v817 = vshll.u32 %v614, 16
    %v819 = vor.u32 %v816, %v817
    %v820 = vsel %vm624, %v808, %v819
    %v822 = vshrl.u32 %v615, 16
    %v824 = vrot.slane %v822, 7
    %v825 = vshll.u32 %v615, 16
    %v827 = vor.u32 %v824, %v825
    %v828 = vsel %vm624, %v816, %v827
    %v830 = vshrl.u32 %v616, 16
    %v832 = vrot.slane %v830, 7
    %v833 = vshll.u32 %v616, 16
    %v835 = vor.u32 %v832, %v833
    %v836 = vsel %vm624, %v824, %v835
    %v838 = vshrl.u32 %v617, 16
    %v840 = vrot.slane %v838, 7
    %v841 = vshll.u32 %v617, 16
    %v843 = vor.u32 %v840, %v841
    %v844 = vsel %vm624, %v832, %v843
    %v846 = vshrl.u32 %v618, 16
    %v848 = vrot.slane %v846, 7
    %v849 = vshll.u32 %v618, 16
    %v851 = vor.u32 %v848, %v849
    %v852 = vsel %vm624, %v840, %v851
    %v854 = vshrl.u32 %v619, 16
    %v856 = vrot.slane %v854, 7
    %v857 = vshll.u32 %v619, 16
    %v859 = vor.u32 %v856, %v857
    %v860 = vsel %vm624, %v848, %v859
    %v862 = vshrl.u32 %v620, 16
    %v864 = vrot.slane %v862, 7
    %v865 = vshll.u32 %v620, 16
    %v867 = vor.u32 %v864, %v865
    %v868 = vsel %vm624, %v856, %v867
    %v870 = vshrl.u32 %v621, 16
    %v872 = vrot.slane %v870, 7
    %v873 = vshll.u32 %v621, 16
    %v875 = vor.u32 %v872, %v873
    %v876 = vsel %vm624, %v864, %v875
    %v877 = vshll.u32 %v622, 16
    %v879 = vor.u32 %v628, %v877
    %v880 = vsel %vm624, %v872, %v879
    %vm882 = vcmask 1040384
    %vm883 = vmand %vm882, %vm624
    %v884 = vsel %vm883, %v632, %v644
    %v885 = vrot.slane %v633, 1
    %v886 = vor.u32 %v630, %v885
    %vm888 = vsmask.f32 7424
    %v889 = vrot.slane %v642, 1
    %v890 = vor.u32 %v639, %v889
    %v891 = vrot.slane %v649, 1
    %v892 = vsel %vm888, %v890, %v891
    %v893 = vor.u32 %v646, %v891
    %v894 = vrot.slane %v657, 1
    %v895 = vsel %vm888, %v893, %v894
    %v896 = vor.u32 %v654, %v894
    %v897 = vrot.slane %v665, 1
    %v898 = vsel %vm888, %v896, %v897
    %v899 = vor.u32 %v662, %v897
    %v900 = vrot.slane %v673, 1
    %v901 = vsel %vm888, %v899, %v900
    %v902 = vor.u32 %v670, %v900
    %v903 = vrot.slane %v681, 1
    %v904 = vsel %vm888, %v902, %v903
    %v905 = vor.u32 %v678, %v903
    %v906 = vrot.slane %v689, 1
    %v907 = vsel %vm888, %v905, %v906
    %v908 = vor.u32 %v686, %v906
    %v909 = vrot.slane %v697, 1
    %v910 = vsel %vm888, %v908, %v909
    %v911 = vor.u32 %v694, %v909
    %v912 = vrot.slane %v705, 1
    %v913 = vsel %vm888, %v911, %v912
    %v914 = vor.u32 %v702, %v912
    %v915 = vrot.slane %v713, 1
    %v916 = vsel %vm888, %v914, %v915
    %v917 = vor.u32 %v710, %v915
    %v918 = vrot.slane %v721, 1
    %v919 = vsel %vm888, %v917, %v918
    %v920 = vor.u32 %v718, %v918
    %v921 = vrot.slane %v729, 1
    %v922 = vsel %vm888, %v920, %v921
    %v923 = vor.u32 %v726, %v921
    %v924 = vrot.slane %v737, 1
    %v925 = vsel %vm888, %v923, %v924
    %v926 = vor.u32 %v734, %v924
    %v927 = vrot.slane %v745, 1
    %v928 = vsel %vm888, %v926, %v927
    %v929 = vor.u32 %v742, %v927
    %v930 = vrot.slane %v753, 1
    %v931 = vsel %vm888, %v929, %v930
    %v932 = vor.u32 %v750, %v930
    %v933 = vrot.slane %v761, 1
    %v934 = vsel %vm888, %v932, %v933
    %v935 = vor.u32 %v758, %v933
    %v936 = vrot.slane %v769, 1
    %v937 = vsel %vm888, %v935, %v936
    %v938 = vor.u32 %v766, %v936
    %v939 = vrot.slane %v777, 1
    %v940 = vsel %vm888, %v938, %v939
    %v941 = vor.u32 %v774, %v939
    %v942 = vrot.slane %v785, 1
    %v943 = vsel %vm888, %v941, %v942
    %v944 = vor.u32 %v782, %v942
    %v945 = vrot.slane %v793, 1
    %v946 = vsel %vm888, %v944, %v945
    %v947 = vor.u32 %v790, %v945
    %v948 = vrot.slane %v801, 1
    %v949 = vsel %vm888, %v947, %v948
    %v950 = vor.u32 %v798, %v948
    %v951 = vrot.slane %v809, 1
    %v952 = vsel %vm888, %v950, %v951
    %v953 = vor.u32 %v806, %v951
    %v954 = vrot.slane %v817, 1
    %v955 = vsel %vm888, %v953, %v954
    %v956 = vor.u32 %v814, %v954
    %v957 = vrot.slane %v825, 1
    %v958 = vsel %vm888, %v956, %v957
    %v959 = vor.u32 %v822, %v957
    %v960 = vrot.slane %v833, 1
    %v961 = vsel %vm888, %v959, %v960
    %v962 = vor.u32 %v830, %v960
    %v963 = vrot.slane %v841, 1
    %v964 = vsel %vm888, %v962, %v963
    %v965 = vor.u32 %v838, %v963
    %v966 = vrot.slane %v849, 1
    %v967 = vsel %vm888, %v965, %v966
    %v968 = vor.u32 %v846, %v966
    %v969 = vrot.slane %v857, 1
    %v970 = vsel %vm888, %v968, %v969
    %v971 = vor.u32 %v854, %v969
    %v972 = vrot.slane %v865, 1
    %v973 = vsel %vm888, %v971, %v972
    %v974 = vor.u32 %v862, %v972
    %v975 = vrot.slane %v873, 1
    %v976 = vsel %vm888, %v974, %v975
    %v977 = vor.u32 %v870, %v975
    %v978 = vrot.slane %v877, 1
    %v979 = vsel %vm888, %v977, %v978
    %v980 = vor.u32 %v626, %v978
    %v981 = vsel %vm888, %v980, %v885
    %vm983 = vcmask 1047552
    %vm984 = vmand %vm983, %vm888
    %v985 = vsel %vm984, %v886, %v889
    %1049 = vrot.lane.b32.xlu0 %v623, 16
    %v1050 = vpop.permute.xlu0 %1049
    %1051 = vrot.lane.b32.xlu0 %v592, 16
    %v1052 = vpop.permute.xlu0 %1051
    %1053 = vrot.lane.b32.xlu0 %v593, 16
    %v1054 = vpop.permute.xlu0 %1053
    %1055 = vrot.lane.b32.xlu0 %v594, 16
    %v1056 = vpop.permute.xlu0 %1055
    %1057 = vrot.lane.b32.xlu0 %v595, 16
    %v1058 = vpop.permute.xlu0 %1057
    %1059 = vrot.lane.b32.xlu0 %v596, 16
    %v1060 = vpop.permute.xlu0 %1059
    %1061 = vrot.lane.b32.xlu0 %v597, 16
    %v1062 = vpop.permute.xlu0 %1061
    %1063 = vrot.lane.b32.xlu0 %v598, 16
    %v1064 = vpop.permute.xlu0 %1063
    %1065 = vrot.lane.b32.xlu0 %v599, 16
    %v1066 = vpop.permute.xlu0 %1065
    %1067 = vrot.lane.b32.xlu0 %v600, 16
    %v1068 = vpop.permute.xlu0 %1067
    %1069 = vrot.lane.b32.xlu0 %v601, 16
    %v1070 = vpop.permute.xlu0 %1069
    %1071 = vrot.lane.b32.xlu0 %v602, 16
    %v1072 = vpop.permute.xlu0 %1071
    %1073 = vrot.lane.b32.xlu0 %v603, 16
    %v1074 = vpop.permute.xlu0 %1073
    %1075 = vrot.lane.b32.xlu0 %v604, 16
    %v1076 = vpop.permute.xlu0 %1075
    %1077 = vrot.lane.b32.xlu0 %v605, 16
    %v1078 = vpop.permute.xlu0 %1077
    %1079 = vrot.lane.b32.xlu0 %v606, 16
    %v1080 = vpop.permute.xlu0 %1079
    %1081 = vrot.lane.b32.xlu0 %v607, 16
    %v1082 = vpop.permute.xlu0 %1081
    %1083 = vrot.lane.b32.xlu0 %v608, 16
    %v1084 = vpop.permute.xlu0 %1083
    %1085 = vrot.lane.b32.xlu0 %v609, 16
    %v1086 = vpop.permute.xlu0 %1085
    %1087 = vrot.lane.b32.xlu0 %v610, 16
    %v1088 = vpop.permute.xlu0 %1087
    %1089 = vrot.lane.b32.xlu0 %v611, 16
    %v1090 = vpop.permute.xlu0 %1089
    %1091 = vrot.lane.b32.xlu0 %v612, 16
    %v1092 = vpop.permute.xlu0 %1091
    %1093 = vrot.lane.b32.xlu0 %v613, 16
    %v1094 = vpop.permute.xlu0 %1093
    %1095 = vrot.lane.b32.xlu0 %v614, 16
    %v1096 = vpop.permute.xlu0 %1095
    %1097 = vrot.lane.b32.xlu0 %v615, 16
    %v1098 = vpop.permute.xlu0 %1097
    %1099 = vrot.lane.b32.xlu0 %v616, 16
    %v1100 = vpop.permute.xlu0 %1099
    %1101 = vrot.lane.b32.xlu0 %v617, 16
    %v1102 = vpop.permute.xlu0 %1101
    %1103 = vrot.lane.b32.xlu0 %v618, 16
    %v1104 = vpop.permute.xlu0 %1103
    %1105 = vrot.lane.b32.xlu0 %v619, 16
    %v1106 = vpop.permute.xlu0 %1105
    %1107 = vrot.lane.b32.xlu0 %v620, 16
    %v1108 = vpop.permute.xlu0 %1107
    %1109 = vrot.lane.b32.xlu0 %v621, 16
    %v1110 = vpop.permute.xlu0 %1109
    %1111 = vrot.lane.b32.xlu0 %v622, 16
    %v1112 = vpop.permute.xlu0 %1111
    %1114 = vrot.lane.b32.xlu0 %v985, 32
    %v1115 = vpop.permute.xlu0 %1114
    %1116 = vrot.lane.b32.xlu0 %v892, 32
    %v1117 = vpop.permute.xlu0 %1116
    %1118 = vrot.lane.b32.xlu0 %v895, 32
    %v1119 = vpop.permute.xlu0 %1118
    %1120 = vrot.lane.b32.xlu0 %v898, 32
    %v1121 = vpop.permute.xlu0 %1120
    %1122 = vrot.lane.b32.xlu0 %v901, 32
    %v1123 = vpop.permute.xlu0 %1122
    %1124 = vrot.lane.b32.xlu0 %v904, 32
    %v1125 = vpop.permute.xlu0 %1124
    %1126 = vrot.lane.b32.xlu0 %v907, 32
    %v1127 = vpop.permute.xlu0 %1126
    %1128 = vrot.lane.b32.xlu0 %v910, 32
    %v1129 = vpop.permute.xlu0 %1128
    %1130 = vrot.lane.b32.xlu0 %v913, 32
    %v1131 = vpop.permute.xlu0 %1130
    %1132 = vrot.lane.b32.xlu0 %v916, 32
    %v1133 = vpop.permute.xlu0 %1132
    %1134 = vrot.lane.b32.xlu0 %v919, 32
    %v1135 = vpop.permute.xlu0 %1134
    %1136 = vrot.lane.b32.xlu0 %v922, 32
    %v1137 = vpop.permute.xlu0 %1136
    %1138 = vrot.lane.b32.xlu0 %v925, 32
    %v1139 = vpop.permute.xlu0 %1138
    %1140 = vrot.lane.b32.xlu0 %v928, 32
    %v1141 = vpop.permute.xlu0 %1140
    %1142 = vrot.lane.b32.xlu0 %v931, 32
    %v1143 = vpop.permute.xlu0 %1142
    %1144 = vrot.lane.b32.xlu0 %v934, 32
    %v1145 = vpop.permute.xlu0 %1144
    %1146 = vrot.lane.b32.xlu0 %v937, 32
    %v1147 = vpop.permute.xlu0 %1146
    %1148 = vrot.lane.b32.xlu0 %v940, 32
    %v1149 = vpop.permute.xlu0 %1148
    %1150 = vrot.lane.b32.xlu0 %v943, 32
    %v1151 = vpop.permute.xlu0 %1150
    %1152 = vrot.lane.b32.xlu0 %v946, 32
    %v1153 = vpop.permute.xlu0 %1152
    %1154 = vrot.lane.b32.xlu0 %v949, 32
    %v1155 = vpop.permute.xlu0 %1154
    %1156 = vrot.lane.b32.xlu0 %v952, 32
    %v1157 = vpop.permute.xlu0 %1156
    %1158 = vrot.lane.b32.xlu0 %v955, 32
    %v1159 = vpop.permute.xlu0 %1158
    %1160 = vrot.lane.b32.xlu0 %v958, 32
    %v1161 = vpop.permute.xlu0 %1160
    %1162 = vrot.lane.b32.xlu0 %v961, 32
    %v1163 = vpop.permute.xlu0 %1162
    %1164 = vrot.lane.b32.xlu0 %v964, 32
    %v1165 = vpop.permute.xlu0 %1164
    %1166 = vrot.lane.b32.xlu0 %v967, 32
    %v1167 = vpop.permute.xlu0 %1166
    %1168 = vrot.lane.b32.xlu0 %v970, 32
    %v1169 = vpop.permute.xlu0 %1168
    %1170 = vrot.lane.b32.xlu0 %v973, 32
    %v1171 = vpop.permute.xlu0 %1170
    %1172 = vrot.lane.b32.xlu0 %v976, 32
    %v1173 = vpop.permute.xlu0 %1172
    %1174 = vrot.lane.b32.xlu0 %v979, 32
    %v1175 = vpop.permute.xlu0 %1174
    %1176 = vrot.lane.b32.xlu0 %v981, 32
    %v1177 = vpop.permute.xlu0 %1176
    %1179 = vrot.lane.b32.xlu0 %v884, 48
    %v1180 = vpop.permute.xlu0 %1179
    %1181 = vrot.lane.b32.xlu0 %v652, 48
    %v1182 = vpop.permute.xlu0 %1181
    %1183 = vrot.lane.b32.xlu0 %v660, 48
    %v1184 = vpop.permute.xlu0 %1183
    %1185 = vrot.lane.b32.xlu0 %v668, 48
    %v1186 = vpop.permute.xlu0 %1185
    %1187 = vrot.lane.b32.xlu0 %v676, 48
    %v1188 = vpop.permute.xlu0 %1187
    %1189 = vrot.lane.b32.xlu0 %v684, 48
    %v1190 = vpop.permute.xlu0 %1189
    %1191 = vrot.lane.b32.xlu0 %v692, 48
    %v1192 = vpop.permute.xlu0 %1191
    %1193 = vrot.lane.b32.xlu0 %v700, 48
    %v1194 = vpop.permute.xlu0 %1193
    %1195 = vrot.lane.b32.xlu0 %v708, 48
    %v1196 = vpop.permute.xlu0 %1195
    %1197 = vrot.lane.b32.xlu0 %v716, 48
    %v1198 = vpop.permute.xlu0 %1197
    %1199 = vrot.lane.b32.xlu0 %v724, 48
    %v1200 = vpop.permute.xlu0 %1199
    %1201 = vrot.lane.b32.xlu0 %v732, 48
    %v1202 = vpop.permute.xlu0 %1201
    %1203 = vrot.lane.b32.xlu0 %v740, 48
    %v1204 = vpop.permute.xlu0 %1203
    %1205 = vrot.lane.b32.xlu0 %v748, 48
    %v1206 = vpop.permute.xlu0 %1205
    %1207 = vrot.lane.b32.xlu0 %v756, 48
    %v1208 = vpop.permute.xlu0 %1207
    %1209 = vrot.lane.b32.xlu0 %v764, 48
    %v1210 = vpop.permute.xlu0 %1209
    %1211 = vrot.lane.b32.xlu0 %v772, 48
    %v1212 = vpop.permute.xlu0 %1211
    %1213 = vrot.lane.b32.xlu0 %v780, 48
    %v1214 = vpop.permute.xlu0 %1213
    %1215 = vrot.lane.b32.xlu0 %v788, 48
    %v1216 = vpop.permute.xlu0 %1215
    %1217 = vrot.lane.b32.xlu0 %v796, 48
    %v1218 = vpop.permute.xlu0 %1217
    %1219 = vrot.lane.b32.xlu0 %v804, 48
    %v1220 = vpop.permute.xlu0 %1219
    %1221 = vrot.lane.b32.xlu0 %v812, 48
    %v1222 = vpop.permute.xlu0 %1221
    %1223 = vrot.lane.b32.xlu0 %v820, 48
    %v1224 = vpop.permute.xlu0 %1223
    %1225 = vrot.lane.b32.xlu0 %v828, 48
    %v1226 = vpop.permute.xlu0 %1225
    %1227 = vrot.lane.b32.xlu0 %v836, 48
    %v1228 = vpop.permute.xlu0 %1227
    %1229 = vrot.lane.b32.xlu0 %v844, 48
    %v1230 = vpop.permute.xlu0 %1229
    %1231 = vrot.lane.b32.xlu0 %v852, 48
    %v1232 = vpop.permute.xlu0 %1231
    %1233 = vrot.lane.b32.xlu0 %v860, 48
    %v1234 = vpop.permute.xlu0 %1233
    %1235 = vrot.lane.b32.xlu0 %v868, 48
    %v1236 = vpop.permute.xlu0 %1235
    %1237 = vrot.lane.b32.xlu0 %v876, 48
    %v1238 = vpop.permute.xlu0 %1237
    %1239 = vrot.lane.b32.xlu0 %v880, 48
    %v1240 = vpop.permute.xlu0 %1239
    %1241 = vrot.lane.b32.xlu0 %v636, 48
    %v1242 = vpop.permute.xlu0 %1241
    %1243 = vrot.lane.b32.xlu0 %v592, 64
    %v1244 = vpop.permute.xlu0 %1243
    %1245 = vrot.lane.b32.xlu0 %v593, 64
    %v1246 = vpop.permute.xlu0 %1245
    %1247 = vrot.lane.b32.xlu0 %v594, 64
    %v1248 = vpop.permute.xlu0 %1247
    %1249 = vrot.lane.b32.xlu0 %v595, 64
    %v1250 = vpop.permute.xlu0 %1249
    %1251 = vrot.lane.b32.xlu0 %v596, 64
    %v1252 = vpop.permute.xlu0 %1251
    %1253 = vrot.lane.b32.xlu0 %v597, 64
    %v1254 = vpop.permute.xlu0 %1253
    %1255 = vrot.lane.b32.xlu0 %v598, 64
    %v1256 = vpop.permute.xlu0 %1255
    %1257 = vrot.lane.b32.xlu0 %v599, 64
    %v1258 = vpop.permute.xlu0 %1257
    %1259 = vrot.lane.b32.xlu0 %v600, 64
    %v1260 = vpop.permute.xlu0 %1259
    %1261 = vrot.lane.b32.xlu0 %v601, 64
    %v1262 = vpop.permute.xlu0 %1261
    %1263 = vrot.lane.b32.xlu0 %v602, 64
    %v1264 = vpop.permute.xlu0 %1263
    %1265 = vrot.lane.b32.xlu0 %v603, 64
    %v1266 = vpop.permute.xlu0 %1265
    %1267 = vrot.lane.b32.xlu0 %v604, 64
    %v1268 = vpop.permute.xlu0 %1267
    %1269 = vrot.lane.b32.xlu0 %v605, 64
    %v1270 = vpop.permute.xlu0 %1269
    %1271 = vrot.lane.b32.xlu0 %v606, 64
    %v1272 = vpop.permute.xlu0 %1271
    %1273 = vrot.lane.b32.xlu0 %v607, 64
    %v1274 = vpop.permute.xlu0 %1273
    %1275 = vrot.lane.b32.xlu0 %v608, 64
    %v1276 = vpop.permute.xlu0 %1275
    %1277 = vrot.lane.b32.xlu0 %v609, 64
    %v1278 = vpop.permute.xlu0 %1277
    %1279 = vrot.lane.b32.xlu0 %v610, 64
    %v1280 = vpop.permute.xlu0 %1279
    %1281 = vrot.lane.b32.xlu0 %v611, 64
    %v1282 = vpop.permute.xlu0 %1281
    %1283 = vrot.lane.b32.xlu0 %v612, 64
    %v1284 = vpop.permute.xlu0 %1283
    %1285 = vrot.lane.b32.xlu0 %v613, 64
    %v1286 = vpop.permute.xlu0 %1285
    %1287 = vrot.lane.b32.xlu0 %v614, 64
    %v1288 = vpop.permute.xlu0 %1287
    %1289 = vrot.lane.b32.xlu0 %v615, 64
    %v1290 = vpop.permute.xlu0 %1289
    %1291 = vrot.lane.b32.xlu0 %v616, 64
    %v1292 = vpop.permute.xlu0 %1291
    %1293 = vrot.lane.b32.xlu0 %v617, 64
    %v1294 = vpop.permute.xlu0 %1293
    %1295 = vrot.lane.b32.xlu0 %v618, 64
    %v1296 = vpop.permute.xlu0 %1295
    %1297 = vrot.lane.b32.xlu0 %v619, 64
    %v1298 = vpop.permute.xlu0 %1297
    %1299 = vrot.lane.b32.xlu0 %v620, 64
    %v1300 = vpop.permute.xlu0 %1299
    %1301 = vrot.lane.b32.xlu0 %v621, 64
    %v1302 = vpop.permute.xlu0 %1301
    %1303 = vrot.lane.b32.xlu0 %v622, 64
    %v1304 = vpop.permute.xlu0 %1303
    %1305 = vrot.lane.b32.xlu0 %v623, 64
    %v1306 = vpop.permute.xlu0 %1305
    %1307 = vrot.lane.b32.xlu0 %v892, 80
    %v1308 = vpop.permute.xlu0 %1307
    %1309 = vrot.lane.b32.xlu0 %v895, 80
    %v1310 = vpop.permute.xlu0 %1309
    %1311 = vrot.lane.b32.xlu0 %v898, 80
    %v1312 = vpop.permute.xlu0 %1311
    %1313 = vrot.lane.b32.xlu0 %v901, 80
    %v1314 = vpop.permute.xlu0 %1313
    %1315 = vrot.lane.b32.xlu0 %v904, 80
    %v1316 = vpop.permute.xlu0 %1315
    %1317 = vrot.lane.b32.xlu0 %v907, 80
    %v1318 = vpop.permute.xlu0 %1317
    %1319 = vrot.lane.b32.xlu0 %v910, 80
    %v1320 = vpop.permute.xlu0 %1319
    %1321 = vrot.lane.b32.xlu0 %v913, 80
    %v1322 = vpop.permute.xlu0 %1321
    %1323 = vrot.lane.b32.xlu0 %v916, 80
    %v1324 = vpop.permute.xlu0 %1323
    %1325 = vrot.lane.b32.xlu0 %v919, 80
    %v1326 = vpop.permute.xlu0 %1325
    %1327 = vrot.lane.b32.xlu0 %v922, 80
    %v1328 = vpop.permute.xlu0 %1327
    %1329 = vrot.lane.b32.xlu0 %v925, 80
    %v1330 = vpop.permute.xlu0 %1329
    %1331 = vrot.lane.b32.xlu0 %v928, 80
    %v1332 = vpop.permute.xlu0 %1331
    %1333 = vrot.lane.b32.xlu0 %v931, 80
    %v1334 = vpop.permute.xlu0 %1333
    %1335 = vrot.lane.b32.xlu0 %v934, 80
    %v1336 = vpop.permute.xlu0 %1335
    %1337 = vrot.lane.b32.xlu0 %v937, 80
    %v1338 = vpop.permute.xlu0 %1337
    %1339 = vrot.lane.b32.xlu0 %v940, 80
    %v1340 = vpop.permute.xlu0 %1339
    %1341 = vrot.lane.b32.xlu0 %v943, 80
    %v1342 = vpop.permute.xlu0 %1341
    %1343 = vrot.lane.b32.xlu0 %v946, 80
    %v1344 = vpop.permute.xlu0 %1343
    %1345 = vrot.lane.b32.xlu0 %v949, 80
    %v1346 = vpop.permute.xlu0 %1345
    %1347 = vrot.lane.b32.xlu0 %v952, 80
    %v1348 = vpop.permute.xlu0 %1347
    %1349 = vrot.lane.b32.xlu0 %v955, 80
    %v1350 = vpop.permute.xlu0 %1349
    %1351 = vrot.lane.b32.xlu0 %v958, 80
    %v1352 = vpop.permute.xlu0 %1351
    %1353 = vrot.lane.b32.xlu0 %v961, 80
    %v1354 = vpop.permute.xlu0 %1353
    %1355 = vrot.lane.b32.xlu0 %v964, 80
    %v1356 = vpop.permute.xlu0 %1355
    %1357 = vrot.lane.b32.xlu0 %v967, 80
    %v1358 = vpop.permute.xlu0 %1357
    %1359 = vrot.lane.b32.xlu0 %v970, 80
    %v1360 = vpop.permute.xlu0 %1359
    %1361 = vrot.lane.b32.xlu0 %v973, 80
    %v1362 = vpop.permute.xlu0 %1361
    %1363 = vrot.lane.b32.xlu0 %v976, 80
    %v1364 = vpop.permute.xlu0 %1363
    %1365 = vrot.lane.b32.xlu0 %v979, 80
    %v1366 = vpop.permute.xlu0 %1365
    %1367 = vrot.lane.b32.xlu0 %v981, 80
    %v1368 = vpop.permute.xlu0 %1367
    %1369 = vrot.lane.b32.xlu0 %v985, 80
    %v1370 = vpop.permute.xlu0 %1369
    %1371 = vrot.lane.b32.xlu0 %v652, 96
    %v1372 = vpop.permute.xlu0 %1371
    %1373 = vrot.lane.b32.xlu0 %v660, 96
    %v1374 = vpop.permute.xlu0 %1373
    %1375 = vrot.lane.b32.xlu0 %v668, 96
    %v1376 = vpop.permute.xlu0 %1375
    %1377 = vrot.lane.b32.xlu0 %v676, 96
    %v1378 = vpop.permute.xlu0 %1377
    %1379 = vrot.lane.b32.xlu0 %v684, 96
    %v1380 = vpop.permute.xlu0 %1379
    %1381 = vrot.lane.b32.xlu0 %v692, 96
    %v1382 = vpop.permute.xlu0 %1381
    %1383 = vrot.lane.b32.xlu0 %v700, 96
    %v1384 = vpop.permute.xlu0 %1383
    %1385 = vrot.lane.b32.xlu0 %v708, 96
    %v1386 = vpop.permute.xlu0 %1385
    %1387 = vrot.lane.b32.xlu0 %v716, 96
    %v1388 = vpop.permute.xlu0 %1387
    %1389 = vrot.lane.b32.xlu0 %v724, 96
    %v1390 = vpop.permute.xlu0 %1389
    %1391 = vrot.lane.b32.xlu0 %v732, 96
    %v1392 = vpop.permute.xlu0 %1391
    %1393 = vrot.lane.b32.xlu0 %v740, 96
    %v1394 = vpop.permute.xlu0 %1393
    %1395 = vrot.lane.b32.xlu0 %v748, 96
    %v1396 = vpop.permute.xlu0 %1395
    %1397 = vrot.lane.b32.xlu0 %v756, 96
    %v1398 = vpop.permute.xlu0 %1397
    %1399 = vrot.lane.b32.xlu0 %v764, 96
    %v1400 = vpop.permute.xlu0 %1399
    %1401 = vrot.lane.b32.xlu0 %v772, 96
    %v1402 = vpop.permute.xlu0 %1401
    %1403 = vrot.lane.b32.xlu0 %v780, 96
    %v1404 = vpop.permute.xlu0 %1403
    %1405 = vrot.lane.b32.xlu0 %v788, 96
    %v1406 = vpop.permute.xlu0 %1405
    %1407 = vrot.lane.b32.xlu0 %v796, 96
    %v1408 = vpop.permute.xlu0 %1407
    %1409 = vrot.lane.b32.xlu0 %v804, 96
    %v1410 = vpop.permute.xlu0 %1409
    %1411 = vrot.lane.b32.xlu0 %v812, 96
    %v1412 = vpop.permute.xlu0 %1411
    %1413 = vrot.lane.b32.xlu0 %v820, 96
    %v1414 = vpop.permute.xlu0 %1413
    %1415 = vrot.lane.b32.xlu0 %v828, 96
    %v1416 = vpop.permute.xlu0 %1415
    %1417 = vrot.lane.b32.xlu0 %v836, 96
    %v1418 = vpop.permute.xlu0 %1417
    %1419 = vrot.lane.b32.xlu0 %v844, 96
    %v1420 = vpop.permute.xlu0 %1419
    %1421 = vrot.lane.b32.xlu0 %v852, 96
    %v1422 = vpop.permute.xlu0 %1421
    %1423 = vrot.lane.b32.xlu0 %v860, 96
    %v1424 = vpop.permute.xlu0 %1423
    %1425 = vrot.lane.b32.xlu0 %v868, 96
    %v1426 = vpop.permute.xlu0 %1425
    %1427 = vrot.lane.b32.xlu0 %v876, 96
    %v1428 = vpop.permute.xlu0 %1427
    %1429 = vrot.lane.b32.xlu0 %v880, 96
    %v1430 = vpop.permute.xlu0 %1429
    %1431 = vrot.lane.b32.xlu0 %v636, 96
    %v1432 = vpop.permute.xlu0 %1431
    %1433 = vrot.lane.b32.xlu0 %v884, 96
    %v1434 = vpop.permute.xlu0 %1433
    %1435 = vrot.lane.b32.xlu0 %v593, 112
    %v1436 = vpop.permute.xlu0 %1435
    %1437 = vrot.lane.b32.xlu0 %v594, 112
    %v1438 = vpop.permute.xlu0 %1437
    %1439 = vrot.lane.b32.xlu0 %v595, 112
    %v1440 = vpop.permute.xlu0 %1439
    %1441 = vrot.lane.b32.xlu0 %v596, 112
    %v1442 = vpop.permute.xlu0 %1441
    %1443 = vrot.lane.b32.xlu0 %v597, 112
    %v1444 = vpop.permute.xlu0 %1443
    %1445 = vrot.lane.b32.xlu0 %v598, 112
    %v1446 = vpop.permute.xlu0 %1445
    %1447 = vrot.lane.b32.xlu0 %v599, 112
    %v1448 = vpop.permute.xlu0 %1447
    %1449 = vrot.lane.b32.xlu0 %v600, 112
    %v1450 = vpop.permute.xlu0 %1449
    %1451 = vrot.lane.b32.xlu0 %v601, 112
    %v1452 = vpop.permute.xlu0 %1451
    %1453 = vrot.lane.b32.xlu0 %v602, 112
    %v1454 = vpop.permute.xlu0 %1453
    %1455 = vrot.lane.b32.xlu0 %v603, 112
    %v1456 = vpop.permute.xlu0 %1455
    %1457 = vrot.lane.b32.xlu0 %v604, 112
    %v1458 = vpop.permute.xlu0 %1457
    %1459 = vrot.lane.b32.xlu0 %v605, 112
    %v1460 = vpop.permute.xlu0 %1459
    %1461 = vrot.lane.b32.xlu0 %v606, 112
    %v1462 = vpop.permute.xlu0 %1461
    %1463 = vrot.lane.b32.xlu0 %v607, 112
    %v1464 = vpop.permute.xlu0 %1463
    %1465 = vrot.lane.b32.xlu0 %v608, 112
    %v1466 = vpop.permute.xlu0 %1465
    %1467 = vrot.lane.b32.xlu0 %v609, 112
    %v1468 = vpop.permute.xlu0 %1467
    %1469 = vrot.lane.b32.xlu0 %v610, 112
    %v1470 = vpop.permute.xlu0 %1469
    %1471 = vrot.lane.b32.xlu0 %v611, 112
    %v1472 = vpop.permute.xlu0 %1471
    %1473 = vrot.lane.b32.xlu0 %v612, 112
    %v1474 = vpop.permute.xlu0 %1473
    %1475 = vrot.lane.b32.xlu0 %v613, 112
    %v1476 = vpop.permute.xlu0 %1475
    %1477 = vrot.lane.b32.xlu0 %v614, 112
    %v1478 = vpop.permute.xlu0 %1477
    %1479 = vrot.lane.b32.xlu0 %v615, 112
    %v1480 = vpop.permute.xlu0 %1479
    %1481 = vrot.lane.b32.xlu0 %v616, 112
    %v1482 = vpop.permute.xlu0 %1481
    %1483 = vrot.lane.b32.xlu0 %v617, 112
    %v1484 = vpop.permute.xlu0 %1483
    %1485 = vrot.lane.b32.xlu0 %v618, 112
    %v1486 = vpop.permute.xlu0 %1485
    %1487 = vrot.lane.b32.xlu0 %v619, 112
    %v1488 = vpop.permute.xlu0 %1487
    %1489 = vrot.lane.b32.xlu0 %v620, 112
    %v1490 = vpop.permute.xlu0 %1489
    %1491 = vrot.lane.b32.xlu0 %v621, 112
    %v1492 = vpop.permute.xlu0 %1491
    %1493 = vrot.lane.b32.xlu0 %v622, 112
    %v1494 = vpop.permute.xlu0 %1493
    %1495 = vrot.lane.b32.xlu0 %v623, 112
    %v1496 = vpop.permute.xlu0 %1495
    %1497 = vrot.lane.b32.xlu0 %v592, 112
    %v1498 = vpop.permute.xlu0 %1497
    %vm1499 = vcmask 130048
    %v1502 = vsel %vm1499, %v636, %v1050
    %v1505 = vsel %vm1499, %v884, %v1052
    %v1508 = vsel %vm1499, %v652, %v1054
    %v1511 = vsel %vm1499, %v660, %v1056
    %v1514 = vsel %vm1499, %v668, %v1058
    %v1517 = vsel %vm1499, %v676, %v1060
    %v1520 = vsel %vm1499, %v684, %v1062
    %v1523 = vsel %vm1499, %v692, %v1064
    %v1526 = vsel %vm1499, %v700, %v1066
    %v1529 = vsel %vm1499, %v708, %v1068
    %v1532 = vsel %vm1499, %v716, %v1070
    %v1535 = vsel %vm1499, %v724, %v1072
    %v1538 = vsel %vm1499, %v732, %v1074
    %v1541 = vsel %vm1499, %v740, %v1076
    %v1544 = vsel %vm1499, %v748, %v1078
    %v1547 = vsel %vm1499, %v756, %v1080
    %v1550 = vsel %vm1499, %v764, %v1082
    %v1553 = vsel %vm1499, %v772, %v1084
    %v1556 = vsel %vm1499, %v780, %v1086
    %v1559 = vsel %vm1499, %v788, %v1088
    %v1562 = vsel %vm1499, %v796, %v1090
    %v1565 = vsel %vm1499, %v804, %v1092
    %v1568 = vsel %vm1499, %v812, %v1094
    %v1571 = vsel %vm1499, %v820, %v1096
    %v1574 = vsel %vm1499, %v828, %v1098
    %v1577 = vsel %vm1499, %v836, %v1100
    %v1580 = vsel %vm1499, %v844, %v1102
    %v1583 = vsel %vm1499, %v852, %v1104
    %v1586 = vsel %vm1499, %v860, %v1106
    %v1589 = vsel %vm1499, %v868, %v1108
    %v1592 = vsel %vm1499, %v876, %v1110
    %v1595 = vsel %vm1499, %v880, %v1112
    %vm1596 = vcmask 261120
    %v1598 = vsel %vm1596, %v1502, %v1115
    %v1600 = vsel %vm1596, %v1505, %v1117
    %v1602 = vsel %vm1596, %v1508, %v1119
    %v1604 = vsel %vm1596, %v1511, %v1121
    %v1606 = vsel %vm1596, %v1514, %v1123
    %v1608 = vsel %vm1596, %v1517, %v1125
    %v1610 = vsel %vm1596, %v1520, %v1127
    %v1612 = vsel %vm1596, %v1523, %v1129
    %v1614 = vsel %vm1596, %v1526, %v1131
    %v1616 = vsel %vm1596, %v1529, %v1133
    %v1618 = vsel %vm1596, %v1532, %v1135
    %v1620 = vsel %vm1596, %v1535, %v1137
    %v1622 = vsel %vm1596, %v1538, %v1139
    %v1624 = vsel %vm1596, %v1541, %v1141
    %v1626 = vsel %vm1596, %v1544, %v1143
    %v1628 = vsel %vm1596, %v1547, %v1145
    %v1630 = vsel %vm1596, %v1550, %v1147
    %v1632 = vsel %vm1596, %v1553, %v1149
    %v1634 = vsel %vm1596, %v1556, %v1151
    %v1636 = vsel %vm1596, %v1559, %v1153
    %v1638 = vsel %vm1596, %v1562, %v1155
    %v1640 = vsel %vm1596, %v1565, %v1157
    %v1642 = vsel %vm1596, %v1568, %v1159
    %v1644 = vsel %vm1596, %v1571, %v1161
    %v1646 = vsel %vm1596, %v1574, %v1163
    %v1648 = vsel %vm1596, %v1577, %v1165
    %v1650 = vsel %vm1596, %v1580, %v1167
    %v1652 = vsel %vm1596, %v1583, %v1169
    %v1654 = vsel %vm1596, %v1586, %v1171
    %v1656 = vsel %vm1596, %v1589, %v1173
    %v1658 = vsel %vm1596, %v1592, %v1175
    %v1660 = vsel %vm1596, %v1595, %v1177
    %vm1661 = vcmask 392192
    %v1663 = vsel %vm1661, %v1598, %v1180
    %v1665 = vsel %vm1661, %v1600, %v1182
    %v1667 = vsel %vm1661, %v1602, %v1184
    %v1669 = vsel %vm1661, %v1604, %v1186
    %v1671 = vsel %vm1661, %v1606, %v1188
    %v1673 = vsel %vm1661, %v1608, %v1190
    %v1675 = vsel %vm1661, %v1610, %v1192
    %v1677 = vsel %vm1661, %v1612, %v1194
    %v1679 = vsel %vm1661, %v1614, %v1196
    %v1681 = vsel %vm1661, %v1616, %v1198
    %v1683 = vsel %vm1661, %v1618, %v1200
    %v1685 = vsel %vm1661, %v1620, %v1202
    %v1687 = vsel %vm1661, %v1622, %v1204
    %v1689 = vsel %vm1661, %v1624, %v1206
    %v1691 = vsel %vm1661, %v1626, %v1208
    %v1693 = vsel %vm1661, %v1628, %v1210
    %v1695 = vsel %vm1661, %v1630, %v1212
    %v1697 = vsel %vm1661, %v1632, %v1214
    %v1699 = vsel %vm1661, %v1634, %v1216
    %v1701 = vsel %vm1661, %v1636, %v1218
    %v1703 = vsel %vm1661, %v1638, %v1220
    %v1705 = vsel %vm1661, %v1640, %v1222
    %v1707 = vsel %vm1661, %v1642, %v1224
    %v1709 = vsel %vm1661, %v1644, %v1226
    %v1711 = vsel %vm1661, %v1646, %v1228
    %v1713 = vsel %vm1661, %v1648, %v1230
    %v1715 = vsel %vm1661, %v1650, %v1232
    %v1717 = vsel %vm1661, %v1652, %v1234
    %v1719 = vsel %vm1661, %v1654, %v1236
    %v1721 = vsel %vm1661, %v1656, %v1238
    %v1723 = vsel %vm1661, %v1658, %v1240
    %v1725 = vsel %vm1661, %v1660, %v1242
    %vm1726 = vcmask 523264
    %v1728 = vsel %vm1726, %v1663, %v1244
    %v1730 = vsel %vm1726, %v1665, %v1246
    %v1732 = vsel %vm1726, %v1667, %v1248
    %v1734 = vsel %vm1726, %v1669, %v1250
    %v1736 = vsel %vm1726, %v1671, %v1252
    %v1738 = vsel %vm1726, %v1673, %v1254
    %v1740 = vsel %vm1726, %v1675, %v1256
    %v1742 = vsel %vm1726, %v1677, %v1258
    %v1744 = vsel %vm1726, %v1679, %v1260
    %v1746 = vsel %vm1726, %v1681, %v1262
    %v1748 = vsel %vm1726, %v1683, %v1264
    %v1750 = vsel %vm1726, %v1685, %v1266
    %v1752 = vsel %vm1726, %v1687, %v1268
    %v1754 = vsel %vm1726, %v1689, %v1270
    %v1756 = vsel %vm1726, %v1691, %v1272
    %v1758 = vsel %vm1726, %v1693, %v1274
    %v1760 = vsel %vm1726, %v1695, %v1276
    %v1762 = vsel %vm1726, %v1697, %v1278
    %v1764 = vsel %vm1726, %v1699, %v1280
    %v1766 = vsel %vm1726, %v1701, %v1282
    %v1768 = vsel %vm1726, %v1703, %v1284
    %v1770 = vsel %vm1726, %v1705, %v1286
    %v1772 = vsel %vm1726, %v1707, %v1288
    %v1774 = vsel %vm1726, %v1709, %v1290
    %v1776 = vsel %vm1726, %v1711, %v1292
    %v1778 = vsel %vm1726, %v1713, %v1294
    %v1780 = vsel %vm1726, %v1715, %v1296
    %v1782 = vsel %vm1726, %v1717, %v1298
    %v1784 = vsel %vm1726, %v1719, %v1300
    %v1786 = vsel %vm1726, %v1721, %v1302
    %v1788 = vsel %vm1726, %v1723, %v1304
    %v1790 = vsel %vm1726, %v1725, %v1306
    %vm1791 = vcmask 654336
    %v1793 = vsel %vm1791, %v1728, %v1308
    %v1795 = vsel %vm1791, %v1730, %v1310
    %v1797 = vsel %vm1791, %v1732, %v1312
    %v1799 = vsel %vm1791, %v1734, %v1314
    %v1801 = vsel %vm1791, %v1736, %v1316
    %v1803 = vsel %vm1791, %v1738, %v1318
    %v1805 = vsel %vm1791, %v1740, %v1320
    %v1807 = vsel %vm1791, %v1742, %v1322
    %v1809 = vsel %vm1791, %v1744, %v1324
    %v1811 = vsel %vm1791, %v1746, %v1326
    %v1813 = vsel %vm1791, %v1748, %v1328
    %v1815 = vsel %vm1791, %v1750, %v1330
    %v1817 = vsel %vm1791, %v1752, %v1332
    %v1819 = vsel %vm1791, %v1754, %v1334
    %v1821 = vsel %vm1791, %v1756, %v1336
    %v1823 = vsel %vm1791, %v1758, %v1338
    %v1825 = vsel %vm1791, %v1760, %v1340
    %v1827 = vsel %vm1791, %v1762, %v1342
    %v1829 = vsel %vm1791, %v1764, %v1344
    %v1831 = vsel %vm1791, %v1766, %v1346
    %v1833 = vsel %vm1791, %v1768, %v1348
    %v1835 = vsel %vm1791, %v1770, %v1350
    %v1837 = vsel %vm1791, %v1772, %v1352
    %v1839 = vsel %vm1791, %v1774, %v1354
    %v1841 = vsel %vm1791, %v1776, %v1356
    %v1843 = vsel %vm1791, %v1778, %v1358
    %v1845 = vsel %vm1791, %v1780, %v1360
    %v1847 = vsel %vm1791, %v1782, %v1362
    %v1849 = vsel %vm1791, %v1784, %v1364
    %v1851 = vsel %vm1791, %v1786, %v1366
    %v1853 = vsel %vm1791, %v1788, %v1368
    %v1855 = vsel %vm1791, %v1790, %v1370
    %vm1856 = vcmask 785408
    %v1858 = vsel %vm1856, %v1793, %v1372
    %v1860 = vsel %vm1856, %v1795, %v1374
    %v1862 = vsel %vm1856, %v1797, %v1376
    %v1864 = vsel %vm1856, %v1799, %v1378
    %v1866 = vsel %vm1856, %v1801, %v1380
    %v1868 = vsel %vm1856, %v1803, %v1382
    %v1870 = vsel %vm1856, %v1805, %v1384
    %v1872 = vsel %vm1856, %v1807, %v1386
    %v1874 = vsel %vm1856, %v1809, %v1388
    %v1876 = vsel %vm1856, %v1811, %v1390
    %v1878 = vsel %vm1856, %v1813, %v1392
    %v1880 = vsel %vm1856, %v1815, %v1394
    %v1882 = vsel %vm1856, %v1817, %v1396
    %v1884 = vsel %vm1856, %v1819, %v1398
    %v1886 = vsel %vm1856, %v1821, %v1400
    %v1888 = vsel %vm1856, %v1823, %v1402
    %v1890 = vsel %vm1856, %v1825, %v1404
    %v1892 = vsel %vm1856, %v1827, %v1406
    %v1894 = vsel %vm1856, %v1829, %v1408
    %v1896 = vsel %vm1856, %v1831, %v1410
    %v1898 = vsel %vm1856, %v1833, %v1412
    %v1900 = vsel %vm1856, %v1835, %v1414
    %v1902 = vsel %vm1856, %v1837, %v1416
    %v1904 = vsel %vm1856, %v1839, %v1418
    %v1906 = vsel %vm1856, %v1841, %v1420
    %v1908 = vsel %vm1856, %v1843, %v1422
    %v1910 = vsel %vm1856, %v1845, %v1424
    %v1912 = vsel %vm1856, %v1847, %v1426
    %v1914 = vsel %vm1856, %v1849, %v1428
    %v1916 = vsel %vm1856, %v1851, %v1430
    %v1918 = vsel %vm1856, %v1853, %v1432
    %v1920 = vsel %vm1856, %v1855, %v1434
    %vm1921 = vcmask 916480
    %v1923 = vsel %vm1921, %v1858, %v1436
    %v1926 = vsel %vm1921, %v1860, %v1438
    %v1929 = vsel %vm1921, %v1862, %v1440
    %v1932 = vsel %vm1921, %v1864, %v1442
    %v1935 = vsel %vm1921, %v1866, %v1444
    %v1938 = vsel %vm1921, %v1868, %v1446
    %v1941 = vsel %vm1921, %v1870, %v1448
    %v1944 = vsel %vm1921, %v1872, %v1450
    %v1947 = vsel %vm1921, %v1874, %v1452
    %v1950 = vsel %vm1921, %v1876, %v1454
    %v1953 = vsel %vm1921, %v1878, %v1456
    %v1956 = vsel %vm1921, %v1880, %v1458
    %v1959 = vsel %vm1921, %v1882, %v1460
    %v1962 = vsel %vm1921, %v1884, %v1462
    %v1965 = vsel %vm1921, %v1886, %v1464
    %v1968 = vsel %vm1921, %v1888, %v1466
    %v1971 = vsel %vm1921, %v1890, %v1468
    %v1974 = vsel %vm1921, %v1892, %v1470
    %v1977 = vsel %vm1921, %v1894, %v1472
    %v1980 = vsel %vm1921, %v1896, %v1474
    %v1983 = vsel %vm1921, %v1898, %v1476
    %v1986 = vsel %vm1921, %v1900, %v1478
    %v1989 = vsel %vm1921, %v1902, %v1480
    %v1992 = vsel %vm1921, %v1904, %v1482
    %v1995 = vsel %vm1921, %v1906, %v1484
    %v1998 = vsel %vm1921, %v1908, %v1486
    %v2001 = vsel %vm1921, %v1910, %v1488
    %v2004 = vsel %vm1921, %v1912, %v1490
    %v2007 = vsel %vm1921, %v1914, %v1492
    %v2010 = vsel %vm1921, %v1916, %v1494
    %v2013 = vsel %vm1921, %v1918, %v1496
    %v2016 = vsel %vm1921, %v1920, %v1498
    %v2082 = vunpack.c.l.b16 %v528
    %v2083 = vunpack.c.h.b16 %v528
    %v2084 = vunpack.c.l.b16 %v529
    %v2085 = vunpack.c.h.b16 %v529
    %v2086 = vunpack.c.l.b16 %v530
    %v2087 = vunpack.c.h.b16 %v530
    %v2088 = vunpack.c.l.b16 %v531
    %v2089 = vunpack.c.h.b16 %v531
    %v2090 = vunpack.c.l.b16 %v532
    %v2091 = vunpack.c.h.b16 %v532
    %v2092 = vunpack.c.l.b16 %v533
    %v2093 = vunpack.c.h.b16 %v533
    %v2094 = vunpack.c.l.b16 %v534
    %v2095 = vunpack.c.h.b16 %v534
    %v2096 = vunpack.c.l.b16 %v535
    %v2097 = vunpack.c.h.b16 %v535
    %v2098 = vunpack.c.l.b16 %v536
    %v2099 = vunpack.c.h.b16 %v536
    %v2100 = vunpack.c.l.b16 %v537
    %v2101 = vunpack.c.h.b16 %v537
    %v2102 = vunpack.c.l.b16 %v538
    %v2103 = vunpack.c.h.b16 %v538
    %v2104 = vunpack.c.l.b16 %v539
    %v2105 = vunpack.c.h.b16 %v539
    %v2106 = vunpack.c.l.b16 %v540
    %v2107 = vunpack.c.h.b16 %v540
    %v2108 = vunpack.c.l.b16 %v541
    %v2109 = vunpack.c.h.b16 %v541
    %v2110 = vunpack.c.l.b16 %v542
    %v2111 = vunpack.c.h.b16 %v542
    %v2112 = vunpack.c.l.b16 %v543
    %v2113 = vunpack.c.h.b16 %v543
    %v2114 = vunpack.c.l.b16 %v544
    %v2115 = vunpack.c.h.b16 %v544
    %v2116 = vunpack.c.l.b16 %v545
    %v2117 = vunpack.c.h.b16 %v545
    %v2118 = vunpack.c.l.b16 %v546
    %v2119 = vunpack.c.h.b16 %v546
    %v2120 = vunpack.c.l.b16 %v547
    %v2121 = vunpack.c.h.b16 %v547
    %v2122 = vunpack.c.l.b16 %v548
    %v2123 = vunpack.c.h.b16 %v548
    %v2124 = vunpack.c.l.b16 %v549
    %v2125 = vunpack.c.h.b16 %v549
    %v2126 = vunpack.c.l.b16 %v550
    %v2127 = vunpack.c.h.b16 %v550
    %v2128 = vunpack.c.l.b16 %v551
    %v2129 = vunpack.c.h.b16 %v551
    %v2130 = vunpack.c.l.b16 %v552
    %v2131 = vunpack.c.h.b16 %v552
    %v2132 = vunpack.c.l.b16 %v553
    %v2133 = vunpack.c.h.b16 %v553
    %v2134 = vunpack.c.l.b16 %v554
    %v2135 = vunpack.c.h.b16 %v554
    %v2136 = vunpack.c.l.b16 %v555
    %v2137 = vunpack.c.h.b16 %v555
    %v2138 = vunpack.c.l.b16 %v556
    %v2139 = vunpack.c.h.b16 %v556
    %v2140 = vunpack.c.l.b16 %v557
    %v2141 = vunpack.c.h.b16 %v557
    %v2142 = vunpack.c.l.b16 %v558
    %v2143 = vunpack.c.h.b16 %v558
    %v2144 = vunpack.c.l.b16 %v559
    %v2145 = vunpack.c.h.b16 %v559
    %v2146 = vunpack.c.l.b16 %v560
    %v2147 = vunpack.c.h.b16 %v560
    %v2148 = vunpack.c.l.b16 %v561
    %v2149 = vunpack.c.h.b16 %v561
    %v2150 = vunpack.c.l.b16 %v562
    %v2151 = vunpack.c.h.b16 %v562
    %v2152 = vunpack.c.l.b16 %v563
    %v2153 = vunpack.c.h.b16 %v563
    %v2154 = vunpack.c.l.b16 %v564
    %v2155 = vunpack.c.h.b16 %v564
    %v2156 = vunpack.c.l.b16 %v565
    %v2157 = vunpack.c.h.b16 %v565
    %v2158 = vunpack.c.l.b16 %v566
    %v2159 = vunpack.c.h.b16 %v566
    %v2160 = vunpack.c.l.b16 %v567
    %v2161 = vunpack.c.h.b16 %v567
    %v2162 = vunpack.c.l.b16 %v568
    %v2163 = vunpack.c.h.b16 %v568
    %v2164 = vunpack.c.l.b16 %v569
    %v2165 = vunpack.c.h.b16 %v569
    %v2166 = vunpack.c.l.b16 %v570
    %v2167 = vunpack.c.h.b16 %v570
    %v2168 = vunpack.c.l.b16 %v571
    %v2169 = vunpack.c.h.b16 %v571
    %v2170 = vunpack.c.l.b16 %v572
    %v2171 = vunpack.c.h.b16 %v572
    %v2172 = vunpack.c.l.b16 %v573
    %v2173 = vunpack.c.h.b16 %v573
    %v2174 = vunpack.c.l.b16 %v574
    %v2175 = vunpack.c.h.b16 %v574
    %v2176 = vunpack.c.l.b16 %v575
    %v2177 = vunpack.c.h.b16 %v575
    %v2178 = vunpack.c.l.b16 %v576
    %v2179 = vunpack.c.h.b16 %v576
    %v2180 = vunpack.c.l.b16 %v577
    %v2181 = vunpack.c.h.b16 %v577
    %v2182 = vunpack.c.l.b16 %v578
    %v2183 = vunpack.c.h.b16 %v578
    %v2184 = vunpack.c.l.b16 %v579
    %v2185 = vunpack.c.h.b16 %v579
    %v2186 = vunpack.c.l.b16 %v580
    %v2187 = vunpack.c.h.b16 %v580
    %v2188 = vunpack.c.l.b16 %v581
    %v2189 = vunpack.c.h.b16 %v581
    %v2190 = vunpack.c.l.b16 %v582
    %v2191 = vunpack.c.h.b16 %v582
    %v2192 = vunpack.c.l.b16 %v583
    %v2193 = vunpack.c.h.b16 %v583
    %v2194 = vunpack.c.l.b16 %v584
    %v2195 = vunpack.c.h.b16 %v584
    %v2196 = vunpack.c.l.b16 %v585
    %v2197 = vunpack.c.h.b16 %v585
    %v2198 = vunpack.c.l.b16 %v586
    %v2199 = vunpack.c.h.b16 %v586
    %v2200 = vunpack.c.l.b16 %v587
    %v2201 = vunpack.c.h.b16 %v587
    %v2202 = vunpack.c.l.b16 %v588
    %v2203 = vunpack.c.h.b16 %v588
    %v2204 = vunpack.c.l.b16 %v589
    %v2205 = vunpack.c.h.b16 %v589
    %v2206 = vunpack.c.l.b16 %v590
    %v2207 = vunpack.c.h.b16 %v590
    %v2208 = vunpack.c.l.b16 %v591
    %v2209 = vunpack.c.h.b16 %v591
    %v2210 = vpack.c.b16 %v2084, %v2082
    %v2211 = vpack.c.b16 %v2085, %v2083
    %v2212 = vpack.c.b16 %v2088, %v2086
    %v2213 = vpack.c.b16 %v2089, %v2087
    %v2214 = vpack.c.b16 %v2092, %v2090
    %v2215 = vpack.c.b16 %v2093, %v2091
    %v2216 = vpack.c.b16 %v2096, %v2094
    %v2217 = vpack.c.b16 %v2097, %v2095
    %v2218 = vpack.c.b16 %v2100, %v2098
    %v2219 = vpack.c.b16 %v2101, %v2099
    %v2220 = vpack.c.b16 %v2104, %v2102
    %v2221 = vpack.c.b16 %v2105, %v2103
    %v2222 = vpack.c.b16 %v2108, %v2106
    %v2223 = vpack.c.b16 %v2109, %v2107
    %v2224 = vpack.c.b16 %v2112, %v2110
    %v2225 = vpack.c.b16 %v2113, %v2111
    %v2226 = vpack.c.b16 %v2116, %v2114
    %v2227 = vpack.c.b16 %v2117, %v2115
    %v2228 = vpack.c.b16 %v2120, %v2118
    %v2229 = vpack.c.b16 %v2121, %v2119
    %v2230 = vpack.c.b16 %v2124, %v2122
    %v2231 = vpack.c.b16 %v2125, %v2123
    %v2232 = vpack.c.b16 %v2128, %v2126
    %v2233 = vpack.c.b16 %v2129, %v2127
    %v2234 = vpack.c.b16 %v2132, %v2130
    %v2235 = vpack.c.b16 %v2133, %v2131
    %v2236 = vpack.c.b16 %v2136, %v2134
    %v2237 = vpack.c.b16 %v2137, %v2135
    %v2238 = vpack.c.b16 %v2140, %v2138
    %v2239 = vpack.c.b16 %v2141, %v2139
    %v2240 = vpack.c.b16 %v2144, %v2142
    %v2241 = vpack.c.b16 %v2145, %v2143
    %v2242 = vpack.c.b16 %v2148, %v2146
    %v2243 = vpack.c.b16 %v2149, %v2147
    %v2244 = vpack.c.b16 %v2152, %v2150
    %v2245 = vpack.c.b16 %v2153, %v2151
    %v2246 = vpack.c.b16 %v2156, %v2154
    %v2247 = vpack.c.b16 %v2157, %v2155
    %v2248 = vpack.c.b16 %v2160, %v2158
    %v2249 = vpack.c.b16 %v2161, %v2159
    %v2250 = vpack.c.b16 %v2164, %v2162
    %v2251 = vpack.c.b16 %v2165, %v2163
    %v2252 = vpack.c.b16 %v2168, %v2166
    %v2253 = vpack.c.b16 %v2169, %v2167
    %v2254 = vpack.c.b16 %v2172, %v2170
    %v2255 = vpack.c.b16 %v2173, %v2171
    %v2256 = vpack.c.b16 %v2176, %v2174
    %v2257 = vpack.c.b16 %v2177, %v2175
    %v2258 = vpack.c.b16 %v2180, %v2178
    %v2259 = vpack.c.b16 %v2181, %v2179
    %v2260 = vpack.c.b16 %v2184, %v2182
    %v2261 = vpack.c.b16 %v2185, %v2183
    %v2262 = vpack.c.b16 %v2188, %v2186
    %v2263 = vpack.c.b16 %v2189, %v2187
    %v2264 = vpack.c.b16 %v2192, %v2190
    %v2265 = vpack.c.b16 %v2193, %v2191
    %v2266 = vpack.c.b16 %v2196, %v2194
    %v2267 = vpack.c.b16 %v2197, %v2195
    %v2268 = vpack.c.b16 %v2200, %v2198
    %v2269 = vpack.c.b16 %v2201, %v2199
    %v2270 = vpack.c.b16 %v2204, %v2202
    %v2271 = vpack.c.b16 %v2205, %v2203
    %v2272 = vpack.c.b16 %v2208, %v2206
    %v2273 = vpack.c.b16 %v2209, %v2207
    %v2338 = vmul.bf16 %v1923, %v2210
    %v2339 = vmul.bf16 %v895, %v2211
    %v2340 = vmul.bf16 %v1926, %v2212
    %v2341 = vmul.bf16 %v898, %v2213
    %v2342 = vmul.bf16 %v1929, %v2214
    %v2343 = vmul.bf16 %v901, %v2215
    %v2344 = vmul.bf16 %v1932, %v2216
    %v2345 = vmul.bf16 %v904, %v2217
    %v2346 = vmul.bf16 %v1935, %v2218
    %v2347 = vmul.bf16 %v907, %v2219
    %v2348 = vmul.bf16 %v1938, %v2220
    %v2349 = vmul.bf16 %v910, %v2221
    %v2350 = vmul.bf16 %v1941, %v2222
    %v2351 = vmul.bf16 %v913, %v2223
    %v2352 = vmul.bf16 %v1944, %v2224
    %v2353 = vmul.bf16 %v916, %v2225
    %v2354 = vmul.bf16 %v1947, %v2226
    %v2355 = vmul.bf16 %v919, %v2227
    %v2356 = vmul.bf16 %v1950, %v2228
    %v2357 = vmul.bf16 %v922, %v2229
    %v2358 = vmul.bf16 %v1953, %v2230
    %v2359 = vmul.bf16 %v925, %v2231
    %v2360 = vmul.bf16 %v1956, %v2232
    %v2361 = vmul.bf16 %v928, %v2233
    %v2362 = vmul.bf16 %v1959, %v2234
    %v2363 = vmul.bf16 %v931, %v2235
    %v2364 = vmul.bf16 %v1962, %v2236
    %v2365 = vmul.bf16 %v934, %v2237
    %v2366 = vmul.bf16 %v1965, %v2238
    %v2367 = vmul.bf16 %v937, %v2239
    %v2368 = vmul.bf16 %v1968, %v2240
    %v2369 = vmul.bf16 %v940, %v2241
    %v2370 = vmul.bf16 %v1971, %v2242
    %v2371 = vmul.bf16 %v943, %v2243
    %v2372 = vmul.bf16 %v1974, %v2244
    %v2373 = vmul.bf16 %v946, %v2245
    %v2374 = vmul.bf16 %v1977, %v2246
    %v2375 = vmul.bf16 %v949, %v2247
    %v2376 = vmul.bf16 %v1980, %v2248
    %v2377 = vmul.bf16 %v952, %v2249
    %v2378 = vmul.bf16 %v1983, %v2250
    %v2379 = vmul.bf16 %v955, %v2251
    %v2380 = vmul.bf16 %v1986, %v2252
    %v2381 = vmul.bf16 %v958, %v2253
    %v2382 = vmul.bf16 %v1989, %v2254
    %v2383 = vmul.bf16 %v961, %v2255
    %v2384 = vmul.bf16 %v1992, %v2256
    %v2385 = vmul.bf16 %v964, %v2257
    %v2386 = vmul.bf16 %v1995, %v2258
    %v2387 = vmul.bf16 %v967, %v2259
    %v2388 = vmul.bf16 %v1998, %v2260
    %v2389 = vmul.bf16 %v970, %v2261
    %v2390 = vmul.bf16 %v2001, %v2262
    %v2391 = vmul.bf16 %v973, %v2263
    %v2392 = vmul.bf16 %v2004, %v2264
    %v2393 = vmul.bf16 %v976, %v2265
    %v2394 = vmul.bf16 %v2007, %v2266
    %v2395 = vmul.bf16 %v979, %v2267
    %v2396 = vmul.bf16 %v2010, %v2268
    %v2397 = vmul.bf16 %v981, %v2269
    %v2398 = vmul.bf16 %v2013, %v2270
    %v2399 = vmul.bf16 %v985, %v2271
    %v2400 = vmul.bf16 %v2016, %v2272
    %v2401 = vmul.bf16 %v892, %v2273
    %v2402 = vld [vmem:[%s3] sm:$0xf]
    %v2403 = vld [vmem:[%s3 + $0x4] sm:$0xf]
    %v2404 = vld [vmem:[%s3 + $0x8] sm:$0xf]
    %v2405 = vld [vmem:[%s3 + $0xc] sm:$0xf]
    %v2406 = vld [vmem:[%s3 + $0x10] sm:$0xf]
    %v2407 = vld [vmem:[%s3 + $0x14] sm:$0xf]
    %v2408 = vld [vmem:[%s3 + $0x18] sm:$0xf]
    %v2409 = vld [vmem:[%s3 + $0x1c] sm:$0xf]
    %v2410 = vld [vmem:[%s3 + $0x20] sm:$0xf]
    %v2411 = vld [vmem:[%s3 + $0x24] sm:$0xf]
    %v2412 = vld [vmem:[%s3 + $0x28] sm:$0xf]
    %v2413 = vld [vmem:[%s3 + $0x2c] sm:$0xf]
    %v2414 = vld [vmem:[%s3 + $0x30] sm:$0xf]
    %v2415 = vld [vmem:[%s3 + $0x34] sm:$0xf]
    %v2416 = vld [vmem:[%s3 + $0x38] sm:$0xf]
    %v2417 = vld [vmem:[%s3 + $0x3c] sm:$0xf]
    %v2418 = vld [vmem:[%s3 + $0x40] sm:$0xf]
    %v2419 = vld [vmem:[%s3 + $0x44] sm:$0xf]
    %v2420 = vld [vmem:[%s4] sm:$0x1]
    %v2422 = vlaneseq
    %v2423 = vshrl.u32 %v2422, 7
    %v2424 = vsub.s32 0, %v2423
    %v2425 = vrot.slane %v2420, %v2424
    %v2445 = vunpack.c.l.b16 %v2402
    %v2446 = vunpack.c.l.b16 %v2403
    %v2447 = vunpack.c.l.b16 %v2404
    %v2448 = vunpack.c.l.b16 %v2405
    %v2449 = vunpack.c.l.b16 %v2406
    %v2450 = vunpack.c.l.b16 %v2407
    %v2451 = vunpack.c.l.b16 %v2408
    %v2452 = vunpack.c.l.b16 %v2409
    %v2453 = vunpack.c.l.b16 %v2410
    %v2454 = vunpack.c.l.b16 %v2411
    %v2455 = vunpack.c.l.b16 %v2412
    %v2456 = vunpack.c.l.b16 %v2413
    %v2457 = vunpack.c.l.b16 %v2414
    %v2458 = vunpack.c.l.b16 %v2415
    %v2459 = vunpack.c.l.b16 %v2416
    %v2460 = vunpack.c.l.b16 %v2417
    %v2461 = vunpack.c.l.b16 %v2418
    %v2462 = vunpack.c.l.b16 %v2419
    %v2463 = vpack.c.b16 %v2446, %v2445
    %v2464 = vpack.c.b16 %v2448, %v2447
    %v2465 = vpack.c.b16 %v2450, %v2449
    %v2466 = vpack.c.b16 %v2452, %v2451
    %v2467 = vpack.c.b16 %v2454, %v2453
    %v2468 = vpack.c.b16 %v2456, %v2455
    %v2469 = vpack.c.b16 %v2458, %v2457
    %v2470 = vpack.c.b16 %v2460, %v2459
    %v2471 = vpack.c.b16 %v2462, %v2461
    %v2482 = vsel %vm1499, %v2339, 0
    %v2485 = vsel %vm1499, %v2341, 0
    %v2488 = vsel %vm1499, %v2343, 0
    %v2491 = vsel %vm1499, %v2345, 0
    %v2494 = vsel %vm1499, %v2347, 0
    %v2497 = vsel %vm1499, %v2349, 0
    %v2500 = vsel %vm1499, %v2351, 0
    %v2503 = vsel %vm1499, %v2353, 0
    %v2506 = vsel %vm1499, %v2355, 0
    %v2509 = vsel %vm1499, %v2357, 0
    %v2512 = vsel %vm1499, %v2359, 0
    %v2515 = vsel %vm1499, %v2361, 0
    %v2518 = vsel %vm1499, %v2363, 0
    %v2521 = vsel %vm1499, %v2365, 0
    %v2524 = vsel %vm1499, %v2367, 0
    %v2527 = vsel %vm1499, %v2369, 0
    %v2530 = vsel %vm1499, %v2371, 0
    %v2533 = vsel %vm1499, %v2373, 0
    %v2536 = vsel %vm1499, %v2375, 0
    %v2539 = vsel %vm1499, %v2377, 0
    %v2542 = vsel %vm1499, %v2379, 0
    %v2545 = vsel %vm1499, %v2381, 0
    %v2548 = vsel %vm1499, %v2383, 0
    %v2551 = vsel %vm1499, %v2385, 0
    %v2554 = vsel %vm1499, %v2387, 0
    %v2557 = vsel %vm1499, %v2389, 0
    %v2560 = vsel %vm1499, %v2391, 0
    %v2563 = vsel %vm1499, %v2393, 0
    %v2566 = vsel %vm1499, %v2395, 0
    %v2569 = vsel %vm1499, %v2397, 0
    %v2572 = vsel %vm1499, %v2399, 0
    %v2575 = vsel %vm1499, %v2401, 0
    %2577 = vmatprep.subr.bf16.mxu0 0
    %2578 = vmatpush1.bf16.msra.mxu0 %v2470
    %2579 = vmatprep.subr.bf16.mxu0 0
    %2580 = vmatpush1.bf16.msra.mxu0 %v2469
    %2581 = vmatprep.subr.bf16.mxu0 0
    %2582 = vmatpush1.bf16.msra.mxu0 %v2468
    %2583 = vmatprep.subr.bf16.mxu0 0
    %2584 = vmatpush1.bf16.msra.mxu0 %v2467
    %2585 = vmatprep.subr.bf16.mxu0 0
    %2586 = vmatpush1.bf16.msra.mxu0 %v2466
    %2587 = vmatprep.subr.bf16.mxu0 0
    %2588 = vmatpush1.bf16.msra.mxu0 %v2465
    %2589 = vmatprep.subr.bf16.mxu0 0
    %2590 = vmatpush1.bf16.msra.mxu0 %v2464
    %2591 = vmatprep.subr.bf16.mxu0 0
    %2592 = vmatpush1.bf16.msra.mxu0 %v2463
    %2593 = vmatprep.subr.bf16.mxu0 0
    %2594 = vmatpush2.bf16.msra.mxu0 0
    %2595 = vmatprep.subr.bf16.mxu0 0
    %2596 = vmatpush2.bf16.msra.mxu0 0
    %2597 = vmatprep.subr.bf16.mxu0 0
    %2598 = vmatpush2.bf16.msra.mxu0 0
    %2599 = vmatprep.subr.bf16.mxu0 0
    %2600 = vmatpush2.bf16.msra.mxu0 0
    %2601 = vmatprep.subr.bf16.mxu0 0
    %2602 = vmatpush2.bf16.msra.mxu0 0
    %2603 = vmatprep.subr.bf16.mxu0 0
    %2604 = vmatpush2.bf16.msra.mxu0 0
    %2605 = vmatprep.subr.bf16.mxu0 0
    %2606 = vmatpush2.bf16.msra.mxu0 0
    %2607 = vmatprep.subr.bf16.mxu0 0
    %2608 = vmatpush2.bf16.msra.mxu0 %v2471
    %2609 = vmatprep.mubr.bf16.mxu0 %v2482
    %2610 = vmatmul.mubr.bf16.gmra.mxu0 %v2338
    %v2611 = vpop.f32.mrf.mxu0
    %v2612 = vadd.f32 %v2425, %v2611
    %v2613 = vpop.f32.mrf.mxu0
    %v2614 = vpop.f32.mrf.mxu0
    %v2615 = vadd.f32 %v2425, %v2614
    %v2616 = vpop.f32.mrf.mxu0
    %2617 = vmatprep.mubr.bf16.mxu0 %v2485
    %2618 = vmatmul.mubr.bf16.gmra.mxu0 %v2340
    %v2619 = vpop.f32.mrf.mxu0
    %v2620 = vadd.f32 %v2425, %v2619
    %v2621 = vpop.f32.mrf.mxu0
    %v2622 = vpop.f32.mrf.mxu0
    %v2623 = vadd.f32 %v2425, %v2622
    %v2624 = vpop.f32.mrf.mxu0
    %2625 = vmatprep.mubr.bf16.mxu0 %v2488
    %2626 = vmatmul.mubr.bf16.gmra.mxu0 %v2342
    %v2627 = vpop.f32.mrf.mxu0
    %v2628 = vadd.f32 %v2425, %v2627
    %v2629 = vpop.f32.mrf.mxu0
    %v2630 = vpop.f32.mrf.mxu0
    %v2631 = vadd.f32 %v2425, %v2630
    %v2632 = vpop.f32.mrf.mxu0
    %2633 = vmatprep.mubr.bf16.mxu0 %v2491
    %2634 = vmatmul.mubr.bf16.gmra.mxu0 %v2344
    %v2635 = vpop.f32.mrf.mxu0
    %v2636 = vadd.f32 %v2425, %v2635
    %v2637 = vpop.f32.mrf.mxu0
    %v2638 = vpop.f32.mrf.mxu0
    %v2639 = vadd.f32 %v2425, %v2638
    %v2640 = vpop.f32.mrf.mxu0
    %2641 = vmatprep.mubr.bf16.mxu0 %v2494
    %2642 = vmatmul.mubr.bf16.gmra.mxu0 %v2346
    %v2643 = vpop.f32.mrf.mxu0
    %v2644 = vadd.f32 %v2425, %v2643
    %v2645 = vpop.f32.mrf.mxu0
    %v2646 = vpop.f32.mrf.mxu0
    %v2647 = vadd.f32 %v2425, %v2646
    %v2648 = vpop.f32.mrf.mxu0
    %2649 = vmatprep.mubr.bf16.mxu0 %v2497
    %2650 = vmatmul.mubr.bf16.gmra.mxu0 %v2348
    %v2651 = vpop.f32.mrf.mxu0
    %v2652 = vadd.f32 %v2425, %v2651
    %v2653 = vpop.f32.mrf.mxu0
    %v2654 = vpop.f32.mrf.mxu0
    %v2655 = vadd.f32 %v2425, %v2654
    %v2656 = vpop.f32.mrf.mxu0
    %2657 = vmatprep.mubr.bf16.mxu0 %v2500
    %2658 = vmatmul.mubr.bf16.gmra.mxu0 %v2350
    %v2659 = vpop.f32.mrf.mxu0
    %v2660 = vadd.f32 %v2425, %v2659
    %v2661 = vpop.f32.mrf.mxu0
    %v2662 = vpop.f32.mrf.mxu0
    %v2663 = vadd.f32 %v2425, %v2662
    %v2664 = vpop.f32.mrf.mxu0
    %2665 = vmatprep.mubr.bf16.mxu0 %v2503
    %2666 = vmatmul.mubr.bf16.gmra.mxu0 %v2352
    %v2667 = vpop.f32.mrf.mxu0
    %v2668 = vadd.f32 %v2425, %v2667
    %v2669 = vpop.f32.mrf.mxu0
    %v2670 = vpop.f32.mrf.mxu0
    %v2671 = vadd.f32 %v2425, %v2670
    %v2672 = vpop.f32.mrf.mxu0
    %2673 = vmatprep.mubr.bf16.mxu0 %v2506
    %2674 = vmatmul.mubr.bf16.gmra.mxu0 %v2354
    %v2675 = vpop.f32.mrf.mxu0
    %v2676 = vadd.f32 %v2425, %v2675
    %v2677 = vpop.f32.mrf.mxu0
    %v2678 = vpop.f32.mrf.mxu0
    %v2679 = vadd.f32 %v2425, %v2678
    %v2680 = vpop.f32.mrf.mxu0
    %2681 = vmatprep.mubr.bf16.mxu0 %v2509
    %2682 = vmatmul.mubr.bf16.gmra.mxu0 %v2356
    %v2683 = vpop.f32.mrf.mxu0
    %v2684 = vadd.f32 %v2425, %v2683
    %v2685 = vpop.f32.mrf.mxu0
    %v2686 = vpop.f32.mrf.mxu0
    %v2687 = vadd.f32 %v2425, %v2686
    %v2688 = vpop.f32.mrf.mxu0
    %2689 = vmatprep.mubr.bf16.mxu0 %v2512
    %2690 = vmatmul.mubr.bf16.gmra.mxu0 %v2358
    %v2691 = vpop.f32.mrf.mxu0
    %v2692 = vadd.f32 %v2425, %v2691
    %v2693 = vpop.f32.mrf.mxu0
    %v2694 = vpop.f32.mrf.mxu0
    %v2695 = vadd.f32 %v2425, %v2694
    %v2696 = vpop.f32.mrf.mxu0
    %2697 = vmatprep.mubr.bf16.mxu0 %v2515
    %2698 = vmatmul.mubr.bf16.gmra.mxu0 %v2360
    %v2699 = vpop.f32.mrf.mxu0
    %v2700 = vadd.f32 %v2425, %v2699
    %v2701 = vpop.f32.mrf.mxu0
    %v2702 = vpop.f32.mrf.mxu0
    %v2703 = vadd.f32 %v2425, %v2702
    %v2704 = vpop.f32.mrf.mxu0
    %2705 = vmatprep.mubr.bf16.mxu0 %v2518
    %2706 = vmatmul.mubr.bf16.gmra.mxu0 %v2362
    %v2707 = vpop.f32.mrf.mxu0
    %v2708 = vadd.f32 %v2425, %v2707
    %v2709 = vpop.f32.mrf.mxu0
    %v2710 = vpop.f32.mrf.mxu0
    %v2711 = vadd.f32 %v2425, %v2710
    %v2712 = vpop.f32.mrf.mxu0
    %2713 = vmatprep.mubr.bf16.mxu0 %v2521
    %2714 = vmatmul.mubr.bf16.gmra.mxu0 %v2364
    %v2715 = vpop.f32.mrf.mxu0
    %v2716 = vadd.f32 %v2425, %v2715
    %v2717 = vpop.f32.mrf.mxu0
    %v2718 = vpop.f32.mrf.mxu0
    %v2719 = vadd.f32 %v2425, %v2718
    %v2720 = vpop.f32.mrf.mxu0
    %2721 = vmatprep.mubr.bf16.mxu0 %v2524
    %2722 = vmatmul.mubr.bf16.gmra.mxu0 %v2366
    %v2723 = vpop.f32.mrf.mxu0
    %v2724 = vadd.f32 %v2425, %v2723
    %v2725 = vpop.f32.mrf.mxu0
    %v2726 = vpop.f32.mrf.mxu0
    %v2727 = vadd.f32 %v2425, %v2726
    %v2728 = vpop.f32.mrf.mxu0
    %2729 = vmatprep.mubr.bf16.mxu0 %v2527
    %2730 = vmatmul.mubr.bf16.gmra.mxu0 %v2368
    %v2731 = vpop.f32.mrf.mxu0
    %v2732 = vadd.f32 %v2425, %v2731
    %v2733 = vpop.f32.mrf.mxu0
    %v2734 = vpop.f32.mrf.mxu0
    %v2735 = vadd.f32 %v2425, %v2734
    %v2736 = vpop.f32.mrf.mxu0
    %2737 = vmatprep.mubr.bf16.mxu0 %v2530
    %2738 = vmatmul.mubr.bf16.gmra.mxu0 %v2370
    %v2739 = vpop.f32.mrf.mxu0
    %v2740 = vadd.f32 %v2425, %v2739
    %v2741 = vpop.f32.mrf.mxu0
    %v2742 = vpop.f32.mrf.mxu0
    %v2743 = vadd.f32 %v2425, %v2742
    %v2744 = vpop.f32.mrf.mxu0
    %2745 = vmatprep.mubr.bf16.mxu0 %v2533
    %2746 = vmatmul.mubr.bf16.gmra.mxu0 %v2372
    %v2747 = vpop.f32.mrf.mxu0
    %v2748 = vadd.f32 %v2425, %v2747
    %v2749 = vpop.f32.mrf.mxu0
    %v2750 = vpop.f32.mrf.mxu0
    %v2751 = vadd.f32 %v2425, %v2750
    %v2752 = vpop.f32.mrf.mxu0
    %2753 = vmatprep.mubr.bf16.mxu0 %v2536
    %2754 = vmatmul.mubr.bf16.gmra.mxu0 %v2374
    %v2755 = vpop.f32.mrf.mxu0
    %v2756 = vadd.f32 %v2425, %v2755
    %v2757 = vpop.f32.mrf.mxu0
    %v2758 = vpop.f32.mrf.mxu0
    %v2759 = vadd.f32 %v2425, %v2758
    %v2760 = vpop.f32.mrf.mxu0
    %2761 = vmatprep.mubr.bf16.mxu0 %v2539
    %2762 = vmatmul.mubr.bf16.gmra.mxu0 %v2376
    %v2763 = vpop.f32.mrf.mxu0
    %v2764 = vadd.f32 %v2425, %v2763
    %v2765 = vpop.f32.mrf.mxu0
    %v2766 = vpop.f32.mrf.mxu0
    %v2767 = vadd.f32 %v2425, %v2766
    %v2768 = vpop.f32.mrf.mxu0
    %2769 = vmatprep.mubr.bf16.mxu0 %v2542
    %2770 = vmatmul.mubr.bf16.gmra.mxu0 %v2378
    %v2771 = vpop.f32.mrf.mxu0
    %v2772 = vadd.f32 %v2425, %v2771
    %v2773 = vpop.f32.mrf.mxu0
    %v2774 = vpop.f32.mrf.mxu0
    %v2775 = vadd.f32 %v2425, %v2774
    %v2776 = vpop.f32.mrf.mxu0
    %2777 = vmatprep.mubr.bf16.mxu0 %v2545
    %2778 = vmatmul.mubr.bf16.gmra.mxu0 %v2380
    %v2779 = vpop.f32.mrf.mxu0
    %v2780 = vadd.f32 %v2425, %v2779
    %v2781 = vpop.f32.mrf.mxu0
    %v2782 = vpop.f32.mrf.mxu0
    %v2783 = vadd.f32 %v2425, %v2782
    %v2784 = vpop.f32.mrf.mxu0
    %2785 = vmatprep.mubr.bf16.mxu0 %v2548
    %2786 = vmatmul.mubr.bf16.gmra.mxu0 %v2382
    %v2787 = vpop.f32.mrf.mxu0
    %v2788 = vadd.f32 %v2425, %v2787
    %v2789 = vpop.f32.mrf.mxu0
    %v2790 = vpop.f32.mrf.mxu0
    %v2791 = vadd.f32 %v2425, %v2790
    %v2792 = vpop.f32.mrf.mxu0
    %2793 = vmatprep.mubr.bf16.mxu0 %v2551
    %2794 = vmatmul.mubr.bf16.gmra.mxu0 %v2384
    %v2795 = vpop.f32.mrf.mxu0
    %v2796 = vadd.f32 %v2425, %v2795
    %v2797 = vpop.f32.mrf.mxu0
    %v2798 = vpop.f32.mrf.mxu0
    %v2799 = vadd.f32 %v2425, %v2798
    %v2800 = vpop.f32.mrf.mxu0
    %2801 = vmatprep.mubr.bf16.mxu0 %v2554
    %2802 = vmatmul.mubr.bf16.gmra.mxu0 %v2386
    %v2803 = vpop.f32.mrf.mxu0
    %v2804 = vadd.f32 %v2425, %v2803
    %v2805 = vpop.f32.mrf.mxu0
    %v2806 = vpop.f32.mrf.mxu0
    %v2807 = vadd.f32 %v2425, %v2806
    %v2808 = vpop.f32.mrf.mxu0
    %2809 = vmatprep.mubr.bf16.mxu0 %v2557
    %2810 = vmatmul.mubr.bf16.gmra.mxu0 %v2388
    %v2811 = vpop.f32.mrf.mxu0
    %v2812 = vadd.f32 %v2425, %v2811
    %v2813 = vpop.f32.mrf.mxu0
    %v2814 = vpop.f32.mrf.mxu0
    %v2815 = vadd.f32 %v2425, %v2814
    %v2816 = vpop.f32.mrf.mxu0
    %2817 = vmatprep.mubr.bf16.mxu0 %v2560
    %2818 = vmatmul.mubr.bf16.gmra.mxu0 %v2390
    %v2819 = vpop.f32.mrf.mxu0
    %v2820 = vadd.f32 %v2425, %v2819
    %v2821 = vpop.f32.mrf.mxu0
    %v2822 = vpop.f32.mrf.mxu0
    %v2823 = vadd.f32 %v2425, %v2822
    %v2824 = vpop.f32.mrf.mxu0
    %2825 = vmatprep.mubr.bf16.mxu0 %v2563
    %2826 = vmatmul.mubr.bf16.gmra.mxu0 %v2392
    %v2827 = vpop.f32.mrf.mxu0
    %v2828 = vadd.f32 %v2425, %v2827
    %v2829 = vpop.f32.mrf.mxu0
    %v2830 = vpop.f32.mrf.mxu0
    %v2831 = vadd.f32 %v2425, %v2830
    %v2832 = vpop.f32.mrf.mxu0
    %2833 = vmatprep.mubr.bf16.mxu0 %v2566
    %2834 = vmatmul.mubr.bf16.gmra.mxu0 %v2394
    %v2835 = vpop.f32.mrf.mxu0
    %v2836 = vadd.f32 %v2425, %v2835
    %v2837 = vpop.f32.mrf.mxu0
    %v2838 = vpop.f32.mrf.mxu0
    %v2839 = vadd.f32 %v2425, %v2838
    %v2840 = vpop.f32.mrf.mxu0
    %2841 = vmatprep.mubr.bf16.mxu0 %v2569
    %2842 = vmatmul.mubr.bf16.gmra.mxu0 %v2396
    %v2843 = vpop.f32.mrf.mxu0
    %v2844 = vadd.f32 %v2425, %v2843
    %v2845 = vpop.f32.mrf.mxu0
    %v2846 = vpop.f32.mrf.mxu0
    %v2847 = vadd.f32 %v2425, %v2846
    %v2848 = vpop.f32.mrf.mxu0
    %2849 = vmatprep.mubr.bf16.mxu0 %v2572
    %2850 = vmatmul.mubr.bf16.gmra.mxu0 %v2398
    %v2851 = vpop.f32.mrf.mxu0
    %v2852 = vadd.f32 %v2425, %v2851
    %v2853 = vpop.f32.mrf.mxu0
    %v2854 = vpop.f32.mrf.mxu0
    %v2855 = vadd.f32 %v2425, %v2854
    %v2856 = vpop.f32.mrf.mxu0
    %2857 = vmatprep.mubr.bf16.mxu0 %v2575
    %2858 = vmatmul.mubr.bf16.gmra.mxu0 %v2400
    %v2859 = vpop.f32.mrf.mxu0
    %v2860 = vadd.f32 %v2425, %v2859
    %v2861 = vpop.f32.mrf.mxu0
    %v2862 = vpop.f32.mrf.mxu0
    %v2863 = vadd.f32 %v2425, %v2862
    %v2864 = vpop.f32.mrf.mxu0
    %2865 = vdwg.mxu0
    %v2866 = vpack.c.bf16 %v2615, %v2612
    %v2867 = vpack.c.bf16 %v2623, %v2620
    %v2868 = vpack.c.bf16 %v2631, %v2628
    %v2869 = vpack.c.bf16 %v2639, %v2636
    %v2870 = vpack.c.bf16 %v2647, %v2644
    %v2871 = vpack.c.bf16 %v2655, %v2652
    %v2872 = vpack.c.bf16 %v2663, %v2660
    %v2873 = vpack.c.bf16 %v2671, %v2668
    %v2874 = vpack.c.bf16 %v2679, %v2676
    %v2875 = vpack.c.bf16 %v2687, %v2684
    %v2876 = vpack.c.bf16 %v2695, %v2692
    %v2877 = vpack.c.bf16 %v2703, %v2700
    %v2878 = vpack.c.bf16 %v2711, %v2708
    %v2879 = vpack.c.bf16 %v2719, %v2716
    %v2880 = vpack.c.bf16 %v2727, %v2724
    %v2881 = vpack.c.bf16 %v2735, %v2732
    %v2882 = vpack.c.bf16 %v2743, %v2740
    %v2883 = vpack.c.bf16 %v2751, %v2748
    %v2884 = vpack.c.bf16 %v2759, %v2756
    %v2885 = vpack.c.bf16 %v2767, %v2764
    %v2886 = vpack.c.bf16 %v2775, %v2772
    %v2887 = vpack.c.bf16 %v2783, %v2780
    %v2888 = vpack.c.bf16 %v2791, %v2788
    %v2889 = vpack.c.bf16 %v2799, %v2796
    %v2890 = vpack.c.bf16 %v2807, %v2804
    %v2891 = vpack.c.bf16 %v2815, %v2812
    %v2892 = vpack.c.bf16 %v2823, %v2820
    %v2893 = vpack.c.bf16 %v2831, %v2828
    %v2894 = vpack.c.bf16 %v2839, %v2836
    %v2895 = vpack.c.bf16 %v2847, %v2844
    %v2896 = vpack.c.bf16 %v2855, %v2852
    %v2897 = vpack.c.bf16 %v2863, %v2860
    %v2899 = vshrl.u32 %v2866, 16
    %v2901 = vshll.u32 %v2866, 16
    %v2903 = vrot.slane %v2901, 1
    %v2904 = vor.u32 %v2899, %v2903
    %v2906 = vshll.u32 %v2867, 16
    %v2908 = vrot.slane %v2906, 1
    %v2909 = vsel %vm888, %v2904, %v2908
    %v2910 = vshrl.u32 %v2867, 16
    %v2912 = vor.u32 %v2910, %v2908
    %v2914 = vshll.u32 %v2868, 16
    %v2916 = vrot.slane %v2914, 1
    %v2917 = vsel %vm888, %v2912, %v2916
    %v2918 = vshrl.u32 %v2868, 16
    %v2920 = vor.u32 %v2918, %v2916
    %v2922 = vshll.u32 %v2869, 16
    %v2924 = vrot.slane %v2922, 1
    %v2925 = vsel %vm888, %v2920, %v2924
    %v2926 = vshrl.u32 %v2869, 16
    %v2928 = vor.u32 %v2926, %v2924
    %v2930 = vshll.u32 %v2870, 16
    %v2932 = vrot.slane %v2930, 1
    %v2933 = vsel %vm888, %v2928, %v2932
    %v2934 = vshrl.u32 %v2870, 16
    %v2936 = vor.u32 %v2934, %v2932
    %v2938 = vshll.u32 %v2871, 16
    %v2940 = vrot.slane %v2938, 1
    %v2941 = vsel %vm888, %v2936, %v2940
    %v2942 = vshrl.u32 %v2871, 16
    %v2944 = vor.u32 %v2942, %v2940
    %v2946 = vshll.u32 %v2872, 16
    %v2948 = vrot.slane %v2946, 1
    %v2949 = vsel %vm888, %v2944, %v2948
    %v2950 = vshrl.u32 %v2872, 16
    %v2952 = vor.u32 %v2950, %v2948
    %v2954 = vshll.u32 %v2873, 16
    %v2956 = vrot.slane %v2954, 1
    %v2957 = vsel %vm888, %v2952, %v2956
    %v2958 = vshrl.u32 %v2873, 16
    %v2960 = vor.u32 %v2958, %v2956
    %v2962 = vshll.u32 %v2874, 16
    %v2964 = vrot.slane %v2962, 1
    %v2965 = vsel %vm888, %v2960, %v2964
    %v2966 = vshrl.u32 %v2874, 16
    %v2968 = vor.u32 %v2966, %v2964
    %v2970 = vshll.u32 %v2875, 16
    %v2972 = vrot.slane %v2970, 1
    %v2973 = vsel %vm888, %v2968, %v2972
    %v2974 = vshrl.u32 %v2875, 16
    %v2976 = vor.u32 %v2974, %v2972
    %v2978 = vshll.u32 %v2876, 16
    %v2980 = vrot.slane %v2978, 1
    %v2981 = vsel %vm888, %v2976, %v2980
    %v2982 = vshrl.u32 %v2876, 16
    %v2984 = vor.u32 %v2982, %v2980
    %v2986 = vshll.u32 %v2877, 16
    %v2988 = vrot.slane %v2986, 1
    %v2989 = vsel %vm888, %v2984, %v2988
    %v2990 = vshrl.u32 %v2877, 16
    %v2992 = vor.u32 %v2990, %v2988
    %v2994 = vshll.u32 %v2878, 16
    %v2996 = vrot.slane %v2994, 1
    %v2997 = vsel %vm888, %v2992, %v2996
    %v2998 = vshrl.u32 %v2878, 16
    %v3000 = vor.u32 %v2998, %v2996
    %v3002 = vshll.u32 %v2879, 16
    %v3004 = vrot.slane %v3002, 1
    %v3005 = vsel %vm888, %v3000, %v3004
    %v3006 = vshrl.u32 %v2879, 16
    %v3008 = vor.u32 %v3006, %v3004
    %v3010 = vshll.u32 %v2880, 16
    %v3012 = vrot.slane %v3010, 1
    %v3013 = vsel %vm888, %v3008, %v3012
    %v3014 = vshrl.u32 %v2880, 16
    %v3016 = vor.u32 %v3014, %v3012
    %v3018 = vshll.u32 %v2881, 16
    %v3020 = vrot.slane %v3018, 1
    %v3021 = vsel %vm888, %v3016, %v3020
    %v3022 = vshrl.u32 %v2881, 16
    %v3024 = vor.u32 %v3022, %v3020
    %v3026 = vshll.u32 %v2882, 16
    %v3028 = vrot.slane %v3026, 1
    %v3029 = vsel %vm888, %v3024, %v3028
    %v3030 = vshrl.u32 %v2882, 16
    %v3032 = vor.u32 %v3030, %v3028
    %v3034 = vshll.u32 %v2883, 16
    %v3036 = vrot.slane %v3034, 1
    %v3037 = vsel %vm888, %v3032, %v3036
    %v3038 = vshrl.u32 %v2883, 16
    %v3040 = vor.u32 %v3038, %v3036
    %v3042 = vshll.u32 %v2884, 16
    %v3044 = vrot.slane %v3042, 1
    %v3045 = vsel %vm888, %v3040, %v3044
    %v3046 = vshrl.u32 %v2884, 16
    %v3048 = vor.u32 %v3046, %v3044
    %v3050 = vshll.u32 %v2885, 16
    %v3052 = vrot.slane %v3050, 1
    %v3053 = vsel %vm888, %v3048, %v3052
    %v3054 = vshrl.u32 %v2885, 16
    %v3056 = vor.u32 %v3054, %v3052
    %v3058 = vshll.u32 %v2886, 16
    %v3060 = vrot.slane %v3058, 1
    %v3061 = vsel %vm888, %v3056, %v3060
    %v3062 = vshrl.u32 %v2886, 16
    %v3064 = vor.u32 %v3062, %v3060
    %v3066 = vshll.u32 %v2887, 16
    %v3068 = vrot.slane %v3066, 1
    %v3069 = vsel %vm888, %v3064, %v3068
    %v3070 = vshrl.u32 %v2887, 16
    %v3072 = vor.u32 %v3070, %v3068
    %v3074 = vshll.u32 %v2888, 16
    %v3076 = vrot.slane %v3074, 1
    %v3077 = vsel %vm888, %v3072, %v3076
    %v3078 = vshrl.u32 %v2888, 16
    %v3080 = vor.u32 %v3078, %v3076
    %v3082 = vshll.u32 %v2889, 16
    %v3084 = vrot.slane %v3082, 1
    %v3085 = vsel %vm888, %v3080, %v3084
    %v3086 = vshrl.u32 %v2889, 16
    %v3088 = vor.u32 %v3086, %v3084
    %v3090 = vshll.u32 %v2890, 16
    %v3092 = vrot.slane %v3090, 1
    %v3093 = vsel %vm888, %v3088, %v3092
    %v3094 = vshrl.u32 %v2890, 16
    %v3096 = vor.u32 %v3094, %v3092
    %v3098 = vshll.u32 %v2891, 16
    %v3100 = vrot.slane %v3098, 1
    %v3101 = vsel %vm888, %v3096, %v3100
    %v3102 = vshrl.u32 %v2891, 16
    %v3104 = vor.u32 %v3102, %v3100
    %v3106 = vshll.u32 %v2892, 16
    %v3108 = vrot.slane %v3106, 1
    %v3109 = vsel %vm888, %v3104, %v3108
    %v3110 = vshrl.u32 %v2892, 16
    %v3112 = vor.u32 %v3110, %v3108
    %v3114 = vshll.u32 %v2893, 16
    %v3116 = vrot.slane %v3114, 1
    %v3117 = vsel %vm888, %v3112, %v3116
    %v3118 = vshrl.u32 %v2893, 16
    %v3120 = vor.u32 %v3118, %v3116
    %v3122 = vshll.u32 %v2894, 16
    %v3124 = vrot.slane %v3122, 1
    %v3125 = vsel %vm888, %v3120, %v3124
    %v3126 = vshrl.u32 %v2894, 16
    %v3128 = vor.u32 %v3126, %v3124
    %v3130 = vshll.u32 %v2895, 16
    %v3132 = vrot.slane %v3130, 1
    %v3133 = vsel %vm888, %v3128, %v3132
    %v3134 = vshrl.u32 %v2895, 16
    %v3136 = vor.u32 %v3134, %v3132
    %v3138 = vshll.u32 %v2896, 16
    %v3140 = vrot.slane %v3138, 1
    %v3141 = vsel %vm888, %v3136, %v3140
    %v3142 = vshrl.u32 %v2896, 16
    %v3144 = vor.u32 %v3142, %v3140
    %v3146 = vshll.u32 %v2897, 16
    %v3148 = vrot.slane %v3146, 1
    %v3149 = vsel %vm888, %v3144, %v3148
    %v3150 = vshrl.u32 %v2897, 16
    %v3152 = vor.u32 %v3150, %v3148
    %v3186 = vsel %vm984, %v3152, %v2903
    %v3187 = vmax.bf16 %v2866, %v2909
    %v3188 = vmax.bf16 %v2867, %v2917
    %v3189 = vmax.bf16 %v2868, %v2925
    %v3190 = vmax.bf16 %v2869, %v2933
    %v3191 = vmax.bf16 %v2870, %v2941
    %v3192 = vmax.bf16 %v2871, %v2949
    %v3193 = vmax.bf16 %v2872, %v2957
    %v3194 = vmax.bf16 %v2873, %v2965
    %v3195 = vmax.bf16 %v2874, %v2973
    %v3196 = vmax.bf16 %v2875, %v2981
    %v3197 = vmax.bf16 %v2876, %v2989
    %v3198 = vmax.bf16 %v2877, %v2997
    %v3199 = vmax.bf16 %v2878, %v3005
    %v3200 = vmax.bf16 %v2879, %v3013
    %v3201 = vmax.bf16 %v2880, %v3021
    %v3202 = vmax.bf16 %v2881, %v3029
    %v3203 = vmax.bf16 %v2882, %v3037
    %v3204 = vmax.bf16 %v2883, %v3045
    %v3205 = vmax.bf16 %v2884, %v3053
    %v3206 = vmax.bf16 %v2885, %v3061
    %v3207 = vmax.bf16 %v2886, %v3069
    %v3208 = vmax.bf16 %v2887, %v3077
    %v3209 = vmax.bf16 %v2888, %v3085
    %v3210 = vmax.bf16 %v2889, %v3093
    %v3211 = vmax.bf16 %v2890, %v3101
    %v3212 = vmax.bf16 %v2891, %v3109
    %v3213 = vmax.bf16 %v2892, %v3117
    %v3214 = vmax.bf16 %v2893, %v3125
    %v3215 = vmax.bf16 %v2894, %v3133
    %v3216 = vmax.bf16 %v2895, %v3141
    %v3217 = vmax.bf16 %v2896, %v3149
    %v3218 = vmax.bf16 %v2897, %v3186
    %v3219 = vmax.bf16 %v3187, %v3188
    %v3220 = vmax.bf16 %v3188, %v3189
    %v3221 = vmax.bf16 %v3189, %v3190
    %v3222 = vmax.bf16 %v3190, %v3191
    %v3223 = vmax.bf16 %v3191, %v3192
    %v3224 = vmax.bf16 %v3192, %v3193
    %v3225 = vmax.bf16 %v3193, %v3194
    %v3226 = vmax.bf16 %v3194, %v3195
    %v3227 = vmax.bf16 %v3195, %v3196
    %v3228 = vmax.bf16 %v3196, %v3197
    %v3229 = vmax.bf16 %v3197, %v3198
    %v3230 = vmax.bf16 %v3198, %v3199
    %v3231 = vmax.bf16 %v3199, %v3200
    %v3232 = vmax.bf16 %v3200, %v3201
    %v3233 = vmax.bf16 %v3201, %v3202
    %v3234 = vmax.bf16 %v3202, %v3203
    %v3235 = vmax.bf16 %v3203, %v3204
    %v3236 = vmax.bf16 %v3204, %v3205
    %v3237 = vmax.bf16 %v3205, %v3206
    %v3238 = vmax.bf16 %v3206, %v3207
    %v3239 = vmax.bf16 %v3207, %v3208
    %v3240 = vmax.bf16 %v3208, %v3209
    %v3241 = vmax.bf16 %v3209, %v3210
    %v3242 = vmax.bf16 %v3210, %v3211
    %v3243 = vmax.bf16 %v3211, %v3212
    %v3244 = vmax.bf16 %v3212, %v3213
    %v3245 = vmax.bf16 %v3213, %v3214
    %v3246 = vmax.bf16 %v3214, %v3215
    %v3247 = vmax.bf16 %v3215, %v3216
    %v3248 = vmax.bf16 %v3216, %v3217
    %v3249 = vmax.bf16 %v3217, %v3218
    %v3250 = vmax.bf16 %v3218, %v3187
    %v3251 = vld [vmem:[%s5] sm:$0xff]
    %v3252 = vld [vmem:[%s5 + $0x8] sm:$0xff]
    %v3253 = vld [vmem:[%s5 + $0x10] sm:$0xff]
    %v3254 = vld [vmem:[%s5 + $0x18] sm:$0xff]
    %v3255 = vld [vmem:[%s5 + $0x20] sm:$0xff]
    %v3256 = vld [vmem:[%s5 + $0x28] sm:$0xff]
    %v3257 = vld [vmem:[%s5 + $0x30] sm:$0xff]
    %v3258 = vld [vmem:[%s5 + $0x38] sm:$0xff]
    %v3267 = vunpack.c.l.b16 %v3251
    %v3268 = vunpack.c.h.b16 %v3251
    %v3269 = vunpack.c.l.b16 %v3252
    %v3270 = vunpack.c.h.b16 %v3252
    %v3271 = vunpack.c.l.b16 %v3253
    %v3272 = vunpack.c.h.b16 %v3253
    %v3273 = vunpack.c.l.b16 %v3254
    %v3274 = vunpack.c.h.b16 %v3254
    %v3275 = vunpack.c.l.b16 %v3255
    %v3276 = vunpack.c.h.b16 %v3255
    %v3277 = vunpack.c.l.b16 %v3256
    %v3278 = vunpack.c.h.b16 %v3256
    %v3279 = vunpack.c.l.b16 %v3257
    %v3280 = vunpack.c.h.b16 %v3257
    %v3281 = vunpack.c.l.b16 %v3258
    %v3282 = vunpack.c.h.b16 %v3258
    %v3283 = vpack.c.b16 %v3269, %v3267
    %v3284 = vpack.c.b16 %v3270, %v3268
    %v3285 = vpack.c.b16 %v3273, %v3271
    %v3286 = vpack.c.b16 %v3274, %v3272
    %v3287 = vpack.c.b16 %v3277, %v3275
    %v3288 = vpack.c.b16 %v3278, %v3276
    %v3289 = vpack.c.b16 %v3281, %v3279
    %v3290 = vpack.c.b16 %v3282, %v3280
    %3299 = vmatprep.subr.bf16.mxu0 0
    %3300 = vmatpush1.bf16.msra.mxu0 %v3226
    %3301 = vmatprep.subr.bf16.mxu0 0
    %3302 = vmatpush1.bf16.msra.mxu0 %v3225
    %3303 = vmatprep.subr.bf16.mxu0 0
    %3304 = vmatpush1.bf16.msra.mxu0 %v3224
    %3305 = vmatprep.subr.bf16.mxu0 0
    %3306 = vmatpush1.bf16.msra.mxu0 %v3223
    %3307 = vmatprep.subr.bf16.mxu0 0
    %3308 = vmatpush1.bf16.msra.mxu0 %v3222
    %3309 = vmatprep.subr.bf16.mxu0 0
    %3310 = vmatpush1.bf16.msra.mxu0 %v3221
    %3311 = vmatprep.subr.bf16.mxu0 0
    %3312 = vmatpush1.bf16.msra.mxu0 %v3220
    %3313 = vmatprep.subr.bf16.mxu0 0
    %3314 = vmatpush1.bf16.msra.mxu0 %v3219
    %3315 = vmatprep.subr.bf16.mxu0 0
    %3316 = vmatpush2.bf16.msra.mxu0 %v3234
    %3317 = vmatprep.subr.bf16.mxu0 0
    %3318 = vmatpush2.bf16.msra.mxu0 %v3233
    %3319 = vmatprep.subr.bf16.mxu0 0
    %3320 = vmatpush2.bf16.msra.mxu0 %v3232
    %3321 = vmatprep.subr.bf16.mxu0 0
    %3322 = vmatpush2.bf16.msra.mxu0 %v3231
    %3323 = vmatprep.subr.bf16.mxu0 0
    %3324 = vmatpush2.bf16.msra.mxu0 %v3230
    %3325 = vmatprep.subr.bf16.mxu0 0
    %3326 = vmatpush2.bf16.msra.mxu0 %v3229
    %3327 = vmatprep.subr.bf16.mxu0 0
    %3328 = vmatpush2.bf16.msra.mxu0 %v3228
    %3329 = vmatprep.subr.bf16.mxu0 0
    %3330 = vmatpush2.bf16.msra.mxu0 %v3227
    %3331 = vmatprep.mubr.bf16.mxu0 %v3284
    %3332 = vmatmul.mubr.bf16.gmra.mxu0 %v3283
    %v3333 = vpop.f32.mrf.mxu0
    %v3334 = vadd.f32 0.0, %v3333
    %v3335 = vpop.f32.mrf.mxu0
    %v3336 = vpop.f32.mrf.mxu0
    %v3337 = vadd.f32 0.0, %v3336
    %v3338 = vpop.f32.mrf.mxu0
    %3339 = vmatprep.mubr.bf16.mxu0 %v3286
    %3340 = vmatmul.mubr.bf16.gmra.mxu0 %v3285
    %v3341 = vpop.f32.mrf.mxu0
    %v3342 = vadd.f32 0.0, %v3341
    %v3343 = vpop.f32.mrf.mxu0
    %v3344 = vpop.f32.mrf.mxu0
    %v3345 = vadd.f32 0.0, %v3344
    %v3346 = vpop.f32.mrf.mxu0
    %3347 = vmatprep.mubr.bf16.mxu0 %v3288
    %3348 = vmatmul.mubr.bf16.gmra.mxu0 %v3287
    %v3349 = vpop.f32.mrf.mxu0
    %v3350 = vadd.f32 0.0, %v3349
    %v3351 = vpop.f32.mrf.mxu0
    %v3352 = vpop.f32.mrf.mxu0
    %v3353 = vadd.f32 0.0, %v3352
    %v3354 = vpop.f32.mrf.mxu0
    %3355 = vmatprep.mubr.bf16.mxu0 %v3290
    %3356 = vmatmul.mubr.bf16.gmra.mxu0 %v3289
    %v3357 = vpop.f32.mrf.mxu0
    %v3358 = vadd.f32 0.0, %v3357
    %v3359 = vpop.f32.mrf.mxu0
    %v3360 = vpop.f32.mrf.mxu0
    %v3361 = vadd.f32 0.0, %v3360
    %v3362 = vpop.f32.mrf.mxu0
    %3363 = vdwg.mxu0
    %3364 = vmatprep.subr.bf16.mxu0 0
    %3365 = vmatpush1.bf16.msra.mxu0 %v3242
    %3366 = vmatprep.subr.bf16.mxu0 0
    %3367 = vmatpush1.bf16.msra.mxu0 %v3241
    %3368 = vmatprep.subr.bf16.mxu0 0
    %3369 = vmatpush1.bf16.msra.mxu0 %v3240
    %3370 = vmatprep.subr.bf16.mxu0 0
    %3371 = vmatpush1.bf16.msra.mxu0 %v3239
    %3372 = vmatprep.subr.bf16.mxu0 0
    %3373 = vmatpush1.bf16.msra.mxu0 %v3238
    %3374 = vmatprep.subr.bf16.mxu0 0
    %3375 = vmatpush1.bf16.msra.mxu0 %v3237
    %3376 = vmatprep.subr.bf16.mxu0 0
    %3377 = vmatpush1.bf16.msra.mxu0 %v3236
    %3378 = vmatprep.subr.bf16.mxu0 0
    %3379 = vmatpush1.bf16.msra.mxu0 %v3235
    %3380 = vmatprep.subr.bf16.mxu0 0
    %3381 = vmatpush2.bf16.msra.mxu0 %v3250
    %3382 = vmatprep.subr.bf16.mxu0 0
    %3383 = vmatpush2.bf16.msra.mxu0 %v3249
    %3384 = vmatprep.subr.bf16.mxu0 0
    %3385 = vmatpush2.bf16.msra.mxu0 %v3248
    %3386 = vmatprep.subr.bf16.mxu0 0
    %3387 = vmatpush2.bf16.msra.mxu0 %v3247
    %3388 = vmatprep.subr.bf16.mxu0 0
    %3389 = vmatpush2.bf16.msra.mxu0 %v3246
    %3390 = vmatprep.subr.bf16.mxu0 0
    %3391 = vmatpush2.bf16.msra.mxu0 %v3245
    %3392 = vmatprep.subr.bf16.mxu0 0
    %3393 = vmatpush2.bf16.msra.mxu0 %v3244
    %3394 = vmatprep.subr.bf16.mxu0 0
    %3395 = vmatpush2.bf16.msra.mxu0 %v3243
    %3396 = vmatprep.mubr.bf16.mxu0 %v3284
    %3397 = vmatmul.mubr.bf16.gmra.mxu0 %v3283
    %v3398 = vpop.f32.mrf.mxu0
    %v3399 = vadd.f32 0.0, %v3398
    %v3400 = vpop.f32.mrf.mxu0
    %v3401 = vpop.f32.mrf.mxu0
    %v3402 = vadd.f32 0.0, %v3401
    %v3403 = vpop.f32.mrf.mxu0
    %3404 = vmatprep.mubr.bf16.mxu0 %v3286
    %3405 = vmatmul.mubr.bf16.gmra.mxu0 %v3285
    %v3406 = vpop.f32.mrf.mxu0
    %v3407 = vadd.f32 0.0, %v3406
    %v3408 = vpop.f32.mrf.mxu0
    %v3409 = vpop.f32.mrf.mxu0
    %v3410 = vadd.f32 0.0, %v3409
    %v3411 = vpop.f32.mrf.mxu0
    %3412 = vmatprep.mubr.bf16.mxu0 %v3288
    %3413 = vmatmul.mubr.bf16.gmra.mxu0 %v3287
    %v3414 = vpop.f32.mrf.mxu0
    %v3415 = vadd.f32 0.0, %v3414
    %v3416 = vpop.f32.mrf.mxu0
    %v3417 = vpop.f32.mrf.mxu0
    %v3418 = vadd.f32 0.0, %v3417
    %v3419 = vpop.f32.mrf.mxu0
    %3420 = vmatprep.mubr.bf16.mxu0 %v3290
    %3421 = vmatmul.mubr.bf16.gmra.mxu0 %v3289
    %v3422 = vpop.f32.mrf.mxu0
    %v3423 = vadd.f32 0.0, %v3422
    %v3424 = vpop.f32.mrf.mxu0
    %v3425 = vpop.f32.mrf.mxu0
    %v3426 = vadd.f32 0.0, %v3425
    %v3427 = vpop.f32.mrf.mxu0
    %3428 = vdwg.mxu0
    %v3429 = vld [vmem:[%s6] sm:$0xff]
    %v3430 = vld [vmem:[%s6 + $0x8] sm:$0xff]
    %v3431 = vld [vmem:[%s6 + $0x10] sm:$0xff]
    %v3432 = vld [vmem:[%s6 + $0x18] sm:$0xff]
    %v3433 = vld [vmem:[%s6 + $0x20] sm:$0xff]
    %v3434 = vld [vmem:[%s6 + $0x28] sm:$0xff]
    %v3435 = vld [vmem:[%s6 + $0x30] sm:$0xff]
    %v3436 = vld [vmem:[%s6 + $0x38] sm:$0xff]
    %v3437 = vld [vmem:[%s6 + $0x40] sm:$0xff]
    %v3438 = vld [vmem:[%s6 + $0x48] sm:$0xff]
    %v3439 = vld [vmem:[%s6 + $0x50] sm:$0xff]
    %v3440 = vld [vmem:[%s6 + $0x58] sm:$0xff]
    %v3441 = vld [vmem:[%s6 + $0x60] sm:$0xff]
    %v3442 = vld [vmem:[%s6 + $0x68] sm:$0xff]
    %v3443 = vld [vmem:[%s6 + $0x70] sm:$0xff]
    %v3444 = vld [vmem:[%s6 + $0x78] sm:$0xff]
    %v3445 = vpack.c.bf16 %v3337, %v3334
    %v3446 = vpack.c.bf16 %v3345, %v3342
    %v3447 = vpack.c.bf16 %v3353, %v3350
    %v3448 = vpack.c.bf16 %v3361, %v3358
    %v3449 = vpack.c.bf16 %v3402, %v3399
    %v3450 = vpack.c.bf16 %v3410, %v3407
    %v3451 = vpack.c.bf16 %v3418, %v3415
    %v3452 = vpack.c.bf16 %v3426, %v3423
    %v3454 = vshrl.u32 %v3452, 16
    %v3456 = vrot.slane %v3454, 3
    %v3457 = vshll.u32 %v3452, 16
    %v3459 = vrot.slane %v3457, 4
    %v3460 = vor.u32 %v3456, %v3459
    %vm3462 = vsmask.f32 4352
    %v3464 = vshrl.u32 %v3445, 16
    %v3466 = vrot.slane %v3464, 3
    %v3467 = vshll.u32 %v3445, 16
    %v3469 = vrot.slane %v3467, 4
    %v3470 = vor.u32 %v3466, %v3469
    %v3472 = vshrl.u32 %v3446, 16
    %v3474 = vrot.slane %v3472, 3
    %v3475 = vshll.u32 %v3446, 16
    %v3477 = vrot.slane %v3475, 4
    %v3478 = vor.u32 %v3474, %v3477
    %v3479 = vsel %vm3462, %v3470, %v3478
    %v3481 = vshrl.u32 %v3447, 16
    %v3483 = vrot.slane %v3481, 3
    %v3484 = vshll.u32 %v3447, 16
    %v3486 = vrot.slane %v3484, 4
    %v3487 = vor.u32 %v3483, %v3486
    %v3488 = vsel %vm3462, %v3478, %v3487
    %v3490 = vshrl.u32 %v3448, 16
    %v3492 = vrot.slane %v3490, 3
    %v3493 = vshll.u32 %v3448, 16
    %v3495 = vrot.slane %v3493, 4
    %v3496 = vor.u32 %v3492, %v3495
    %v3497 = vsel %vm3462, %v3487, %v3496
    %v3499 = vshrl.u32 %v3449, 16
    %v3501 = vrot.slane %v3499, 3
    %v3502 = vshll.u32 %v3449, 16
    %v3504 = vrot.slane %v3502, 4
    %v3505 = vor.u32 %v3501, %v3504
    %v3506 = vsel %vm3462, %v3496, %v3505
    %v3508 = vshrl.u32 %v3450, 16
    %v3510 = vrot.slane %v3508, 3
    %v3511 = vshll.u32 %v3450, 16
    %v3513 = vrot.slane %v3511, 4
    %v3514 = vor.u32 %v3510, %v3513
    %v3515 = vsel %vm3462, %v3505, %v3514
    %v3517 = vshrl.u32 %v3451, 16
    %v3519 = vrot.slane %v3517, 3
    %v3520 = vshll.u32 %v3451, 16
    %v3522 = vrot.slane %v3520, 4
    %v3523 = vor.u32 %v3519, %v3522
    %v3524 = vsel %vm3462, %v3514, %v3523
    %v3525 = vsel %vm3462, %v3523, %v3460
    %vm3527 = vcmask 1044480
    %vm3528 = vmand %vm3527, %vm3462
    %v3529 = vsel %vm3528, %v3460, %v3470
    %v3531 = vrot.slane %v3452, 4
    %vm3539 = vcmask 1043456
    %v3540 = vrot.slane %v3445, 4
    %v3541 = vrot.slane %v3446, 4
    %v3542 = vsel %vm3539, %v3540, %v3541
    %v3543 = vrot.slane %v3447, 4
    %v3544 = vsel %vm3539, %v3541, %v3543
    %v3545 = vrot.slane %v3448, 4
    %v3546 = vsel %vm3539, %v3543, %v3545
    %v3547 = vrot.slane %v3449, 4
    %v3548 = vsel %vm3539, %v3545, %v3547
    %v3549 = vrot.slane %v3450, 4
    %v3550 = vsel %vm3539, %v3547, %v3549
    %v3551 = vrot.slane %v3451, 4
    %v3552 = vsel %vm3539, %v3549, %v3551
    %v3553 = vsel %vm3539, %v3551, %v3531
    %vm3554 = vcmask 1043456
    %v3557 = vsel %vm3554, %v3531, %v3540
    %v3558 = vrot.slane %v3454, 4
    %v3559 = vrot.slane %v3457, 5
    %v3560 = vor.u32 %v3558, %v3559
    %vm3562 = vsmask.f32 3328
    %v3563 = vrot.slane %v3464, 4
    %v3564 = vrot.slane %v3467, 5
    %v3565 = vor.u32 %v3563, %v3564
    %v3566 = vrot.slane %v3472, 4
    %v3567 = vrot.slane %v3475, 5
    %v3568 = vor.u32 %v3566, %v3567
    %v3569 = vsel %vm3562, %v3565, %v3568
    %v3570 = vrot.slane %v3481, 4
    %v3571 = vrot.slane %v3484, 5
    %v3572 = vor.u32 %v3570, %v3571
    %v3573 = vsel %vm3562, %v3568, %v3572
    %v3574 = vrot.slane %v3490, 4
    %v3575 = vrot.slane %v3493, 5
    %v3576 = vor.u32 %v3574, %v3575
    %v3577 = vsel %vm3562, %v3572, %v3576
    %v3578 = vrot.slane %v3499, 4
    %v3579 = vrot.slane %v3502, 5
    %v3580 = vor.u32 %v3578, %v3579
    %v3581 = vsel %vm3562, %v3576, %v3580
    %v3582 = vrot.slane %v3508, 4
    %v3583 = vrot.slane %v3511, 5
    %v3584 = vor.u32 %v3582, %v3583
    %v3585 = vsel %vm3562, %v3580, %v3584
    %v3586 = vrot.slane %v3517, 4
    %v3587 = vrot.slane %v3520, 5
    %v3588 = vor.u32 %v3586, %v3587
    %v3589 = vsel %vm3562, %v3584, %v3588
    %v3590 = vsel %vm3562, %v3588, %v3560
    %vm3592 = vmand %vm3539, %vm3562
    %v3593 = vsel %vm3592, %v3560, %v3565
    %v3594 = vrot.slane %v3454, 7
    %v3596 = vrot.slane %v3464, 7
    %v3597 = vor.u32 %v3596, %v3467
    %v3598 = vrot.slane %v3472, 7
    %v3599 = vor.u32 %v3598, %v3475
    %v3600 = vsel %vm624, %v3596, %v3599
    %v3601 = vrot.slane %v3481, 7
    %v3602 = vor.u32 %v3601, %v3484
    %v3603 = vsel %vm624, %v3598, %v3602
    %v3604 = vrot.slane %v3490, 7
    %v3605 = vor.u32 %v3604, %v3493
    %v3606 = vsel %vm624, %v3601, %v3605
    %v3607 = vrot.slane %v3499, 7
    %v3608 = vor.u32 %v3607, %v3502
    %v3609 = vsel %vm624, %v3604, %v3608
    %v3610 = vrot.slane %v3508, 7
    %v3611 = vor.u32 %v3610, %v3511
    %v3612 = vsel %vm624, %v3607, %v3611
    %v3613 = vrot.slane %v3517, 7
    %v3614 = vor.u32 %v3613, %v3520
    %v3615 = vsel %vm624, %v3610, %v3614
    %v3616 = vor.u32 %v3594, %v3457
    %v3617 = vsel %vm624, %v3613, %v3616
    %v3619 = vsel %vm883, %v3594, %v3597
    %v3620 = vrot.slane %v3467, 1
    %v3621 = vor.u32 %v3464, %v3620
    %v3622 = vrot.slane %v3475, 1
    %v3623 = vsel %vm888, %v3621, %v3622
    %v3624 = vor.u32 %v3472, %v3622
    %v3625 = vrot.slane %v3484, 1
    %v3626 = vsel %vm888, %v3624, %v3625
    %v3627 = vor.u32 %v3481, %v3625
    %v3628 = vrot.slane %v3493, 1
    %v3629 = vsel %vm888, %v3627, %v3628
    %v3630 = vor.u32 %v3490, %v3628
    %v3631 = vrot.slane %v3502, 1
    %v3632 = vsel %vm888, %v3630, %v3631
    %v3633 = vor.u32 %v3499, %v3631
    %v3634 = vrot.slane %v3511, 1
    %v3635 = vsel %vm888, %v3633, %v3634
    %v3636 = vor.u32 %v3508, %v3634
    %v3637 = vrot.slane %v3520, 1
    %v3638 = vsel %vm888, %v3636, %v3637
    %v3639 = vor.u32 %v3517, %v3637
    %v3640 = vrot.slane %v3457, 1
    %v3641 = vsel %vm888, %v3639, %v3640
    %v3642 = vor.u32 %v3454, %v3640
    %v3645 = vsel %vm984, %v3642, %v3620
    %3647 = vrot.lane.b32.xlu0 %v3557, 24
    %v3648 = vpop.permute.xlu0 %3647
    %3649 = vrot.lane.b32.xlu0 %v3542, 24
    %v3650 = vpop.permute.xlu0 %3649
    %3651 = vrot.lane.b32.xlu0 %v3544, 24
    %v3652 = vpop.permute.xlu0 %3651
    %3653 = vrot.lane.b32.xlu0 %v3546, 24
    %v3654 = vpop.permute.xlu0 %3653
    %3655 = vrot.lane.b32.xlu0 %v3548, 24
    %v3656 = vpop.permute.xlu0 %3655
    %3657 = vrot.lane.b32.xlu0 %v3550, 24
    %v3658 = vpop.permute.xlu0 %3657
    %3659 = vrot.lane.b32.xlu0 %v3552, 24
    %v3660 = vpop.permute.xlu0 %3659
    %3661 = vrot.lane.b32.xlu0 %v3553, 24
    %v3662 = vpop.permute.xlu0 %3661
    %3664 = vrot.lane.b32.xlu0 %v3593, 48
    %v3665 = vpop.permute.xlu0 %3664
    %3666 = vrot.lane.b32.xlu0 %v3569, 48
    %v3667 = vpop.permute.xlu0 %3666
    %3668 = vrot.lane.b32.xlu0 %v3573, 48
    %v3669 = vpop.permute.xlu0 %3668
    %3670 = vrot.lane.b32.xlu0 %v3577, 48
    %v3671 = vpop.permute.xlu0 %3670
    %3672 = vrot.lane.b32.xlu0 %v3581, 48
    %v3673 = vpop.permute.xlu0 %3672
    %3674 = vrot.lane.b32.xlu0 %v3585, 48
    %v3675 = vpop.permute.xlu0 %3674
    %3676 = vrot.lane.b32.xlu0 %v3589, 48
    %v3677 = vpop.permute.xlu0 %3676
    %3678 = vrot.lane.b32.xlu0 %v3590, 48
    %v3679 = vpop.permute.xlu0 %3678
    %3681 = vrot.lane.b32.xlu0 %v3619, 72
    %v3682 = vpop.permute.xlu0 %3681
    %3683 = vrot.lane.b32.xlu0 %v3600, 72
    %v3684 = vpop.permute.xlu0 %3683
    %3685 = vrot.lane.b32.xlu0 %v3603, 72
    %v3686 = vpop.permute.xlu0 %3685
    %3687 = vrot.lane.b32.xlu0 %v3606, 72
    %v3688 = vpop.permute.xlu0 %3687
    %3689 = vrot.lane.b32.xlu0 %v3609, 72
    %v3690 = vpop.permute.xlu0 %3689
    %3691 = vrot.lane.b32.xlu0 %v3612, 72
    %v3692 = vpop.permute.xlu0 %3691
    %3693 = vrot.lane.b32.xlu0 %v3615, 72
    %v3694 = vpop.permute.xlu0 %3693
    %3695 = vrot.lane.b32.xlu0 %v3617, 72
    %v3696 = vpop.permute.xlu0 %3695
    %3697 = vrot.lane.b32.xlu0 %v3445, 96
    %v3698 = vpop.permute.xlu0 %3697
    %3699 = vrot.lane.b32.xlu0 %v3446, 96
    %v3700 = vpop.permute.xlu0 %3699
    %3701 = vrot.lane.b32.xlu0 %v3447, 96
    %v3702 = vpop.permute.xlu0 %3701
    %3703 = vrot.lane.b32.xlu0 %v3448, 96
    %v3704 = vpop.permute.xlu0 %3703
    %3705 = vrot.lane.b32.xlu0 %v3449, 96
    %v3706 = vpop.permute.xlu0 %3705
    %3707 = vrot.lane.b32.xlu0 %v3450, 96
    %v3708 = vpop.permute.xlu0 %3707
    %3709 = vrot.lane.b32.xlu0 %v3451, 96
    %v3710 = vpop.permute.xlu0 %3709
    %3711 = vrot.lane.b32.xlu0 %v3452, 96
    %v3712 = vpop.permute.xlu0 %3711
    %3714 = vrot.lane.b32.xlu0 %v3623, 120
    %v3715 = vpop.permute.xlu0 %3714
    %3716 = vrot.lane.b32.xlu0 %v3626, 120
    %v3717 = vpop.permute.xlu0 %3716
    %3718 = vrot.lane.b32.xlu0 %v3629, 120
    %v3719 = vpop.permute.xlu0 %3718
    %3720 = vrot.lane.b32.xlu0 %v3632, 120
    %v3721 = vpop.permute.xlu0 %3720
    %3722 = vrot.lane.b32.xlu0 %v3635, 120
    %v3723 = vpop.permute.xlu0 %3722
    %3724 = vrot.lane.b32.xlu0 %v3638, 120
    %v3725 = vpop.permute.xlu0 %3724
    %3726 = vrot.lane.b32.xlu0 %v3641, 120
    %v3727 = vpop.permute.xlu0 %3726
    %3728 = vrot.lane.b32.xlu0 %v3645, 120
    %v3729 = vpop.permute.xlu0 %3728
    %3731 = vrot.lane.b32.xlu0 %v3479, 16
    %v3732 = vpop.permute.xlu0 %3731
    %3733 = vrot.lane.b32.xlu0 %v3488, 16
    %v3734 = vpop.permute.xlu0 %3733
    %3735 = vrot.lane.b32.xlu0 %v3497, 16
    %v3736 = vpop.permute.xlu0 %3735
    %3737 = vrot.lane.b32.xlu0 %v3506, 16
    %v3738 = vpop.permute.xlu0 %3737
    %3739 = vrot.lane.b32.xlu0 %v3515, 16
    %v3740 = vpop.permute.xlu0 %3739
    %3741 = vrot.lane.b32.xlu0 %v3524, 16
    %v3742 = vpop.permute.xlu0 %3741
    %3743 = vrot.lane.b32.xlu0 %v3525, 16
    %v3744 = vpop.permute.xlu0 %3743
    %3745 = vrot.lane.b32.xlu0 %v3529, 16
    %v3746 = vpop.permute.xlu0 %3745
    %3747 = vrot.lane.b32.xlu0 %v3542, 40
    %v3748 = vpop.permute.xlu0 %3747
    %3749 = vrot.lane.b32.xlu0 %v3544, 40
    %v3750 = vpop.permute.xlu0 %3749
    %3751 = vrot.lane.b32.xlu0 %v3546, 40
    %v3752 = vpop.permute.xlu0 %3751
    %3753 = vrot.lane.b32.xlu0 %v3548, 40
    %v3754 = vpop.permute.xlu0 %3753
    %3755 = vrot.lane.b32.xlu0 %v3550, 40
    %v3756 = vpop.permute.xlu0 %3755
    %3757 = vrot.lane.b32.xlu0 %v3552, 40
    %v3758 = vpop.permute.xlu0 %3757
    %3759 = vrot.lane.b32.xlu0 %v3553, 40
    %v3760 = vpop.permute.xlu0 %3759
    %3761 = vrot.lane.b32.xlu0 %v3557, 40
    %v3762 = vpop.permute.xlu0 %3761
    %3763 = vrot.lane.b32.xlu0 %v3569, 64
    %v3764 = vpop.permute.xlu0 %3763
    %3765 = vrot.lane.b32.xlu0 %v3573, 64
    %v3766 = vpop.permute.xlu0 %3765
    %3767 = vrot.lane.b32.xlu0 %v3577, 64
    %v3768 = vpop.permute.xlu0 %3767
    %3769 = vrot.lane.b32.xlu0 %v3581, 64
    %v3770 = vpop.permute.xlu0 %3769
    %3771 = vrot.lane.b32.xlu0 %v3585, 64
    %v3772 = vpop.permute.xlu0 %3771
    %3773 = vrot.lane.b32.xlu0 %v3589, 64
    %v3774 = vpop.permute.xlu0 %3773
    %3775 = vrot.lane.b32.xlu0 %v3590, 64
    %v3776 = vpop.permute.xlu0 %3775
    %3777 = vrot.lane.b32.xlu0 %v3593, 64
    %v3778 = vpop.permute.xlu0 %3777
    %vm3779 = vcmask 195584
    %v3782 = vsel %vm3779, %v3529, %v3648
    %v3785 = vsel %vm3779, %v3479, %v3650
    %v3788 = vsel %vm3779, %v3488, %v3652
    %v3791 = vsel %vm3779, %v3497, %v3654
    %v3794 = vsel %vm3779, %v3506, %v3656
    %v3797 = vsel %vm3779, %v3515, %v3658
    %v3800 = vsel %vm3779, %v3524, %v3660
    %v3803 = vsel %vm3779, %v3525, %v3662
    %v3805 = vsel %vm1661, %v3782, %v3665
    %v3807 = vsel %vm1661, %v3785, %v3667
    %v3809 = vsel %vm1661, %v3788, %v3669
    %v3811 = vsel %vm1661, %v3791, %v3671
    %v3813 = vsel %vm1661, %v3794, %v3673
    %v3815 = vsel %vm1661, %v3797, %v3675
    %v3817 = vsel %vm1661, %v3800, %v3677
    %v3819 = vsel %vm1661, %v3803, %v3679
    %vm3820 = vcmask 588800
    %v3822 = vsel %vm3820, %v3805, %v3682
    %v3824 = vsel %vm3820, %v3807, %v3684
    %v3826 = vsel %vm3820, %v3809, %v3686
    %v3828 = vsel %vm3820, %v3811, %v3688
    %v3830 = vsel %vm3820, %v3813, %v3690
    %v3832 = vsel %vm3820, %v3815, %v3692
    %v3834 = vsel %vm3820, %v3817, %v3694
    %v3836 = vsel %vm3820, %v3819, %v3696
    %v3838 = vsel %vm1856, %v3822, %v3698
    %v3840 = vsel %vm1856, %v3824, %v3700
    %v3842 = vsel %vm1856, %v3826, %v3702
    %v3844 = vsel %vm1856, %v3828, %v3704
    %v3846 = vsel %vm1856, %v3830, %v3706
    %v3848 = vsel %vm1856, %v3832, %v3708
    %v3850 = vsel %vm1856, %v3834, %v3710
    %v3852 = vsel %vm1856, %v3836, %v3712
    %vm3853 = vcmask 982016
    %v3855 = vsel %vm3853, %v3838, %v3715
    %v3858 = vsel %vm3853, %v3840, %v3717
    %v3861 = vsel %vm3853, %v3842, %v3719
    %v3864 = vsel %vm3853, %v3844, %v3721
    %v3867 = vsel %vm3853, %v3846, %v3723
    %v3870 = vsel %vm3853, %v3848, %v3725
    %v3873 = vsel %vm3853, %v3850, %v3727
    %v3876 = vsel %vm3853, %v3852, %v3729
    %v3879 = vsel %vm1499, %v3715, %v3732
    %v3881 = vsel %vm1499, %v3717, %v3734
    %v3883 = vsel %vm1499, %v3719, %v3736
    %v3885 = vsel %vm1499, %v3721, %v3738
    %v3887 = vsel %vm1499, %v3723, %v3740
    %v3889 = vsel %vm1499, %v3725, %v3742
    %v3891 = vsel %vm1499, %v3727, %v3744
    %v3893 = vsel %vm1499, %v3729, %v3746
    %vm3894 = vcmask 326656
    %v3896 = vsel %vm3894, %v3879, %v3748
    %v3898 = vsel %vm3894, %v3881, %v3750
    %v3900 = vsel %vm3894, %v3883, %v3752
    %v3902 = vsel %vm3894, %v3885, %v3754
    %v3904 = vsel %vm3894, %v3887, %v3756
    %v3906 = vsel %vm3894, %v3889, %v3758
    %v3908 = vsel %vm3894, %v3891, %v3760
    %v3910 = vsel %vm3894, %v3893, %v3762
    %v3912 = vsel %vm1726, %v3896, %v3764
    %v3915 = vsel %vm1726, %v3898, %v3766
    %v3918 = vsel %vm1726, %v3900, %v3768
    %v3921 = vsel %vm1726, %v3902, %v3770
    %v3924 = vsel %vm1726, %v3904, %v3772
    %v3927 = vsel %vm1726, %v3906, %v3774
    %v3930 = vsel %vm1726, %v3908, %v3776
    %v3933 = vsel %vm1726, %v3910, %v3778
    %v3951 = vunpack.c.l.b16 %v3429
    %v3952 = vunpack.c.h.b16 %v3429
    %v3953 = vunpack.c.l.b16 %v3430
    %v3954 = vunpack.c.h.b16 %v3430
    %v3955 = vunpack.c.l.b16 %v3431
    %v3956 = vunpack.c.h.b16 %v3431
    %v3957 = vunpack.c.l.b16 %v3432
    %v3958 = vunpack.c.h.b16 %v3432
    %v3959 = vunpack.c.l.b16 %v3433
    %v3960 = vunpack.c.h.b16 %v3433
    %v3961 = vunpack.c.l.b16 %v3434
    %v3962 = vunpack.c.h.b16 %v3434
    %v3963 = vunpack.c.l.b16 %v3435
    %v3964 = vunpack.c.h.b16 %v3435
    %v3965 = vunpack.c.l.b16 %v3436
    %v3966 = vunpack.c.h.b16 %v3436
    %v3967 = vunpack.c.l.b16 %v3437
    %v3968 = vunpack.c.h.b16 %v3437
    %v3969 = vunpack.c.l.b16 %v3438
    %v3970 = vunpack.c.h.b16 %v3438
    %v3971 = vunpack.c.l.b16 %v3439
    %v3972 = vunpack.c.h.b16 %v3439
    %v3973 = vunpack.c.l.b16 %v3440
    %v3974 = vunpack.c.h.b16 %v3440
    %v3975 = vunpack.c.l.b16 %v3441
    %v3976 = vunpack.c.h.b16 %v3441
    %v3977 = vunpack.c.l.b16 %v3442
    %v3978 = vunpack.c.h.b16 %v3442
    %v3979 = vunpack.c.l.b16 %v3443
    %v3980 = vunpack.c.h.b16 %v3443
    %v3981 = vunpack.c.l.b16 %v3444
    %v3982 = vunpack.c.h.b16 %v3444
    %v3983 = vpack.c.b16 %v3953, %v3951
    %v3984 = vpack.c.b16 %v3954, %v3952
    %v3985 = vpack.c.b16 %v3957, %v3955
    %v3986 = vpack.c.b16 %v3958, %v3956
    %v3987 = vpack.c.b16 %v3961, %v3959
    %v3988 = vpack.c.b16 %v3962, %v3960
    %v3989 = vpack.c.b16 %v3965, %v3963
    %v3990 = vpack.c.b16 %v3966, %v3964
    %v3991 = vpack.c.b16 %v3969, %v3967
    %v3992 = vpack.c.b16 %v3970, %v3968
    %v3993 = vpack.c.b16 %v3973, %v3971
    %v3994 = vpack.c.b16 %v3974, %v3972
    %v3995 = vpack.c.b16 %v3977, %v3975
    %v3996 = vpack.c.b16 %v3978, %v3976
    %v3997 = vpack.c.b16 %v3981, %v3979
    %v3998 = vpack.c.b16 %v3982, %v3980
    %v4015 = vmul.bf16 %v3855, %v3983
    %v4016 = vmul.bf16 %v3912, %v3984
    %v4017 = vmul.bf16 %v3858, %v3985
    %v4018 = vmul.bf16 %v3915, %v3986
    %v4019 = vmul.bf16 %v3861, %v3987
    %v4020 = vmul.bf16 %v3918, %v3988
    %v4021 = vmul.bf16 %v3864, %v3989
    %v4022 = vmul.bf16 %v3921, %v3990
    %v4023 = vmul.bf16 %v3867, %v3991
    %v4024 = vmul.bf16 %v3924, %v3992
    %v4025 = vmul.bf16 %v3870, %v3993
    %v4026 = vmul.bf16 %v3927, %v3994
    %v4027 = vmul.bf16 %v3873, %v3995
    %v4028 = vmul.bf16 %v3930, %v3996
    %v4029 = vmul.bf16 %v3876, %v3997
    %v4030 = vmul.bf16 %v3933, %v3998
    %v4031 = vld [vmem:[%s7] sm:$0xf]
    %v4032 = vld [vmem:[%s7 + $0x4] sm:$0xf]
    %v4033 = vld [vmem:[%s7 + $0x8] sm:$0xf]
    %v4034 = vld [vmem:[%s7 + $0xc] sm:$0xf]
    %v4035 = vld [vmem:[%s7 + $0x10] sm:$0xf]
    %v4036 = vld [vmem:[%s7 + $0x14] sm:$0xf]
    %v4037 = vld [vmem:[%s7 + $0x18] sm:$0xf]
    %v4038 = vld [vmem:[%s7 + $0x1c] sm:$0xf]
    %v4039 = vld [vmem:[%s7 + $0x20] sm:$0xf]
    %v4040 = vld [vmem:[%s7 + $0x24] sm:$0xf]
    %v4041 = vld [vmem:[%s7 + $0x28] sm:$0xf]
    %v4042 = vld [vmem:[%s7 + $0x2c] sm:$0xf]
    %v4043 = vld [vmem:[%s7 + $0x30] sm:$0xf]
    %v4044 = vld [vmem:[%s7 + $0x34] sm:$0xf]
    %v4045 = vld [vmem:[%s7 + $0x38] sm:$0xf]
    %v4046 = vld [vmem:[%s7 + $0x3c] sm:$0xf]
    %v4047 = vld [vmem:[%s7 + $0x40] sm:$0xf]
    %v4048 = vld [vmem:[%s7 + $0x44] sm:$0xf]
    %v4049 = vld [vmem:[%s7 + $0x48] sm:$0xf]
    %v4050 = vld [vmem:[%s7 + $0x4c] sm:$0xf]
    %v4051 = vld [vmem:[%s7 + $0x50] sm:$0xf]
    %v4052 = vld [vmem:[%s7 + $0x54] sm:$0xf]
    %v4053 = vld [vmem:[%s7 + $0x58] sm:$0xf]
    %v4054 = vld [vmem:[%s7 + $0x5c] sm:$0xf]
    %v4055 = vld [vmem:[%s7 + $0x60] sm:$0xf]
    %v4056 = vld [vmem:[%s7 + $0x64] sm:$0xf]
    %v4057 = vld [vmem:[%s7 + $0x68] sm:$0xf]
    %v4058 = vld [vmem:[%s8] sm:$0x1]
    %v4060 = vlaneseq
    %v4061 = vshrl.u32 %v4060, 7
    %v4062 = vsub.s32 0, %v4061
    %v4063 = vrot.slane %v4058, %v4062
    %v4092 = vunpack.c.l.b16 %v4031
    %v4093 = vunpack.c.l.b16 %v4032
    %v4094 = vunpack.c.l.b16 %v4033
    %v4095 = vunpack.c.l.b16 %v4034
    %v4096 = vunpack.c.l.b16 %v4035
    %v4097 = vunpack.c.l.b16 %v4036
    %v4098 = vunpack.c.l.b16 %v4037
    %v4099 = vunpack.c.l.b16 %v4038
    %v4100 = vunpack.c.l.b16 %v4039
    %v4101 = vunpack.c.l.b16 %v4040
    %v4102 = vunpack.c.l.b16 %v4041
    %v4103 = vunpack.c.l.b16 %v4042
    %v4104 = vunpack.c.l.b16 %v4043
    %v4105 = vunpack.c.l.b16 %v4044
    %v4106 = vunpack.c.l.b16 %v4045
    %v4107 = vunpack.c.l.b16 %v4046
    %v4108 = vunpack.c.l.b16 %v4047
    %v4109 = vunpack.c.l.b16 %v4048
    %v4110 = vunpack.c.l.b16 %v4049
    %v4111 = vunpack.c.l.b16 %v4050
    %v4112 = vunpack.c.l.b16 %v4051
    %v4113 = vunpack.c.l.b16 %v4052
    %v4114 = vunpack.c.l.b16 %v4053
    %v4115 = vunpack.c.l.b16 %v4054
    %v4116 = vunpack.c.l.b16 %v4055
    %v4117 = vunpack.c.l.b16 %v4056
    %v4118 = vunpack.c.l.b16 %v4057
    %v4119 = vpack.c.b16 %v4093, %v4092
    %v4120 = vpack.c.b16 %v4095, %v4094
    %v4121 = vpack.c.b16 %v4097, %v4096
    %v4122 = vpack.c.b16 %v4099, %v4098
    %v4123 = vpack.c.b16 %v4101, %v4100
    %v4124 = vpack.c.b16 %v4103, %v4102
    %v4125 = vpack.c.b16 %v4105, %v4104
    %v4126 = vpack.c.b16 %v4107, %v4106
    %v4127 = vpack.c.b16 %v4109, %v4108
    %v4128 = vpack.c.b16 %v4111, %v4110
    %v4129 = vpack.c.b16 %v4113, %v4112
    %v4130 = vpack.c.b16 %v4115, %v4114
    %v4131 = vpack.c.b16 %v4117, %v4116
    %v4132 = vpack.c.b16 %v4118, %v4118
    %vm4146 = vcmask 719872
    %v4148 = vsel %vm4146, %v4016, 0
    %v4151 = vsel %vm4146, %v4018, 0
    %v4154 = vsel %vm4146, %v4020, 0
    %v4157 = vsel %vm4146, %v4022, 0
    %v4160 = vsel %vm4146, %v4024, 0
    %v4163 = vsel %vm4146, %v4026, 0
    %v4166 = vsel %vm4146, %v4028, 0
    %v4169 = vsel %vm4146, %v4030, 0
    %v4172 = vsel %vm3554, %v4132, 0
    %4174 = vmatprep.subr.bf16.mxu0 0
    %4175 = vmatpush1.bf16.msra.mxu0 %v4126
    %4176 = vmatprep.subr.bf16.mxu0 0
    %4177 = vmatpush1.bf16.msra.mxu0 %v4125
    %4178 = vmatprep.subr.bf16.mxu0 0
    %4179 = vmatpush1.bf16.msra.mxu0 %v4124
    %4180 = vmatprep.subr.bf16.mxu0 0
    %4181 = vmatpush1.bf16.msra.mxu0 %v4123
    %4182 = vmatprep.subr.bf16.mxu0 0
    %4183 = vmatpush1.bf16.msra.mxu0 %v4122
    %4184 = vmatprep.subr.bf16.mxu0 0
    %4185 = vmatpush1.bf16.msra.mxu0 %v4121
    %4186 = vmatprep.subr.bf16.mxu0 0
    %4187 = vmatpush1.bf16.msra.mxu0 %v4120
    %4188 = vmatprep.subr.bf16.mxu0 0
    %4189 = vmatpush1.bf16.msra.mxu0 %v4119
    %4190 = vmatprep.subr.bf16.mxu0 0
    %4191 = vmatpush2.bf16.msra.mxu0 0
    %4192 = vmatprep.subr.bf16.mxu0 0
    %4193 = vmatpush2.bf16.msra.mxu0 0
    %4194 = vmatprep.subr.bf16.mxu0 0
    %4195 = vmatpush2.bf16.msra.mxu0 %v4172
    %4196 = vmatprep.subr.bf16.mxu0 0
    %4197 = vmatpush2.bf16.msra.mxu0 %v4131
    %4198 = vmatprep.subr.bf16.mxu0 0
    %4199 = vmatpush2.bf16.msra.mxu0 %v4130
    %4200 = vmatprep.subr.bf16.mxu0 0
    %4201 = vmatpush2.bf16.msra.mxu0 %v4129
    %4202 = vmatprep.subr.bf16.mxu0 0
    %4203 = vmatpush2.bf16.msra.mxu0 %v4128
    %4204 = vmatprep.subr.bf16.mxu0 0
    %4205 = vmatpush2.bf16.msra.mxu0 %v4127
    %4206 = vmatprep.mubr.bf16.mxu0 %v4148
    %4207 = vmatmul.mubr.bf16.gmra.mxu0 %v4015
    %v4208 = vpop.f32.mrf.mxu0
    %v4209 = vadd.f32 %v4063, %v4208
    %v4210 = vpop.f32.mrf.mxu0
    %v4211 = vpop.f32.mrf.mxu0
    %v4212 = vadd.f32 %v4063, %v4211
    %v4213 = vpop.f32.mrf.mxu0
    %4214 = vmatprep.mubr.bf16.mxu0 %v4151
    %4215 = vmatmul.mubr.bf16.gmra.mxu0 %v4017
    %v4216 = vpop.f32.mrf.mxu0
    %v4217 = vadd.f32 %v4063, %v4216
    %v4218 = vpop.f32.mrf.mxu0
    %v4219 = vpop.f32.mrf.mxu0
    %v4220 = vadd.f32 %v4063, %v4219
    %v4221 = vpop.f32.mrf.mxu0
    %4222 = vmatprep.mubr.bf16.mxu0 %v4154
    %4223 = vmatmul.mubr.bf16.gmra.mxu0 %v4019
    %v4224 = vpop.f32.mrf.mxu0
    %v4225 = vadd.f32 %v4063, %v4224
    %v4226 = vpop.f32.mrf.mxu0
    %v4227 = vpop.f32.mrf.mxu0
    %v4228 = vadd.f32 %v4063, %v4227
    %v4229 = vpop.f32.mrf.mxu0
    %4230 = vmatprep.mubr.bf16.mxu0 %v4157
    %4231 = vmatmul.mubr.bf16.gmra.mxu0 %v4021
    %v4232 = vpop.f32.mrf.mxu0
    %v4233 = vadd.f32 %v4063, %v4232
    %v4234 = vpop.f32.mrf.mxu0
    %v4235 = vpop.f32.mrf.mxu0
    %v4236 = vadd.f32 %v4063, %v4235
    %v4237 = vpop.f32.mrf.mxu0
    %4238 = vmatprep.mubr.bf16.mxu0 %v4160
    %4239 = vmatmul.mubr.bf16.gmra.mxu0 %v4023
    %v4240 = vpop.f32.mrf.mxu0
    %v4241 = vadd.f32 %v4063, %v4240
    %v4242 = vpop.f32.mrf.mxu0
    %v4243 = vpop.f32.mrf.mxu0
    %v4244 = vadd.f32 %v4063, %v4243
    %v4245 = vpop.f32.mrf.mxu0
    %4246 = vmatprep.mubr.bf16.mxu0 %v4163
    %4247 = vmatmul.mubr.bf16.gmra.mxu0 %v4025
    %v4248 = vpop.f32.mrf.mxu0
    %v4249 = vadd.f32 %v4063, %v4248
    %v4250 = vpop.f32.mrf.mxu0
    %v4251 = vpop.f32.mrf.mxu0
    %v4252 = vadd.f32 %v4063, %v4251
    %v4253 = vpop.f32.mrf.mxu0
    %4254 = vmatprep.mubr.bf16.mxu0 %v4166
    %4255 = vmatmul.mubr.bf16.gmra.mxu0 %v4027
    %v4256 = vpop.f32.mrf.mxu0
    %v4257 = vadd.f32 %v4063, %v4256
    %v4258 = vpop.f32.mrf.mxu0
    %v4259 = vpop.f32.mrf.mxu0
    %v4260 = vadd.f32 %v4063, %v4259
    %v4261 = vpop.f32.mrf.mxu0
    %4262 = vmatprep.mubr.bf16.mxu0 %v4169
    %4263 = vmatmul.mubr.bf16.gmra.mxu0 %v4029
    %v4264 = vpop.f32.mrf.mxu0
    %v4265 = vadd.f32 %v4063, %v4264
    %v4266 = vpop.f32.mrf.mxu0
    %v4267 = vpop.f32.mrf.mxu0
    %v4268 = vadd.f32 %v4063, %v4267
    %v4269 = vpop.f32.mrf.mxu0
    %4270 = vdwg.mxu0
    %v4271 = vpack.c.bf16 %v4212, %v4209
    %v4272 = vpack.c.bf16 %v4220, %v4217
    %v4273 = vpack.c.bf16 %v4228, %v4225
    %v4274 = vpack.c.bf16 %v4236, %v4233
    %v4275 = vpack.c.bf16 %v4244, %v4241
    %v4276 = vpack.c.bf16 %v4252, %v4249
    %v4277 = vpack.c.bf16 %v4260, %v4257
    %v4278 = vpack.c.bf16 %v4268, %v4265
    %v4280 = vshrl.u32 %v4271, 16
    %v4282 = vshll.u32 %v4271, 16
    %v4284 = vrot.slane %v4282, 1
    %v4285 = vor.u32 %v4280, %v4284
    %v4287 = vshll.u32 %v4272, 16
    %v4289 = vrot.slane %v4287, 1
    %v4290 = vsel %vm888, %v4285, %v4289
    %v4291 = vshrl.u32 %v4272, 16
    %v4293 = vor.u32 %v4291, %v4289
    %v4295 = vshll.u32 %v4273, 16
    %v4297 = vrot.slane %v4295, 1
    %v4298 = vsel %vm888, %v4293, %v4297
    %v4299 = vshrl.u32 %v4273, 16
    %v4301 = vor.u32 %v4299, %v4297
    %v4303 = vshll.u32 %v4274, 16
    %v4305 = vrot.slane %v4303, 1
    %v4306 = vsel %vm888, %v4301, %v4305
    %v4307 = vshrl.u32 %v4274, 16
    %v4309 = vor.u32 %v4307, %v4305
    %v4311 = vshll.u32 %v4275, 16
    %v4313 = vrot.slane %v4311, 1
    %v4314 = vsel %vm888, %v4309, %v4313
    %v4315 = vshrl.u32 %v4275, 16
    %v4317 = vor.u32 %v4315, %v4313
    %v4319 = vshll.u32 %v4276, 16
    %v4321 = vrot.slane %v4319, 1
    %v4322 = vsel %vm888, %v4317, %v4321
    %v4323 = vshrl.u32 %v4276, 16
    %v4325 = vor.u32 %v4323, %v4321
    %v4327 = vshll.u32 %v4277, 16
    %v4329 = vrot.slane %v4327, 1
    %v4330 = vsel %vm888, %v4325, %v4329
    %v4331 = vshrl.u32 %v4277, 16
    %v4333 = vor.u32 %v4331, %v4329
    %v4335 = vshll.u32 %v4278, 16
    %v4337 = vrot.slane %v4335, 1
    %v4338 = vsel %vm888, %v4333, %v4337
    %v4339 = vshrl.u32 %v4278, 16
    %v4341 = vor.u32 %v4339, %v4337
    %v4351 = vsel %vm984, %v4341, %v4284
    %v4352 = vmax.bf16 %v4271, %v4290
    %v4353 = vmax.bf16 %v4272, %v4298
    %v4354 = vmax.bf16 %v4273, %v4306
    %v4355 = vmax.bf16 %v4274, %v4314
    %v4356 = vmax.bf16 %v4275, %v4322
    %v4357 = vmax.bf16 %v4276, %v4330
    %v4358 = vmax.bf16 %v4277, %v4338
    %v4359 = vmax.bf16 %v4278, %v4351
    %v4368 = vrot.slane %v4352, 4
    %v4369 = vrot.slane %v4353, 4
    %v4370 = vsel %vm3539, %v4368, %v4369
    %v4371 = vrot.slane %v4354, 4
    %v4372 = vsel %vm3539, %v4369, %v4371
    %v4373 = vrot.slane %v4355, 4
    %v4374 = vsel %vm3539, %v4371, %v4373
    %v4375 = vrot.slane %v4356, 4
    %v4376 = vsel %vm3539, %v4373, %v4375
    %v4377 = vrot.slane %v4357, 4
    %v4378 = vsel %vm3539, %v4375, %v4377
    %v4379 = vrot.slane %v4358, 4
    %v4380 = vsel %vm3539, %v4377, %v4379
    %v4381 = vrot.slane %v4359, 4
    %v4382 = vsel %vm3539, %v4379, %v4381
    %v4392 = vsel %vm3554, %v4381, %v4368
    %v4394 = vmax.bf16 %v4352, %v4370
    %v4395 = vmax.bf16 %v4353, %v4372
    %v4396 = vmax.bf16 %v4354, %v4374
    %v4397 = vmax.bf16 %v4355, %v4376
    %v4398 = vmax.bf16 %v4356, %v4378
    %v4399 = vmax.bf16 %v4357, %v4380
    %v4400 = vmax.bf16 %v4358, %v4382
    %v4401 = vmax.bf16 %v4359, %v4392
    %4410 = vrot.lane.b32.xlu0 %v4394, 12
    %v4411 = vpop.permute.xlu0 %4410
    %4412 = vrot.lane.b32.xlu0 %v4395, 12
    %v4413 = vpop.permute.xlu0 %4412
    %4414 = vrot.lane.b32.xlu0 %v4396, 12
    %v4415 = vpop.permute.xlu0 %4414
    %4416 = vrot.lane.b32.xlu0 %v4397, 12
    %v4417 = vpop.permute.xlu0 %4416
    %4418 = vrot.lane.b32.xlu0 %v4398, 12
    %v4419 = vpop.permute.xlu0 %4418
    %4420 = vrot.lane.b32.xlu0 %v4399, 12
    %v4421 = vpop.permute.xlu0 %4420
    %4422 = vrot.lane.b32.xlu0 %v4400, 12
    %v4423 = vpop.permute.xlu0 %4422
    %4424 = vrot.lane.b32.xlu0 %v4401, 12
    %v4425 = vpop.permute.xlu0 %4424
    %4426 = vrot.lane.b32.xlu0 %v4394, 24
    %v4427 = vpop.permute.xlu0 %4426
    %4428 = vrot.lane.b32.xlu0 %v4395, 24
    %v4429 = vpop.permute.xlu0 %4428
    %4430 = vrot.lane.b32.xlu0 %v4396, 24
    %v4431 = vpop.permute.xlu0 %4430
    %4432 = vrot.lane.b32.xlu0 %v4397, 24
    %v4433 = vpop.permute.xlu0 %4432
    %4434 = vrot.lane.b32.xlu0 %v4398, 24
    %v4435 = vpop.permute.xlu0 %4434
    %4436 = vrot.lane.b32.xlu0 %v4399, 24
    %v4437 = vpop.permute.xlu0 %4436
    %4438 = vrot.lane.b32.xlu0 %v4400, 24
    %v4439 = vpop.permute.xlu0 %4438
    %4440 = vrot.lane.b32.xlu0 %v4401, 24
    %v4441 = vpop.permute.xlu0 %4440
    %4442 = vrot.lane.b32.xlu0 %v4394, 36
    %v4443 = vpop.permute.xlu0 %4442
    %4444 = vrot.lane.b32.xlu0 %v4395, 36
    %v4445 = vpop.permute.xlu0 %4444
    %4446 = vrot.lane.b32.xlu0 %v4396, 36
    %v4447 = vpop.permute.xlu0 %4446
    %4448 = vrot.lane.b32.xlu0 %v4397, 36
    %v4449 = vpop.permute.xlu0 %4448
    %4450 = vrot.lane.b32.xlu0 %v4398, 36
    %v4451 = vpop.permute.xlu0 %4450
    %4452 = vrot.lane.b32.xlu0 %v4399, 36
    %v4453 = vpop.permute.xlu0 %4452
    %4454 = vrot.lane.b32.xlu0 %v4400, 36
    %v4455 = vpop.permute.xlu0 %4454
    %4456 = vrot.lane.b32.xlu0 %v4401, 36
    %v4457 = vpop.permute.xlu0 %4456
    %4458 = vrot.lane.b32.xlu0 %v4394, 48
    %v4459 = vpop.permute.xlu0 %4458
    %4460 = vrot.lane.b32.xlu0 %v4395, 48
    %v4461 = vpop.permute.xlu0 %4460
    %4462 = vrot.lane.b32.xlu0 %v4396, 48
    %v4463 = vpop.permute.xlu0 %4462
    %4464 = vrot.lane.b32.xlu0 %v4397, 48
    %v4465 = vpop.permute.xlu0 %4464
    %4466 = vrot.lane.b32.xlu0 %v4398, 48
    %v4467 = vpop.permute.xlu0 %4466
    %4468 = vrot.lane.b32.xlu0 %v4399, 48
    %v4469 = vpop.permute.xlu0 %4468
    %4470 = vrot.lane.b32.xlu0 %v4400, 48
    %v4471 = vpop.permute.xlu0 %4470
    %4472 = vrot.lane.b32.xlu0 %v4401, 48
    %v4473 = vpop.permute.xlu0 %4472
    %4474 = vrot.lane.b32.xlu0 %v4394, 60
    %v4475 = vpop.permute.xlu0 %4474
    %4476 = vrot.lane.b32.xlu0 %v4395, 60
    %v4477 = vpop.permute.xlu0 %4476
    %4478 = vrot.lane.b32.xlu0 %v4396, 60
    %v4479 = vpop.permute.xlu0 %4478
    %4480 = vrot.lane.b32.xlu0 %v4397, 60
    %v4481 = vpop.permute.xlu0 %4480
    %4482 = vrot.lane.b32.xlu0 %v4398, 60
    %v4483 = vpop.permute.xlu0 %4482
    %4484 = vrot.lane.b32.xlu0 %v4399, 60
    %v4485 = vpop.permute.xlu0 %4484
    %4486 = vrot.lane.b32.xlu0 %v4400, 60
    %v4487 = vpop.permute.xlu0 %4486
    %4488 = vrot.lane.b32.xlu0 %v4401, 60
    %v4489 = vpop.permute.xlu0 %4488
    %4490 = vrot.lane.b32.xlu0 %v4394, 72
    %v4491 = vpop.permute.xlu0 %4490
    %4492 = vrot.lane.b32.xlu0 %v4395, 72
    %v4493 = vpop.permute.xlu0 %4492
    %4494 = vrot.lane.b32.xlu0 %v4396, 72
    %v4495 = vpop.permute.xlu0 %4494
    %4496 = vrot.lane.b32.xlu0 %v4397, 72
    %v4497 = vpop.permute.xlu0 %4496
    %4498 = vrot.lane.b32.xlu0 %v4398, 72
    %v4499 = vpop.permute.xlu0 %4498
    %4500 = vrot.lane.b32.xlu0 %v4399, 72
    %v4501 = vpop.permute.xlu0 %4500
    %4502 = vrot.lane.b32.xlu0 %v4400, 72
    %v4503 = vpop.permute.xlu0 %4502
    %4504 = vrot.lane.b32.xlu0 %v4401, 72
    %v4505 = vpop.permute.xlu0 %4504
    %4506 = vrot.lane.b32.xlu0 %v4394, 84
    %v4507 = vpop.permute.xlu0 %4506
    %4508 = vrot.lane.b32.xlu0 %v4395, 84
    %v4509 = vpop.permute.xlu0 %4508
    %4510 = vrot.lane.b32.xlu0 %v4396, 84
    %v4511 = vpop.permute.xlu0 %4510
    %4512 = vrot.lane.b32.xlu0 %v4397, 84
    %v4513 = vpop.permute.xlu0 %4512
    %4514 = vrot.lane.b32.xlu0 %v4398, 84
    %v4515 = vpop.permute.xlu0 %4514
    %4516 = vrot.lane.b32.xlu0 %v4399, 84
    %v4517 = vpop.permute.xlu0 %4516
    %4518 = vrot.lane.b32.xlu0 %v4400, 84
    %v4519 = vpop.permute.xlu0 %4518
    %4520 = vrot.lane.b32.xlu0 %v4401, 84
    %v4521 = vpop.permute.xlu0 %4520
    %4522 = vrot.lane.b32.xlu0 %v4394, 96
    %v4523 = vpop.permute.xlu0 %4522
    %4524 = vrot.lane.b32.xlu0 %v4395, 96
    %v4525 = vpop.permute.xlu0 %4524
    %4526 = vrot.lane.b32.xlu0 %v4396, 96
    %v4527 = vpop.permute.xlu0 %4526
    %4528 = vrot.lane.b32.xlu0 %v4397, 96
    %v4529 = vpop.permute.xlu0 %4528
    %4530 = vrot.lane.b32.xlu0 %v4398, 96
    %v4531 = vpop.permute.xlu0 %4530
    %4532 = vrot.lane.b32.xlu0 %v4399, 96
    %v4533 = vpop.permute.xlu0 %4532
    %4534 = vrot.lane.b32.xlu0 %v4400, 96
    %v4535 = vpop.permute.xlu0 %4534
    %4536 = vrot.lane.b32.xlu0 %v4401, 96
    %v4537 = vpop.permute.xlu0 %4536
    %4538 = vrot.lane.b32.xlu0 %v4394, 108
    %v4539 = vpop.permute.xlu0 %4538
    %4540 = vrot.lane.b32.xlu0 %v4395, 108
    %v4541 = vpop.permute.xlu0 %4540
    %4542 = vrot.lane.b32.xlu0 %v4396, 108
    %v4543 = vpop.permute.xlu0 %4542
    %4544 = vrot.lane.b32.xlu0 %v4397, 108
    %v4545 = vpop.permute.xlu0 %4544
    %4546 = vrot.lane.b32.xlu0 %v4398, 108
    %v4547 = vpop.permute.xlu0 %4546
    %4548 = vrot.lane.b32.xlu0 %v4399, 108
    %v4549 = vpop.permute.xlu0 %4548
    %4550 = vrot.lane.b32.xlu0 %v4400, 108
    %v4551 = vpop.permute.xlu0 %4550
    %4552 = vrot.lane.b32.xlu0 %v4401, 108
    %v4553 = vpop.permute.xlu0 %4552
    %4554 = vrot.lane.b32.xlu0 %v4394, 120
    %v4555 = vpop.permute.xlu0 %4554
    %4556 = vrot.lane.b32.xlu0 %v4395, 120
    %v4557 = vpop.permute.xlu0 %4556
    %4558 = vrot.lane.b32.xlu0 %v4396, 120
    %v4559 = vpop.permute.xlu0 %4558
    %4560 = vrot.lane.b32.xlu0 %v4397, 120
    %v4561 = vpop.permute.xlu0 %4560
    %4562 = vrot.lane.b32.xlu0 %v4398, 120
    %v4563 = vpop.permute.xlu0 %4562
    %4564 = vrot.lane.b32.xlu0 %v4399, 120
    %v4565 = vpop.permute.xlu0 %4564
    %4566 = vrot.lane.b32.xlu0 %v4400, 120
    %v4567 = vpop.permute.xlu0 %4566
    %4568 = vrot.lane.b32.xlu0 %v4401, 120
    %v4569 = vpop.permute.xlu0 %4568
    %4570 = vrot.lane.b32.xlu0 %v4394, 4
    %v4571 = vpop.permute.xlu0 %4570
    %4572 = vrot.lane.b32.xlu0 %v4395, 4
    %v4573 = vpop.permute.xlu0 %4572
    %4574 = vrot.lane.b32.xlu0 %v4396, 4
    %v4575 = vpop.permute.xlu0 %4574
    %4576 = vrot.lane.b32.xlu0 %v4397, 4
    %v4577 = vpop.permute.xlu0 %4576
    %4578 = vrot.lane.b32.xlu0 %v4398, 4
    %v4579 = vpop.permute.xlu0 %4578
    %4580 = vrot.lane.b32.xlu0 %v4399, 4
    %v4581 = vpop.permute.xlu0 %4580
    %4582 = vrot.lane.b32.xlu0 %v4400, 4
    %v4583 = vpop.permute.xlu0 %4582
    %4584 = vrot.lane.b32.xlu0 %v4401, 4
    %v4585 = vpop.permute.xlu0 %4584
    %4586 = vrot.lane.b32.xlu0 %v4394, 16
    %v4587 = vpop.permute.xlu0 %4586
    %4588 = vrot.lane.b32.xlu0 %v4395, 16
    %v4589 = vpop.permute.xlu0 %4588
    %4590 = vrot.lane.b32.xlu0 %v4396, 16
    %v4591 = vpop.permute.xlu0 %4590
    %4592 = vrot.lane.b32.xlu0 %v4397, 16
    %v4593 = vpop.permute.xlu0 %4592
    %4594 = vrot.lane.b32.xlu0 %v4398, 16
    %v4595 = vpop.permute.xlu0 %4594
    %4596 = vrot.lane.b32.xlu0 %v4399, 16
    %v4597 = vpop.permute.xlu0 %4596
    %4598 = vrot.lane.b32.xlu0 %v4400, 16
    %v4599 = vpop.permute.xlu0 %4598
    %4600 = vrot.lane.b32.xlu0 %v4401, 16
    %v4601 = vpop.permute.xlu0 %4600
    %4602 = vrot.lane.b32.xlu0 %v4394, 28
    %v4603 = vpop.permute.xlu0 %4602
    %4604 = vrot.lane.b32.xlu0 %v4395, 28
    %v4605 = vpop.permute.xlu0 %4604
    %4606 = vrot.lane.b32.xlu0 %v4396, 28
    %v4607 = vpop.permute.xlu0 %4606
    %4608 = vrot.lane.b32.xlu0 %v4397, 28
    %v4609 = vpop.permute.xlu0 %4608
    %4610 = vrot.lane.b32.xlu0 %v4398, 28
    %v4611 = vpop.permute.xlu0 %4610
    %4612 = vrot.lane.b32.xlu0 %v4399, 28
    %v4613 = vpop.permute.xlu0 %4612
    %4614 = vrot.lane.b32.xlu0 %v4400, 28
    %v4615 = vpop.permute.xlu0 %4614
    %4616 = vrot.lane.b32.xlu0 %v4401, 28
    %v4617 = vpop.permute.xlu0 %4616
    %4618 = vrot.lane.b32.xlu0 %v4394, 40
    %v4619 = vpop.permute.xlu0 %4618
    %4620 = vrot.lane.b32.xlu0 %v4395, 40
    %v4621 = vpop.permute.xlu0 %4620
    %4622 = vrot.lane.b32.xlu0 %v4396, 40
    %v4623 = vpop.permute.xlu0 %4622
    %4624 = vrot.lane.b32.xlu0 %v4397, 40
    %v4625 = vpop.permute.xlu0 %4624
    %4626 = vrot.lane.b32.xlu0 %v4398, 40
    %v4627 = vpop.permute.xlu0 %4626
    %4628 = vrot.lane.b32.xlu0 %v4399, 40
    %v4629 = vpop.permute.xlu0 %4628
    %4630 = vrot.lane.b32.xlu0 %v4400, 40
    %v4631 = vpop.permute.xlu0 %4630
    %4632 = vrot.lane.b32.xlu0 %v4401, 40
    %v4633 = vpop.permute.xlu0 %4632
    %4634 = vrot.lane.b32.xlu0 %v4394, 52
    %v4635 = vpop.permute.xlu0 %4634
    %4636 = vrot.lane.b32.xlu0 %v4395, 52
    %v4637 = vpop.permute.xlu0 %4636
    %4638 = vrot.lane.b32.xlu0 %v4396, 52
    %v4639 = vpop.permute.xlu0 %4638
    %4640 = vrot.lane.b32.xlu0 %v4397, 52
    %v4641 = vpop.permute.xlu0 %4640
    %4642 = vrot.lane.b32.xlu0 %v4398, 52
    %v4643 = vpop.permute.xlu0 %4642
    %4644 = vrot.lane.b32.xlu0 %v4399, 52
    %v4645 = vpop.permute.xlu0 %4644
    %4646 = vrot.lane.b32.xlu0 %v4400, 52
    %v4647 = vpop.permute.xlu0 %4646
    %4648 = vrot.lane.b32.xlu0 %v4401, 52
    %v4649 = vpop.permute.xlu0 %4648
    %vm4650 = vcmask 97280
    %v4653 = vsel %vm4650, %v4394, %v4411
    %v4656 = vsel %vm4650, %v4395, %v4413
    %v4659 = vsel %vm4650, %v4396, %v4415
    %v4662 = vsel %vm4650, %v4397, %v4417
    %v4665 = vsel %vm4650, %v4398, %v4419
    %v4668 = vsel %vm4650, %v4399, %v4421
    %v4671 = vsel %vm4650, %v4400, %v4423
    %v4674 = vsel %vm4650, %v4401, %v4425
    %v4676 = vsel %vm3779, %v4653, %v4427
    %v4678 = vsel %vm3779, %v4656, %v4429
    %v4680 = vsel %vm3779, %v4659, %v4431
    %v4682 = vsel %vm3779, %v4662, %v4433
    %v4684 = vsel %vm3779, %v4665, %v4435
    %v4686 = vsel %vm3779, %v4668, %v4437
    %v4688 = vsel %vm3779, %v4671, %v4439
    %v4690 = vsel %vm3779, %v4674, %v4441
    %vm4691 = vcmask 293888
    %v4693 = vsel %vm4691, %v4676, %v4443
    %v4695 = vsel %vm4691, %v4678, %v4445
    %v4697 = vsel %vm4691, %v4680, %v4447
    %v4699 = vsel %vm4691, %v4682, %v4449
    %v4701 = vsel %vm4691, %v4684, %v4451
    %v4703 = vsel %vm4691, %v4686, %v4453
    %v4705 = vsel %vm4691, %v4688, %v4455
    %v4707 = vsel %vm4691, %v4690, %v4457
    %v4709 = vsel %vm1661, %v4693, %v4459
    %v4711 = vsel %vm1661, %v4695, %v4461
    %v4713 = vsel %vm1661, %v4697, %v4463
    %v4715 = vsel %vm1661, %v4699, %v4465
    %v4717 = vsel %vm1661, %v4701, %v4467
    %v4719 = vsel %vm1661, %v4703, %v4469
    %v4721 = vsel %vm1661, %v4705, %v4471
    %v4723 = vsel %vm1661, %v4707, %v4473
    %vm4724 = vcmask 490496
    %v4726 = vsel %vm4724, %v4709, %v4475
    %v4728 = vsel %vm4724, %v4711, %v4477
    %v4730 = vsel %vm4724, %v4713, %v4479
    %v4732 = vsel %vm4724, %v4715, %v4481
    %v4734 = vsel %vm4724, %v4717, %v4483
    %v4736 = vsel %vm4724, %v4719, %v4485
    %v4738 = vsel %vm4724, %v4721, %v4487
    %v4740 = vsel %vm4724, %v4723, %v4489
    %v4742 = vsel %vm3820, %v4726, %v4491
    %v4744 = vsel %vm3820, %v4728, %v4493
    %v4746 = vsel %vm3820, %v4730, %v4495
    %v4748 = vsel %vm3820, %v4732, %v4497
    %v4750 = vsel %vm3820, %v4734, %v4499
    %v4752 = vsel %vm3820, %v4736, %v4501
    %v4754 = vsel %vm3820, %v4738, %v4503
    %v4756 = vsel %vm3820, %v4740, %v4505
    %vm4757 = vcmask 687104
    %v4759 = vsel %vm4757, %v4742, %v4507
    %v4761 = vsel %vm4757, %v4744, %v4509
    %v4763 = vsel %vm4757, %v4746, %v4511
    %v4765 = vsel %vm4757, %v4748, %v4513
    %v4767 = vsel %vm4757, %v4750, %v4515
    %v4769 = vsel %vm4757, %v4752, %v4517
    %v4771 = vsel %vm4757, %v4754, %v4519
    %v4773 = vsel %vm4757, %v4756, %v4521
    %v4775 = vsel %vm1856, %v4759, %v4523
    %v4777 = vsel %vm1856, %v4761, %v4525
    %v4779 = vsel %vm1856, %v4763, %v4527
    %v4781 = vsel %vm1856, %v4765, %v4529
    %v4783 = vsel %vm1856, %v4767, %v4531
    %v4785 = vsel %vm1856, %v4769, %v4533
    %v4787 = vsel %vm1856, %v4771, %v4535
    %v4789 = vsel %vm1856, %v4773, %v4537
    %vm4790 = vcmask 883712
    %v4792 = vsel %vm4790, %v4775, %v4539
    %v4794 = vsel %vm4790, %v4777, %v4541
    %v4796 = vsel %vm4790, %v4779, %v4543
    %v4798 = vsel %vm4790, %v4781, %v4545
    %v4800 = vsel %vm4790, %v4783, %v4547
    %v4802 = vsel %vm4790, %v4785, %v4549
    %v4804 = vsel %vm4790, %v4787, %v4551
    %v4806 = vsel %vm4790, %v4789, %v4553
    %v4808 = vsel %vm3853, %v4792, %v4555
    %v4811 = vsel %vm3853, %v4794, %v4557
    %v4814 = vsel %vm3853, %v4796, %v4559
    %v4817 = vsel %vm3853, %v4798, %v4561
    %v4820 = vsel %vm3853, %v4800, %v4563
    %v4823 = vsel %vm3853, %v4802, %v4565
    %v4826 = vsel %vm3853, %v4804, %v4567
    %v4829 = vsel %vm3853, %v4806, %v4569
    %vm4831 = vcmask 31744
    %v4833 = vsel %vm4831, %v4555, %v4571
    %v4835 = vsel %vm4831, %v4557, %v4573
    %v4837 = vsel %vm4831, %v4559, %v4575
    %v4839 = vsel %vm4831, %v4561, %v4577
    %v4841 = vsel %vm4831, %v4563, %v4579
    %v4843 = vsel %vm4831, %v4565, %v4581
    %v4845 = vsel %vm4831, %v4567, %v4583
    %v4847 = vsel %vm4831, %v4569, %v4585
    %v4849 = vsel %vm1499, %v4833, %v4587
    %v4851 = vsel %vm1499, %v4835, %v4589
    %v4853 = vsel %vm1499, %v4837, %v4591
    %v4855 = vsel %vm1499, %v4839, %v4593
    %v4857 = vsel %vm1499, %v4841, %v4595
    %v4859 = vsel %vm1499, %v4843, %v4597
    %v4861 = vsel %vm1499, %v4845, %v4599
    %v4863 = vsel %vm1499, %v4847, %v4601
    %vm4864 = vcmask 228352
    %v4866 = vsel %vm4864, %v4849, %v4603
    %v4868 = vsel %vm4864, %v4851, %v4605
    %v4870 = vsel %vm4864, %v4853, %v4607
    %v4872 = vsel %vm4864, %v4855, %v4609
    %v4874 = vsel %vm4864, %v4857, %v4611
    %v4876 = vsel %vm4864, %v4859, %v4613
    %v4878 = vsel %vm4864, %v4861, %v4615
    %v4880 = vsel %vm4864, %v4863, %v4617
    %v4882 = vsel %vm3894, %v4866, %v4619
    %v4884 = vsel %vm3894, %v4868, %v4621
    %v4886 = vsel %vm3894, %v4870, %v4623
    %v4888 = vsel %vm3894, %v4872, %v4625
    %v4890 = vsel %vm3894, %v4874, %v4627
    %v4892 = vsel %vm3894, %v4876, %v4629
    %v4894 = vsel %vm3894, %v4878, %v4631
    %v4896 = vsel %vm3894, %v4880, %v4633
    %vm4897 = vcmask 424960
    %v4899 = vsel %vm4897, %v4882, %v4635
    %v4902 = vsel %vm4897, %v4884, %v4637
    %v4905 = vsel %vm4897, %v4886, %v4639
    %v4908 = vsel %vm4897, %v4888, %v4641
    %v4911 = vsel %vm4897, %v4890, %v4643
    %v4914 = vsel %vm4897, %v4892, %v4645
    %v4917 = vsel %vm4897, %v4894, %v4647
    %v4920 = vsel %vm4897, %v4896, %v4649
    %v4922 = vld [vmem:[%s10] sm:$0x1]
    %v4923 = vld [vmem:[%s9] sm:$0xff]
    %v4924 = vld [vmem:[%s9 + $0x8] sm:$0xff]
    %v4925 = vld [vmem:[%s9 + $0x10] sm:$0xff]
    %v4926 = vld [vmem:[%s9 + $0x18] sm:$0xff]
    %v4927 = vld [vmem:[%s9 + $0x20] sm:$0xff]
    %v4928 = vld [vmem:[%s9 + $0x28] sm:$0xff]
    %v4929 = vld [vmem:[%s9 + $0x30] sm:$0xff]
    %v4930 = vld [vmem:[%s9 + $0x38] sm:$0xff]
    %v4931 = vld [vmem:[%s9 + $0x40] sm:$0xff]
    %v4932 = vld [vmem:[%s9 + $0x48] sm:$0xff]
    %v4933 = vld [vmem:[%s9 + $0x50] sm:$0xff]
    %v4934 = vld [vmem:[%s9 + $0x58] sm:$0xff]
    %v4935 = vld [vmem:[%s9 + $0x60] sm:$0xff]
    %v4936 = vld [vmem:[%s9 + $0x68] sm:$0xff]
    %v4937 = vld [vmem:[%s9 + $0x70] sm:$0xff]
    %v4938 = vld [vmem:[%s9 + $0x78] sm:$0xff]
    %v4955 = vunpack.c.l.b16 %v4923
    %v4956 = vunpack.c.h.b16 %v4923
    %v4957 = vunpack.c.l.b16 %v4924
    %v4958 = vunpack.c.h.b16 %v4924
    %v4959 = vunpack.c.l.b16 %v4925
    %v4960 = vunpack.c.h.b16 %v4925
    %v4961 = vunpack.c.l.b16 %v4926
    %v4962 = vunpack.c.h.b16 %v4926
    %v4963 = vunpack.c.l.b16 %v4927
    %v4964 = vunpack.c.h.b16 %v4927
    %v4965 = vunpack.c.l.b16 %v4928
    %v4966 = vunpack.c.h.b16 %v4928
    %v4967 = vunpack.c.l.b16 %v4929
    %v4968 = vunpack.c.h.b16 %v4929
    %v4969 = vunpack.c.l.b16 %v4930
    %v4970 = vunpack.c.h.b16 %v4930
    %v4971 = vunpack.c.l.b16 %v4931
    %v4972 = vunpack.c.h.b16 %v4931
    %v4973 = vunpack.c.l.b16 %v4932
    %v4974 = vunpack.c.h.b16 %v4932
    %v4975 = vunpack.c.l.b16 %v4933
    %v4976 = vunpack.c.h.b16 %v4933
    %v4977 = vunpack.c.l.b16 %v4934
    %v4978 = vunpack.c.h.b16 %v4934
    %v4979 = vunpack.c.l.b16 %v4935
    %v4980 = vunpack.c.h.b16 %v4935
    %v4981 = vunpack.c.l.b16 %v4936
    %v4982 = vunpack.c.h.b16 %v4936
    %v4983 = vunpack.c.l.b16 %v4937
    %v4984 = vunpack.c.h.b16 %v4937
    %v4985 = vunpack.c.l.b16 %v4938
    %v4986 = vunpack.c.h.b16 %v4938
    %v4987 = vpack.c.b16 %v4957, %v4955
    %v4988 = vpack.c.b16 %v4958, %v4956
    %v4989 = vpack.c.b16 %v4961, %v4959
    %v4990 = vpack.c.b16 %v4962, %v4960
    %v4991 = vpack.c.b16 %v4965, %v4963
    %v4992 = vpack.c.b16 %v4966, %v4964
    %v4993 = vpack.c.b16 %v4969, %v4967
    %v4994 = vpack.c.b16 %v4970, %v4968
    %v4995 = vpack.c.b16 %v4973, %v4971
    %v4996 = vpack.c.b16 %v4974, %v4972
    %v4997 = vpack.c.b16 %v4977, %v4975
    %v4998 = vpack.c.b16 %v4978, %v4976
    %v4999 = vpack.c.b16 %v4981, %v4979
    %v5000 = vpack.c.b16 %v4982, %v4980
    %v5001 = vpack.c.b16 %v4985, %v4983
    %v5002 = vpack.c.b16 %v4986, %v4984
    %v5019 = vmul.bf16 %v4808, %v4987
    %v5020 = vmul.bf16 %v4899, %v4988
    %v5021 = vmul.bf16 %v4811, %v4989
    %v5022 = vmul.bf16 %v4902, %v4990
    %v5023 = vmul.bf16 %v4814, %v4991
    %v5024 = vmul.bf16 %v4905, %v4992
    %v5025 = vmul.bf16 %v4817, %v4993
    %v5026 = vmul.bf16 %v4908, %v4994
    %v5027 = vmul.bf16 %v4820, %v4995
    %v5028 = vmul.bf16 %v4911, %v4996
    %v5029 = vmul.bf16 %v4823, %v4997
    %v5030 = vmul.bf16 %v4914, %v4998
    %v5031 = vmul.bf16 %v4826, %v4999
    %v5032 = vmul.bf16 %v4917, %v5000
    %v5033 = vmul.bf16 %v4829, %v5001
    %v5034 = vmul.bf16 %v4920, %v5002
    %5035 = vmatprep.subr.bf16.mxu0 %v5034
    %5036 = vmatpush1.bf16.msra.mxu0 %v5033
    %5037 = vmatprep.subr.bf16.mxu0 %v5032
    %5038 = vmatpush1.bf16.msra.mxu0 %v5031
    %5039 = vmatprep.subr.bf16.mxu0 %v5030
    %5040 = vmatpush1.bf16.msra.mxu0 %v5029
    %5041 = vmatprep.subr.bf16.mxu0 %v5028
    %5042 = vmatpush1.bf16.msra.mxu0 %v5027
    %5043 = vmatprep.subr.bf16.mxu0 %v5026
    %5044 = vmatpush1.bf16.msra.mxu0 %v5025
    %5045 = vmatprep.subr.bf16.mxu0 %v5024
    %5046 = vmatpush1.bf16.msra.mxu0 %v5023
    %5047 = vmatprep.subr.bf16.mxu0 %v5022
    %5048 = vmatpush1.bf16.msra.mxu0 %v5021
    %5049 = vmatprep.subr.bf16.mxu0 %v5020
    %5050 = vmatpush1.bf16.msra.mxu0 %v5019
    %5051 = vmatprep.subr.bf16.mxu0 0
    %5052 = vmatpush2.bf16.msra.mxu0 0
    %5053 = vmatprep.subr.bf16.mxu0 0
    %5054 = vmatpush2.bf16.msra.mxu0 0
    %5055 = vmatprep.subr.bf16.mxu0 0
    %5056 = vmatpush2.bf16.msra.mxu0 0
    %5057 = vmatprep.subr.bf16.mxu0 0
    %5058 = vmatpush2.bf16.msra.mxu0 0
    %5059 = vmatprep.subr.bf16.mxu0 0
    %5060 = vmatpush2.bf16.msra.mxu0 0
    %5061 = vmatprep.subr.bf16.mxu0 0
    %5062 = vmatpush2.bf16.msra.mxu0 0
    %5063 = vmatprep.subr.bf16.mxu0 0
    %5064 = vmatpush2.bf16.msra.mxu0 0
    %5065 = vmatprep.subr.bf16.mxu0 0
    %5066 = vmatpush2.bf16.msra.mxu0 0
    %5067 = vmatprep.mubr.bf16.mxu0 0
    %5068 = vmatmul.mubr.bf16.gmra.mxu0 %v4922
    %v5069 = vpop.f32.mrf.mxu0
    %v5070 = vadd.f32 0.0, %v5069
    %v5071 = vpop.f32.mrf.mxu0
    %v5072 = vadd.f32 0.0, %v5071
    %v5073 = vpop.f32.mrf.mxu0
    %v5074 = vpop.f32.mrf.mxu0
    %5075 = vdwg.mxu0
    %v5076 = vpack.c.bf16 %v5070, %v5070
    %v5077 = vpack.c.bf16 %v5072, %v5072
    %v5078 = vld [vmem:[%s11] sm:$0xf]
    %v5079 = vld [vmem:[%s11 + $0x4] sm:$0xf]
    %v5080 = vld [vmem:[%s11 + $0x8] sm:$0xf]
    %v5081 = vld [vmem:[%s11 + $0xc] sm:$0xf]
    %v5082 = vld [vmem:[%s11 + $0x10] sm:$0xf]
    %v5083 = vld [vmem:[%s11 + $0x14] sm:$0xf]
    %v5084 = vld [vmem:[%s11 + $0x18] sm:$0xf]
    %v5085 = vld [vmem:[%s11 + $0x1c] sm:$0xf]
    %v5086 = vld [vmem:[%s11 + $0x20] sm:$0xf]
    %v5087 = vld [vmem:[%s11 + $0x24] sm:$0xf]
    %v5088 = vld [vmem:[%s11 + $0x28] sm:$0xf]
    %v5089 = vld [vmem:[%s11 + $0x2c] sm:$0xf]
    %v5090 = vld [vmem:[%s11 + $0x30] sm:$0xf]
    %v5091 = vld [vmem:[%s11 + $0x34] sm:$0xf]
    %v5092 = vld [vmem:[%s11 + $0x38] sm:$0xf]
    %v5093 = vld [vmem:[%s11 + $0x3c] sm:$0xf]
    %v5094 = vld [vmem:[%s11 + $0x40] sm:$0xf]
    %v5095 = vld [vmem:[%s11 + $0x44] sm:$0xf]
    %v5096 = vld [vmem:[%s11 + $0x48] sm:$0xf]
    %v5097 = vld [vmem:[%s11 + $0x4c] sm:$0xf]
    %v5098 = vld [vmem:[%s11 + $0x50] sm:$0xf]
    %v5099 = vld [vmem:[%s11 + $0x54] sm:$0xf]
    %v5100 = vld [vmem:[%s11 + $0x58] sm:$0xf]
    %v5101 = vld [vmem:[%s11 + $0x5c] sm:$0xf]
    %v5102 = vld [vmem:[%s12] sm:$0x1]
    %v5104 = vlaneseq
    %v5105 = vshrl.u32 %v5104, 7
    %v5106 = vsub.s32 0, %v5105
    %v5107 = vrot.slane %v5102, %v5106
    %v5133 = vunpack.c.l.b16 %v5078
    %v5134 = vunpack.c.l.b16 %v5079
    %v5135 = vunpack.c.l.b16 %v5080
    %v5136 = vunpack.c.l.b16 %v5081
    %v5137 = vunpack.c.l.b16 %v5082
    %v5138 = vunpack.c.l.b16 %v5083
    %v5139 = vunpack.c.l.b16 %v5084
    %v5140 = vunpack.c.l.b16 %v5085
    %v5141 = vunpack.c.l.b16 %v5086
    %v5142 = vunpack.c.l.b16 %v5087
    %v5143 = vunpack.c.l.b16 %v5088
    %v5144 = vunpack.c.l.b16 %v5089
    %v5145 = vunpack.c.l.b16 %v5090
    %v5146 = vunpack.c.l.b16 %v5091
    %v5147 = vunpack.c.l.b16 %v5092
    %v5148 = vunpack.c.l.b16 %v5093
    %v5149 = vunpack.c.l.b16 %v5094
    %v5150 = vunpack.c.l.b16 %v5095
    %v5151 = vunpack.c.l.b16 %v5096
    %v5152 = vunpack.c.l.b16 %v5097
    %v5153 = vunpack.c.l.b16 %v5098
    %v5154 = vunpack.c.l.b16 %v5099
    %v5155 = vunpack.c.l.b16 %v5100
    %v5156 = vunpack.c.l.b16 %v5101
    %v5157 = vpack.c.b16 %v5134, %v5133
    %v5158 = vpack.c.b16 %v5136, %v5135
    %v5159 = vpack.c.b16 %v5138, %v5137
    %v5160 = vpack.c.b16 %v5140, %v5139
    %v5161 = vpack.c.b16 %v5142, %v5141
    %v5162 = vpack.c.b16 %v5144, %v5143
    %v5163 = vpack.c.b16 %v5146, %v5145
    %v5164 = vpack.c.b16 %v5148, %v5147
    %v5165 = vpack.c.b16 %v5150, %v5149
    %v5166 = vpack.c.b16 %v5152, %v5151
    %v5167 = vpack.c.b16 %v5154, %v5153
    %v5168 = vpack.c.b16 %v5156, %v5155
    %v5182 = vsel %vm1726, %v5077, 0
    %5184 = vmatprep.subr.bf16.mxu0 0
    %5185 = vmatpush1.bf16.msra.mxu0 %v5164
    %5186 = vmatprep.subr.bf16.mxu0 0
    %5187 = vmatpush1.bf16.msra.mxu0 %v5163
    %5188 = vmatprep.subr.bf16.mxu0 0
    %5189 = vmatpush1.bf16.msra.mxu0 %v5162
    %5190 = vmatprep.subr.bf16.mxu0 0
    %5191 = vmatpush1.bf16.msra.mxu0 %v5161
    %5192 = vmatprep.subr.bf16.mxu0 0
    %5193 = vmatpush1.bf16.msra.mxu0 %v5160
    %5194 = vmatprep.subr.bf16.mxu0 0
    %5195 = vmatpush1.bf16.msra.mxu0 %v5159
    %5196 = vmatprep.subr.bf16.mxu0 0
    %5197 = vmatpush1.bf16.msra.mxu0 %v5158
    %5198 = vmatprep.subr.bf16.mxu0 0
    %5199 = vmatpush1.bf16.msra.mxu0 %v5157
    %5200 = vmatprep.subr.bf16.mxu0 0
    %5201 = vmatpush2.bf16.msra.mxu0 0
    %5202 = vmatprep.subr.bf16.mxu0 0
    %5203 = vmatpush2.bf16.msra.mxu0 0
    %5204 = vmatprep.subr.bf16.mxu0 0
    %5205 = vmatpush2.bf16.msra.mxu0 0
    %5206 = vmatprep.subr.bf16.mxu0 0
    %5207 = vmatpush2.bf16.msra.mxu0 0
    %5208 = vmatprep.subr.bf16.mxu0 0
    %5209 = vmatpush2.bf16.msra.mxu0 %v5168
    %5210 = vmatprep.subr.bf16.mxu0 0
    %5211 = vmatpush2.bf16.msra.mxu0 %v5167
    %5212 = vmatprep.subr.bf16.mxu0 0
    %5213 = vmatpush2.bf16.msra.mxu0 %v5166
    %5214 = vmatprep.subr.bf16.mxu0 0
    %5215 = vmatpush2.bf16.msra.mxu0 %v5165
    %5216 = vmatprep.mubr.bf16.mxu0 %v5182
    %5217 = vmatmul.mubr.bf16.gmra.mxu0 %v5076
    %v5218 = vpop.f32.mrf.mxu0
    %v5219 = vadd.f32 %v5107, %v5218
    %v5220 = vpop.f32.mrf.mxu0
    %v5221 = vpop.f32.mrf.mxu0
    %v5222 = vpop.f32.mrf.mxu0
    %5223 = vdwg.mxu0
    %v5224 = vmul.f32 %v5219, 0.5
    %v5225 = vmul.f32 %v5219, 0.70710677
    %v5226 = verf.f32.pop %v5225
    %v5227 = vadd.f32 %v5226, 1.0
    %v5228 = vmul.f32 %v5224, %v5227
    %vm5229 = vcmask 386048
    %5230 = vst.msk [vmem:[#allocation2] sm:$0x3] %vm5229, %v5228
    // Predicated region
    $region54: #{tpu_custom_call.1} parent=1 // pred_check
      _
    $region55: #{tpu_custom_call.1} parent=1 // pred_check_branch
      %5232 = sbr.rel (0) target = $region57
    $region56: #{tpu_custom_call.1} parent=1 // pred_region
      %s5234 = ssub.s32 32, 32
      %5235 = vsyncadd [#allocation3], %s5234
      %s5237 = sshll.u32 [#allocation2], 4
      %s5238 = int_to_ptr.vmem [resolvable:$true] %s5237
      %5240 = dma.vmem_to_hbm [thread:$0]  %s5238, 32, %s13, [#allocation3]
    $region57: #{tpu_custom_call.1} parent=1 // pred_fallthru
      _
    // Predicated region
    $region58: #{tpu_custom_call.1} parent=1 // pred_check
      _
    $region59: #{tpu_custom_call.1} parent=1 // pred_check_branch
      %5242 = sbr.rel (0) target = $region61
    $region60: #{tpu_custom_call.1} parent=1 // pred_region
      %5243 = dma.done [#allocation3], 32
    $region61: #{tpu_custom_call.1} parent=1 // pred_fallthru
      _
    %5244 = vsyncpa [#allocation3], 1

</llo_original>
